<compile_context>
chip_gen: v7x
topology: tpu7x:2x2x1
jax: 0.10.0
libtpu: 0.0.40
codegen_flags: <defaults>
</compile_context>

<pallas_src>
import functools
import math

import jax
import jax.numpy as jnp
from jax.experimental import pallas as pl
from jax.experimental.pallas import tpu as pltpu


# ---------------------------------------------------------------------------
# In-kernel building blocks (row-flat layout: feature map value of shape (H, W*C))
# ---------------------------------------------------------------------------

def _conv_rowflat(x, bmat_ref, bias_ref, relu):
    """Valid 2-D conv as KH banded dots.  x: (H, W*Ci); bmat: (KH, W*Ci, Wo*Co)."""
    KH = bmat_ref.shape[0]
    Ho = x.shape[0] - KH + 1
    acc = jnp.dot(x[0:Ho, :], bmat_ref[0], preferred_element_type=jnp.float32)
    for kh in range(1, KH):
        acc = acc + jnp.dot(x[kh:kh + Ho, :], bmat_ref[kh],
                            preferred_element_type=jnp.float32)
    acc = acc + bias_ref[...]
    return jnp.maximum(acc, 0.0) if relu else acc


def _conv_rowflat_split(f, g, bf_ref, bg_ref, bias_ref, relu):
    """Same as _conv_rowflat but the input channels are split across f and g
    (avoids materializing the decoder's channel concat)."""
    KH = bf_ref.shape[0]
    Ho = f.shape[0] - KH + 1
    acc = (jnp.dot(f[0:Ho, :], bf_ref[0], preferred_element_type=jnp.float32)
           + jnp.dot(g[0:Ho, :], bg_ref[0], preferred_element_type=jnp.float32))
    for kh in range(1, KH):
        acc = acc + jnp.dot(f[kh:kh + Ho, :], bf_ref[kh],
                            preferred_element_type=jnp.float32)
        acc = acc + jnp.dot(g[kh:kh + Ho, :], bg_ref[kh],
                            preferred_element_type=jnp.float32)
    acc = acc + bias_ref[...]
    return jnp.maximum(acc, 0.0) if relu else acc


def _conv_pass_rowflat(x, c1B, c1b, c2B, c2b, rB, rb):
    """ConvPass([(3,3),(3,3)], ReLU, 'valid') with fused 1x1 residual/crop/ReLU."""
    h = _conv_rowflat(x, c1B, c1b, relu=True)
    out = _conv_rowflat(h, c2B, c2b, relu=False)
    oy = ((c1B.shape[0] - 1) + (c2B.shape[0] - 1)) // 2   # center-crop row offset
    Ho = out.shape[0]
    res = jnp.dot(x[oy:oy + Ho, :], rB[...],
                  preferred_element_type=jnp.float32) + rb[...]
    return jnp.maximum(out + res, 0.0)


def _conv_pass_rowflat_split(f, g, c1Bf, c1Bg, c1b, c2B, c2b, rBf, rBg, rb):
    """Decoder ConvPass on cat([f, g], channel) without building the concat."""
    h = _conv_rowflat_split(f, g, c1Bf, c1Bg, c1b, relu=True)
    out = _conv_rowflat(h, c2B, c2b, relu=False)
    oy = ((c1Bf.shape[0] - 1) + (c2B.shape[0] - 1)) // 2
    Ho = out.shape[0]
    res = (jnp.dot(f[oy:oy + Ho, :], rBf[...], preferred_element_type=jnp.float32)
           + jnp.dot(g[oy:oy + Ho, :], rBg[...], preferred_element_type=jnp.float32)
           + rb[...])
    return jnp.maximum(out + res, 0.0)


def _maxpool_rowflat(x, rsel_ref, csel_ref):
    """2x2 max pool, stride 2, via precomputed 0/1 selection matrices."""
    rows = jnp.maximum(
        jnp.dot(rsel_ref[0], x, preferred_element_type=jnp.float32),
        jnp.dot(rsel_ref[1], x, preferred_element_type=jnp.float32))
    return jnp.maximum(
        jnp.dot(rows, csel_ref[0], preferred_element_type=jnp.float32),
        jnp.dot(rows, csel_ref[1], preferred_element_type=jnp.float32))


def _conv_transpose_rowflat(x, umat_ref, rsel_ref, bias_ref):
    """ConvTranspose2d(kernel=2, stride=2); emits the interleaved map directly."""
    p0 = jnp.dot(x, umat_ref[0], preferred_element_type=jnp.float32)
    p1 = jnp.dot(x, umat_ref[1], preferred_element_type=jnp.float32)
    up = (jnp.dot(rsel_ref[0], p0, preferred_element_type=jnp.float32)
          + jnp.dot(rsel_ref[1], p1, preferred_element_type=jnp.float32))
    return up + bias_ref[...]


# ---------------------------------------------------------------------------
# Fused UNet kernel (one grid step == one batch element)
# ---------------------------------------------------------------------------

def _unet_kernel(x_ref,
                 l0c1B, l0c1b, l0c2B, l0c2b, l0rB, l0rb,
                 pool_rsel, pool_csel,
                 l1c1B, l1c1b, l1c2B, l1c2b, l1rB, l1rb,
                 upU, uprsel, upb,
                 r0c1Bf, r0c1Bg, r0c1b, r0c2B, r0c2b, r0rBf, r0rBg, r0rb,
                 o_ref,
                 *, c_skip, c_up, factor, ks_up):
    x = x_ref[0]                                            # (H, W*Cin) row-flat

    # encoder level 0
    f0 = _conv_pass_rowflat(x, l0c1B, l0c1b, l0c2B, l0c2b, l0rB, l0rb)
    g_in = _maxpool_rowflat(f0, pool_rsel, pool_csel)

    # encoder level 1 (bottom)
    f1 = _conv_pass_rowflat(g_in, l1c1B, l1c1b, l1c2B, l1c2b, l1rB, l1rb)

    # decoder: transposed-conv upsample, crop_to_factor, crop skip, conv pass
    g_up = _conv_transpose_rowflat(f1, upU, uprsel, upb)

    Hu = g_up.shape[0]
    Wu = g_up.shape[1] // c_up
    conv_crop = tuple(sum(k[d] - 1 for k in ks_up) for d in range(2))
    tgt = tuple((s - c) // f * f + c
                for s, c, f in zip((Hu, Wu), conv_crop, factor))
    if tgt != (Hu, Wu):                                     # static crop_to_factor
        oy, ox = (Hu - tgt[0]) // 2, (Wu - tgt[1]) // 2
        g_cr = g_up[oy:oy + tgt[0], ox * c_up:(ox + tgt[1]) * c_up]
    else:
        g_cr = g_up
    th, tw = tgt

    H0 = f0.shape[0]
    W0 = f0.shape[1] // c_skip
    oy, ox = (H0 - th) // 2, (W0 - tw) // 2
    f_cr = f0[oy:oy + th, ox * c_skip:(ox + tw) * c_skip]   # crop skip connection

    out = _conv_pass_rowflat_split(f_cr, g_cr, r0c1Bf, r0c1Bg, r0c1b,
                                   r0c2B, r0c2b, r0rBf, r0rBg, r0rb)
    o_ref[0] = out


# ---------------------------------------------------------------------------
# Host-side (trace-time) weight preprocessing: banded / selector matrices
# ---------------------------------------------------------------------------

def _band_weights(w, W):
    """w: (KH, KW, Ci, Co) -> list over kh of (W*Ci, Wo*Co) banded matrices with
    B_kh[(j+kw)*Ci + ci, j*Co + co] = w[kh, kw, ci, co]."""
    KH, KW, Ci, Co = w.shape
    Wo = W - KW + 1
    j = jnp.arange(Wo)
    mats = []
    for kh in range(KH):
        m = jnp.zeros((W, Ci, Wo, Co), w.dtype)
        for kw in range(KW):
            m = m.at[j + kw, :, j, :].add(w[kh, kw][None, :, :])
        mats.append(m.reshape(W * Ci, Wo * Co))
    return mats


def _res_band_weight(w, W, Wt, ox):
    """1x1 residual conv with column center-crop baked in: (W*Ci, Wt*Co)."""
    Ci, Co = w.shape[2], w.shape[3]
    j = jnp.arange(Wt)
    m = jnp.zeros((W, Ci, Wt, Co), w.dtype)
    m = m.at[j + ox, :, j, :].add(w[0, 0][None, :, :])
    return m.reshape(W * Ci, Wt * Co)


def _pool_selectors(H, W, C):
    """0/1 row and column selectors for a 2x2/stride-2 max pool in row-flat form."""
    Ho, Wo = H // 2, W // 2
    r = jnp.arange(Ho)
    rsel = jnp.zeros((2, Ho, H), jnp.float32)
    rsel = rsel.at[0, r, 2 * r].set(1.0).at[1, r, 2 * r + 1].set(1.0)
    jj = jnp.arange(Wo)[:, None]
    cc = jnp.arange(C)[None, :]
    csel = jnp.zeros((2, W * C, Wo * C), jnp.float32)
    csel = csel.at[0, 2 * jj * C + cc, jj * C + cc].set(1.0)
    csel = csel.at[1, (2 * jj + 1) * C + cc, jj * C + cc].set(1.0)
    return rsel, csel


def _upsample_inputs(w, b, Hi, Wi):
    """ConvTranspose2d(k=2, s=2) in row-flat form: per-row-parity weight matrices,
    row-scatter selectors and a tiled bias."""
    _, _, Ci, Co = w.shape
    j = jnp.arange(Wi)
    mats = []
    for di in range(2):
        m = jnp.zeros((Wi, Ci, 2 * Wi, Co), w.dtype)
        for dj in range(2):
            m = m.at[j, :, 2 * j + dj, :].add(w[di, dj][None, :, :])
        mats.append(m.reshape(Wi * Ci, 2 * Wi * Co))
    U = jnp.stack(mats, axis=0)                             # (2, Wi*Ci, 2*Wi*Co)
    i = jnp.arange(Hi)
    rsel = jnp.zeros((2, 2 * Hi, Hi), jnp.float32)
    rsel = rsel.at[0, 2 * i, i].set(1.0).at[1, 2 * i + 1, i].set(1.0)
    return U, rsel, jnp.tile(b, (1, 2 * Wi))


def _make_conv_pass_inputs(p, W):
    """Banded inputs for a ConvPass([(3,3),(3,3)]) whose input row width is W."""
    c1w, c1b = p["c1"]["w"], p["c1"]["b"]
    c2w, c2b = p["c2"]["w"], p["c2"]["b"]
    rw, rb = p["res"]["w"], p["res"]["b"]
    W1 = W - c1w.shape[1] + 1
    W2 = W1 - c2w.shape[1] + 1
    ox = (W - W2) // 2
    return [jnp.stack(_band_weights(c1w, W), axis=0), jnp.tile(c1b, (1, W1)),
            jnp.stack(_band_weights(c2w, W1), axis=0), jnp.tile(c2b, (1, W2)),
            _res_band_weight(rw, W, W2, ox), jnp.tile(rb, (1, W2))]


def _make_decoder_inputs(p, W, c_skip):
    """Decoder ConvPass with the first conv / residual split along K (f vs g)."""
    c1w, c1b = p["c1"]["w"], p["c1"]["b"]
    c2w, c2b = p["c2"]["w"], p["c2"]["b"]
    rw, rb = p["res"]["w"], p["res"]["b"]
    W1 = W - c1w.shape[1] + 1
    W2 = W1 - c2w.shape[1] + 1
    ox = (W - W2) // 2
    return [jnp.stack(_band_weights(c1w[:, :, :c_skip, :], W), axis=0),
            jnp.stack(_band_weights(c1w[:, :, c_skip:, :], W), axis=0),
            jnp.tile(c1b, (1, W1)),
            jnp.stack(_band_weights(c2w, W1), axis=0), jnp.tile(c2b, (1, W2)),
            _res_band_weight(rw[:, :, :c_skip, :], W, W2, ox),
            _res_band_weight(rw[:, :, c_skip:, :], W, W2, ox),
            jnp.tile(rb, (1, W2))]


# ---------------------------------------------------------------------------
# Public wrapper: NCHW in / NCHW out, one fused pallas_call
# ---------------------------------------------------------------------------

def unet_forward_pallas(x_nchw, params):
    x = jnp.transpose(x_nchw, (0, 2, 3, 1))                 # NCHW -> NHWC
    N, H, W, Cin = x.shape
    x2 = x.reshape(N, H, W * Cin)                           # row-flat (channels minor)

    p0, p1 = params["l_conv"]
    pu = params["r_up"][0]
    pr = params["r_conv"][0]

    c_skip = p0["c2"]["w"].shape[-1]                        # skip channels (8)
    c_up = pu["w"].shape[-1]                                # upsampled channels (16)
    c_out = pr["c2"]["w"].shape[-1]                         # output channels (8)

    # static spatial bookkeeping (valid 3x3+3x3 convs, pool 2, upsample 2)
    H0, W0 = H - 4, W - 4
    assert H0 % 2 == 0 and W0 % 2 == 0, "downsample factor mismatch"
    Hp, Wp = H0 // 2, W0 // 2
    H1, W1 = Hp - 4, Wp - 4
    Hu, Wu = 2 * H1, 2 * W1
    th = (Hu - 4) // 2 * 2 + 4                              # crop_to_factor target
    tw = (Wu - 4) // 2 * 2 + 4
    Hf, Wf = th - 4, tw - 4
    assert Hf > 0 and Wf > 0, "input too small for this valid-padding UNet"

    pool_rsel, pool_csel = _pool_selectors(H0, W0, c_skip)
    upU, uprsel, upb = _upsample_inputs(pu["w"], pu["b"], H1, W1)

    inputs = ([x2]
              + _make_conv_pass_inputs(p0, W)
              + [pool_rsel, pool_csel]
              + _make_conv_pass_inputs(p1, Wp)
              + [upU, uprsel, upb]
              + _make_decoder_inputs(pr, tw, c_skip))

    in_specs = [pl.BlockSpec((1, H, W * Cin), lambda n: (n, 0, 0))]
    for a in inputs[1:]:
        in_specs.append(pl.BlockSpec(a.shape, lambda n, nd=a.ndim: (0,) * nd))

    kern = functools.partial(_unet_kernel, c_skip=c_skip, c_up=c_up,
                             factor=(2, 2), ks_up=((3, 3), (3, 3)))

    y = pl.pallas_call(
        kern,
        out_shape=jax.ShapeDtypeStruct((N, Hf, Wf * c_out), jnp.float32),
        grid=(N,),
        in_specs=in_specs,
        out_specs=pl.BlockSpec((1, Hf, Wf * c_out), lambda n: (n, 0, 0)),
        compiler_params=pltpu.CompilerParams(
            dimension_semantics=("parallel",)),                 # batch across TCs
    )(*inputs)

    y = y.reshape(N, Hf, Wf, c_out)
    return jnp.transpose(y, (0, 3, 1, 2))                   # NHWC -> NCHW


# ---------------------------------------------------------------------------
# Pure-JAX reference (numerical check of the Pallas kernel)
# ---------------------------------------------------------------------------

def _ref_conv2d(x, w, b, relu):
    y = jax.lax.conv_general_dilated(
        x, w, (1, 1), "VALID",
        dimension_numbers=("NHWC", "HWIO", "NHWC"),
        precision=jax.lax.Precision.HIGHEST) + b.reshape(1, 1, 1, -1)
    return jnp.maximum(y, 0.0) if relu else y


def _ref_maxpool(x):
    return jax.lax.reduce_window(x, -jnp.inf, jax.lax.max,
                                 (1, 2, 2, 1), (1, 2, 2, 1), "VALID")


def _ref_convt(x, w, b):
    N, Hi, Wi, _ = x.shape
    Co = w.shape[-1]
    y = jnp.einsum("nhwc,ijco->nhiwjo", x, w,
                   precision=jax.lax.Precision.HIGHEST)
    return y.reshape(N, 2 * Hi, 2 * Wi, Co) + b.reshape(1, 1, 1, -1)


def _ref_center_crop(x, th, tw):
    oy = (x.shape[1] - th) // 2
    ox = (x.shape[2] - tw) // 2
    return x[:, oy:oy + th, ox:ox + tw, :]


def _ref_conv_pass(x, p):
    h = _ref_conv2d(x, p["c1"]["w"], p["c1"]["b"], True)
    out = _ref_conv2d(h, p["c2"]["w"], p["c2"]["b"], False)
    res = _ref_conv2d(x, p["res"]["w"], p["res"]["b"], False)
    res = _ref_center_crop(res, out.shape[1], out.shape[2])
    return jnp.maximum(out + res, 0.0)


def _ref_crop_to_factor(x, factor, kernel_sizes):
    spatial = x.shape[1:3]
    conv_crop = tuple(sum(ks[d] - 1 for ks in kernel_sizes) for d in range(2))
    ns = tuple(int(math.floor(float(s - c) / f))
               for s, c, f in zip(spatial, conv_crop, factor))
    target = tuple(n * f + c for n, c, f in zip(ns, conv_crop, factor))
    if target != spatial:
        return _ref_center_crop(x, target[0], target[1])
    return x


def unet_forward_reference(x_nchw, params):
    x = jnp.transpose(x_nchw, (0, 2, 3, 1))
    f0 = _ref_conv_pass(x, params["l_conv"][0])
    g_in = _ref_maxpool(f0)
    f1 = _ref_conv_pass(g_in, params["l_conv"][1])
    g_up = _ref_convt(f1, params["r_up"][0]["w"], params["r_up"][0]["b"])
    g_cr = _ref_crop_to_factor(g_up, (2, 2), [(3, 3), (3, 3)])
    f_cr = _ref_center_crop(f0, g_cr.shape[1], g_cr.shape[2])
    fr = jnp.concatenate([f_cr, g_cr], axis=-1)
    out = _ref_conv_pass(fr, params["r_conv"][0])
    return jnp.transpose(out, (0, 3, 1, 2))


# ---------------------------------------------------------------------------
# Deterministic parameter init (shapes per UNet.__init__ for this config)
# ---------------------------------------------------------------------------

def _conv_params(key, kh, kw, cin, cout):
    k_w, k_b = jax.random.split(key)
    fan_in = kh * kw * cin
    w = jax.random.normal(k_w, (kh, kw, cin, cout), jnp.float32) / math.sqrt(fan_in)
    b = 0.1 * jax.random.normal(k_b, (1, cout), jnp.float32)
    return {"w": w, "b": b}


def init_unet_params(key):
    ks = jax.random.split(key, 12)
    return {
        # encoder ConvPasses: level 0 (4->8), level 1 (8->16)
        "l_conv": [
            {"c1": _conv_params(ks[0], 3, 3, 4, 8),
             "c2": _conv_params(ks[1], 3, 3, 8, 8),
             "res": _conv_params(ks[2], 1, 1, 4, 8)},
            {"c1": _conv_params(ks[3], 3, 3, 8, 16),
             "c2": _conv_params(ks[4], 3, 3, 16, 16),
             "res": _conv_params(ks[5], 1, 1, 8, 16)},
        ],
        # ConvTranspose2d(16, 16, kernel=2, stride=2); weight stored as (2,2,Ci,Co)
        "r_up": [
            {"w": jax.random.normal(ks[6], (2, 2, 16, 16), jnp.float32) / math.sqrt(64),
             "b": 0.1 * jax.random.normal(ks[7], (1, 16), jnp.float32)},
        ],
        # decoder ConvPass: (8 + 16) -> 8
        "r_conv": [
            {"c1": _conv_params(ks[8], 3, 3, 24, 8),
             "c2": _conv_params(ks[9], 3, 3, 8, 8),
             "res": _conv_params(ks[10], 1, 1, 24, 8)},
        ],
    }


if __name__ == "__main__":
    key = jax.random.PRNGKey(0)
    k_x, k_p = jax.random.split(key)
    x = jax.random.normal(k_x, (2, 4, 20, 20), jnp.float32)   # NCHW, like PyTorch
    params = init_unet_params(k_p)

    fwd = jax.jit(lambda inp: unet_forward_pallas(inp, params))
    y = jax.block_until_ready(fwd(x))
    assert y.shape == (2, 8, 4, 4), f"unexpected output shape {y.shape}"

    y_ref = unet_forward_reference(x, params)
    err = float(jnp.max(jnp.abs(y - y_ref)))
    assert err < 1e-3, f"Pallas vs reference mismatch, max abs err = {err}"

    print("KERNEL_OK")
</pallas_src>

<mosaic_0001>
module attributes {stable_mosaic.version = 11 : i64} {
  func.func @_unet_kernel(%arg0: i32, %arg1: memref<1x20x80xf32, #tpu.memory_space<vmem>>, %arg2: memref<3x80x144xf32, #tpu.memory_space<vmem>>, %arg3: memref<1x144xf32, #tpu.memory_space<vmem>>, %arg4: memref<3x144x128xf32, #tpu.memory_space<vmem>>, %arg5: memref<1x128xf32, #tpu.memory_space<vmem>>, %arg6: memref<80x128xf32, #tpu.memory_space<vmem>>, %arg7: memref<1x128xf32, #tpu.memory_space<vmem>>, %arg8: memref<2x8x16xf32, #tpu.memory_space<vmem>>, %arg9: memref<2x128x64xf32, #tpu.memory_space<vmem>>, %arg10: memref<3x64x96xf32, #tpu.memory_space<vmem>>, %arg11: memref<1x96xf32, #tpu.memory_space<vmem>>, %arg12: memref<3x96x64xf32, #tpu.memory_space<vmem>>, %arg13: memref<1x64xf32, #tpu.memory_space<vmem>>, %arg14: memref<64x64xf32, #tpu.memory_space<vmem>>, %arg15: memref<1x64xf32, #tpu.memory_space<vmem>>, %arg16: memref<2x64x128xf32, #tpu.memory_space<vmem>>, %arg17: memref<2x8x4xf32, #tpu.memory_space<vmem>>, %arg18: memref<1x128xf32, #tpu.memory_space<vmem>>, %arg19: memref<3x64x48xf32, #tpu.memory_space<vmem>>, %arg20: memref<3x128x48xf32, #tpu.memory_space<vmem>>, %arg21: memref<1x48xf32, #tpu.memory_space<vmem>>, %arg22: memref<3x48x32xf32, #tpu.memory_space<vmem>>, %arg23: memref<1x32xf32, #tpu.memory_space<vmem>>, %arg24: memref<64x32xf32, #tpu.memory_space<vmem>>, %arg25: memref<128x32xf32, #tpu.memory_space<vmem>>, %arg26: memref<1x32xf32, #tpu.memory_space<vmem>>, %arg27: memref<1x4x32xf32, #tpu.memory_space<vmem>>) attributes {dimension_semantics = [#tpu.dimension_semantics<parallel>], iteration_bounds = array<i64: 2>, scalar_prefetch = 0 : i64, scratch_operands = 0 : i64, tpu.core_type = #tpu.core_type<tc>, window_params = [{transform_indices = @transform_0, window_bounds = array<i64: 1, 20, 80>}, {pipeline_mode = #tpu.pipeline_mode<synchronous>, transform_indices = @transform_1, window_bounds = array<i64: 3, 80, 144>}, {pipeline_mode = #tpu.pipeline_mode<synchronous>, transform_indices = @transform_2, window_bounds = array<i64: 1, 144>}, {pipeline_mode = #tpu.pipeline_mode<synchronous>, transform_indices = @transform_3, window_bounds = array<i64: 3, 144, 128>}, {pipeline_mode = #tpu.pipeline_mode<synchronous>, transform_indices = @transform_4, window_bounds = array<i64: 1, 128>}, {pipeline_mode = #tpu.pipeline_mode<synchronous>, transform_indices = @transform_5, window_bounds = array<i64: 80, 128>}, {pipeline_mode = #tpu.pipeline_mode<synchronous>, transform_indices = @transform_6, window_bounds = array<i64: 1, 128>}, {pipeline_mode = #tpu.pipeline_mode<synchronous>, transform_indices = @transform_7, window_bounds = array<i64: 2, 8, 16>}, {pipeline_mode = #tpu.pipeline_mode<synchronous>, transform_indices = @transform_8, window_bounds = array<i64: 2, 128, 64>}, {pipeline_mode = #tpu.pipeline_mode<synchronous>, transform_indices = @transform_9, window_bounds = array<i64: 3, 64, 96>}, {pipeline_mode = #tpu.pipeline_mode<synchronous>, transform_indices = @transform_10, window_bounds = array<i64: 1, 96>}, {pipeline_mode = #tpu.pipeline_mode<synchronous>, transform_indices = @transform_11, window_bounds = array<i64: 3, 96, 64>}, {pipeline_mode = #tpu.pipeline_mode<synchronous>, transform_indices = @transform_12, window_bounds = array<i64: 1, 64>}, {pipeline_mode = #tpu.pipeline_mode<synchronous>, transform_indices = @transform_13, window_bounds = array<i64: 64, 64>}, {pipeline_mode = #tpu.pipeline_mode<synchronous>, transform_indices = @transform_14, window_bounds = array<i64: 1, 64>}, {pipeline_mode = #tpu.pipeline_mode<synchronous>, transform_indices = @transform_15, window_bounds = array<i64: 2, 64, 128>}, {pipeline_mode = #tpu.pipeline_mode<synchronous>, transform_indices = @transform_16, window_bounds = array<i64: 2, 8, 4>}, {pipeline_mode = #tpu.pipeline_mode<synchronous>, transform_indices = @transform_17, window_bounds = array<i64: 1, 128>}, {pipeline_mode = #tpu.pipeline_mode<synchronous>, transform_indices = @transform_18, window_bounds = array<i64: 3, 64, 48>}, {pipeline_mode = #tpu.pipeline_mode<synchronous>, transform_indices = @transform_19, window_bounds = array<i64: 3, 128, 48>}, {pipeline_mode = #tpu.pipeline_mode<synchronous>, transform_indices = @transform_20, window_bounds = array<i64: 1, 48>}, {pipeline_mode = #tpu.pipeline_mode<synchronous>, transform_indices = @transform_21, window_bounds = array<i64: 3, 48, 32>}, {pipeline_mode = #tpu.pipeline_mode<synchronous>, transform_indices = @transform_22, window_bounds = array<i64: 1, 32>}, {pipeline_mode = #tpu.pipeline_mode<synchronous>, transform_indices = @transform_23, window_bounds = array<i64: 64, 32>}, {pipeline_mode = #tpu.pipeline_mode<synchronous>, transform_indices = @transform_24, window_bounds = array<i64: 128, 32>}, {pipeline_mode = #tpu.pipeline_mode<synchronous>, transform_indices = @transform_25, window_bounds = array<i64: 1, 32>}, {transform_indices = @transform_26, window_bounds = array<i64: 1, 4, 32>}]} {
    %c0 = arith.constant 0 : index
    %c0_0 = arith.constant 0 : index
    %c0_1 = arith.constant 0 : index
    %0 = vector.load %arg1[%c0, %c0_0, %c0_1] : memref<1x20x80xf32, #tpu.memory_space<vmem>>, vector<1x20x80xf32>
    %1 = vector.shape_cast %0 : vector<1x20x80xf32> to vector<20x80xf32>
    %2 = vector.extract_strided_slice %1 {offsets = [0, 0], sizes = [18, 80], strides = [1, 1]} : vector<20x80xf32> to vector<18x80xf32>
    %c0_2 = arith.constant 0 : index
    %c0_3 = arith.constant 0 : index
    %c0_4 = arith.constant 0 : index
    %3 = vector.load %arg2[%c0_2, %c0_3, %c0_4] : memref<3x80x144xf32, #tpu.memory_space<vmem>>, vector<1x80x144xf32>
    %4 = vector.shape_cast %3 : vector<1x80x144xf32> to vector<80x144xf32>
    %cst = arith.constant dense<0.000000e+00> : vector<18x144xf32>
    %5 = tpu.matmul %2, %4, %cst {dimension_numbers = #tpu.dot_dimension_numbers<[1], [0], [0], [1], [0, 0, 1, 1], [], []>} : vector<18x80xf32>, vector<80x144xf32>, vector<18x144xf32> -> vector<18x144xf32>
    %6 = vector.extract_strided_slice %1 {offsets = [1, 0], sizes = [18, 80], strides = [1, 1]} : vector<20x80xf32> to vector<18x80xf32>
    %c1 = arith.constant 1 : index
    %c0_5 = arith.constant 0 : index
    %c0_6 = arith.constant 0 : index
    %7 = vector.load %arg2[%c1, %c0_5, %c0_6] : memref<3x80x144xf32, #tpu.memory_space<vmem>>, vector<1x80x144xf32>
    %8 = vector.shape_cast %7 : vector<1x80x144xf32> to vector<80x144xf32>
    %cst_7 = arith.constant dense<0.000000e+00> : vector<18x144xf32>
    %9 = tpu.matmul %6, %8, %cst_7 {dimension_numbers = #tpu.dot_dimension_numbers<[1], [0], [0], [1], [0, 0, 1, 1], [], []>} : vector<18x80xf32>, vector<80x144xf32>, vector<18x144xf32> -> vector<18x144xf32>
    %10 = arith.addf %5, %9 : vector<18x144xf32>
    %11 = vector.extract_strided_slice %1 {offsets = [2, 0], sizes = [18, 80], strides = [1, 1]} : vector<20x80xf32> to vector<18x80xf32>
    %c2 = arith.constant 2 : index
    %c0_8 = arith.constant 0 : index
    %c0_9 = arith.constant 0 : index
    %12 = vector.load %arg2[%c2, %c0_8, %c0_9] : memref<3x80x144xf32, #tpu.memory_space<vmem>>, vector<1x80x144xf32>
    %13 = vector.shape_cast %12 : vector<1x80x144xf32> to vector<80x144xf32>
    %cst_10 = arith.constant dense<0.000000e+00> : vector<18x144xf32>
    %14 = tpu.matmul %11, %13, %cst_10 {dimension_numbers = #tpu.dot_dimension_numbers<[1], [0], [0], [1], [0, 0, 1, 1], [], []>} : vector<18x80xf32>, vector<80x144xf32>, vector<18x144xf32> -> vector<18x144xf32>
    %15 = arith.addf %10, %14 : vector<18x144xf32>
    %c0_11 = arith.constant 0 : index
    %c0_12 = arith.constant 0 : index
    %16 = vector.load %arg3[%c0_11, %c0_12] : memref<1x144xf32, #tpu.memory_space<vmem>>, vector<1x144xf32>
    %17 = vector.broadcast %16 : vector<1x144xf32> to vector<18x144xf32>
    %18 = arith.addf %15, %17 : vector<18x144xf32>
    %cst_13 = arith.constant 0.000000e+00 : f32
    %19 = vector.broadcast %cst_13 : f32 to vector<18x144xf32>
    %20 = arith.maximumf %18, %19 : vector<18x144xf32>
    %21 = vector.extract_strided_slice %20 {offsets = [0, 0], sizes = [16, 144], strides = [1, 1]} : vector<18x144xf32> to vector<16x144xf32>
    %c0_14 = arith.constant 0 : index
    %c0_15 = arith.constant 0 : index
    %c0_16 = arith.constant 0 : index
    %22 = vector.load %arg4[%c0_14, %c0_15, %c0_16] : memref<3x144x128xf32, #tpu.memory_space<vmem>>, vector<1x144x128xf32>
    %23 = vector.shape_cast %22 : vector<1x144x128xf32> to vector<144x128xf32>
    %cst_17 = arith.constant dense<0.000000e+00> : vector<16x128xf32>
    %24 = tpu.matmul %21, %23, %cst_17 {dimension_numbers = #tpu.dot_dimension_numbers<[1], [0], [0], [1], [0, 0, 1, 1], [], []>} : vector<16x144xf32>, vector<144x128xf32>, vector<16x128xf32> -> vector<16x128xf32>
    %25 = vector.extract_strided_slice %20 {offsets = [1, 0], sizes = [16, 144], strides = [1, 1]} : vector<18x144xf32> to vector<16x144xf32>
    %c1_18 = arith.constant 1 : index
    %c0_19 = arith.constant 0 : index
    %c0_20 = arith.constant 0 : index
    %26 = vector.load %arg4[%c1_18, %c0_19, %c0_20] : memref<3x144x128xf32, #tpu.memory_space<vmem>>, vector<1x144x128xf32>
    %27 = vector.shape_cast %26 : vector<1x144x128xf32> to vector<144x128xf32>
    %cst_21 = arith.constant dense<0.000000e+00> : vector<16x128xf32>
    %28 = tpu.matmul %25, %27, %cst_21 {dimension_numbers = #tpu.dot_dimension_numbers<[1], [0], [0], [1], [0, 0, 1, 1], [], []>} : vector<16x144xf32>, vector<144x128xf32>, vector<16x128xf32> -> vector<16x128xf32>
    %29 = arith.addf %24, %28 : vector<16x128xf32>
    %30 = vector.extract_strided_slice %20 {offsets = [2, 0], sizes = [16, 144], strides = [1, 1]} : vector<18x144xf32> to vector<16x144xf32>
    %c2_22 = arith.constant 2 : index
    %c0_23 = arith.constant 0 : index
    %c0_24 = arith.constant 0 : index
    %31 = vector.load %arg4[%c2_22, %c0_23, %c0_24] : memref<3x144x128xf32, #tpu.memory_space<vmem>>, vector<1x144x128xf32>
    %32 = vector.shape_cast %31 : vector<1x144x128xf32> to vector<144x128xf32>
    %cst_25 = arith.constant dense<0.000000e+00> : vector<16x128xf32>
    %33 = tpu.matmul %30, %32, %cst_25 {dimension_numbers = #tpu.dot_dimension_numbers<[1], [0], [0], [1], [0, 0, 1, 1], [], []>} : vector<16x144xf32>, vector<144x128xf32>, vector<16x128xf32> -> vector<16x128xf32>
    %34 = arith.addf %29, %33 : vector<16x128xf32>
    %c0_26 = arith.constant 0 : index
    %c0_27 = arith.constant 0 : index
    %35 = vector.load %arg5[%c0_26, %c0_27] : memref<1x128xf32, #tpu.memory_space<vmem>>, vector<1x128xf32>
    %36 = vector.broadcast %35 : vector<1x128xf32> to vector<16x128xf32>
    %37 = arith.addf %34, %36 : vector<16x128xf32>
    %38 = vector.extract_strided_slice %1 {offsets = [2, 0], sizes = [16, 80], strides = [1, 1]} : vector<20x80xf32> to vector<16x80xf32>
    %c0_28 = arith.constant 0 : index
    %c0_29 = arith.constant 0 : index
    %39 = vector.load %arg6[%c0_28, %c0_29] : memref<80x128xf32, #tpu.memory_space<vmem>>, vector<80x128xf32>
    %cst_30 = arith.constant dense<0.000000e+00> : vector<16x128xf32>
    %40 = tpu.matmul %38, %39, %cst_30 {dimension_numbers = #tpu.dot_dimension_numbers<[1], [0], [0], [1], [0, 0, 1, 1], [], []>} : vector<16x80xf32>, vector<80x128xf32>, vector<16x128xf32> -> vector<16x128xf32>
    %c0_31 = arith.constant 0 : index
    %c0_32 = arith.constant 0 : index
    %41 = vector.load %arg7[%c0_31, %c0_32] : memref<1x128xf32, #tpu.memory_space<vmem>>, vector<1x128xf32>
    %42 = vector.broadcast %41 : vector<1x128xf32> to vector<16x128xf32>
    %43 = arith.addf %40, %42 : vector<16x128xf32>
    %44 = arith.addf %37, %43 : vector<16x128xf32>
    %cst_33 = arith.constant 0.000000e+00 : f32
    %45 = vector.broadcast %cst_33 : f32 to vector<16x128xf32>
    %46 = arith.maximumf %44, %45 : vector<16x128xf32>
    %c0_34 = arith.constant 0 : index
    %c0_35 = arith.constant 0 : index
    %c0_36 = arith.constant 0 : index
    %47 = vector.load %arg8[%c0_34, %c0_35, %c0_36] : memref<2x8x16xf32, #tpu.memory_space<vmem>>, vector<1x8x16xf32>
    %48 = vector.shape_cast %47 : vector<1x8x16xf32> to vector<8x16xf32>
    %cst_37 = arith.constant dense<0.000000e+00> : vector<8x128xf32>
    %49 = tpu.matmul %48, %46, %cst_37 {dimension_numbers = #tpu.dot_dimension_numbers<[1], [0], [0], [1], [0, 0, 1, 1], [], []>} : vector<8x16xf32>, vector<16x128xf32>, vector<8x128xf32> -> vector<8x128xf32>
    %c1_38 = arith.constant 1 : index
    %c0_39 = arith.constant 0 : index
    %c0_40 = arith.constant 0 : index
    %50 = vector.load %arg8[%c1_38, %c0_39, %c0_40] : memref<2x8x16xf32, #tpu.memory_space<vmem>>, vector<1x8x16xf32>
    %51 = vector.shape_cast %50 : vector<1x8x16xf32> to vector<8x16xf32>
    %cst_41 = arith.constant dense<0.000000e+00> : vector<8x128xf32>
    %52 = tpu.matmul %51, %46, %cst_41 {dimension_numbers = #tpu.dot_dimension_numbers<[1], [0], [0], [1], [0, 0, 1, 1], [], []>} : vector<8x16xf32>, vector<16x128xf32>, vector<8x128xf32> -> vector<8x128xf32>
    %53 = arith.maximumf %49, %52 : vector<8x128xf32>
    %c0_42 = arith.constant 0 : index
    %c0_43 = arith.constant 0 : index
    %c0_44 = arith.constant 0 : index
    %54 = vector.load %arg9[%c0_42, %c0_43, %c0_44] : memref<2x128x64xf32, #tpu.memory_space<vmem>>, vector<1x128x64xf32>
    %55 = vector.shape_cast %54 : vector<1x128x64xf32> to vector<128x64xf32>
    %cst_45 = arith.constant dense<0.000000e+00> : vector<8x64xf32>
    %56 = tpu.matmul %53, %55, %cst_45 {dimension_numbers = #tpu.dot_dimension_numbers<[1], [0], [0], [1], [0, 0, 1, 1], [], []>} : vector<8x128xf32>, vector<128x64xf32>, vector<8x64xf32> -> vector<8x64xf32>
    %c1_46 = arith.constant 1 : index
    %c0_47 = arith.constant 0 : index
    %c0_48 = arith.constant 0 : index
    %57 = vector.load %arg9[%c1_46, %c0_47, %c0_48] : memref<2x128x64xf32, #tpu.memory_space<vmem>>, vector<1x128x64xf32>
    %58 = vector.shape_cast %57 : vector<1x128x64xf32> to vector<128x64xf32>
    %cst_49 = arith.constant dense<0.000000e+00> : vector<8x64xf32>
    %59 = tpu.matmul %53, %58, %cst_49 {dimension_numbers = #tpu.dot_dimension_numbers<[1], [0], [0], [1], [0, 0, 1, 1], [], []>} : vector<8x128xf32>, vector<128x64xf32>, vector<8x64xf32> -> vector<8x64xf32>
    %60 = arith.maximumf %56, %59 : vector<8x64xf32>
    %61 = vector.extract_strided_slice %60 {offsets = [0, 0], sizes = [6, 64], strides = [1, 1]} : vector<8x64xf32> to vector<6x64xf32>
    %c0_50 = arith.constant 0 : index
    %c0_51 = arith.constant 0 : index
    %c0_52 = arith.constant 0 : index
    %62 = vector.load %arg10[%c0_50, %c0_51, %c0_52] : memref<3x64x96xf32, #tpu.memory_space<vmem>>, vector<1x64x96xf32>
    %63 = vector.shape_cast %62 : vector<1x64x96xf32> to vector<64x96xf32>
    %cst_53 = arith.constant dense<0.000000e+00> : vector<6x96xf32>
    %64 = tpu.matmul %61, %63, %cst_53 {dimension_numbers = #tpu.dot_dimension_numbers<[1], [0], [0], [1], [0, 0, 1, 1], [], []>} : vector<6x64xf32>, vector<64x96xf32>, vector<6x96xf32> -> vector<6x96xf32>
    %65 = vector.extract_strided_slice %60 {offsets = [1, 0], sizes = [6, 64], strides = [1, 1]} : vector<8x64xf32> to vector<6x64xf32>
    %c1_54 = arith.constant 1 : index
    %c0_55 = arith.constant 0 : index
    %c0_56 = arith.constant 0 : index
    %66 = vector.load %arg10[%c1_54, %c0_55, %c0_56] : memref<3x64x96xf32, #tpu.memory_space<vmem>>, vector<1x64x96xf32>
    %67 = vector.shape_cast %66 : vector<1x64x96xf32> to vector<64x96xf32>
    %cst_57 = arith.constant dense<0.000000e+00> : vector<6x96xf32>
    %68 = tpu.matmul %65, %67, %cst_57 {dimension_numbers = #tpu.dot_dimension_numbers<[1], [0], [0], [1], [0, 0, 1, 1], [], []>} : vector<6x64xf32>, vector<64x96xf32>, vector<6x96xf32> -> vector<6x96xf32>
    %69 = arith.addf %64, %68 : vector<6x96xf32>
    %70 = vector.extract_strided_slice %60 {offsets = [2, 0], sizes = [6, 64], strides = [1, 1]} : vector<8x64xf32> to vector<6x64xf32>
    %c2_58 = arith.constant 2 : index
    %c0_59 = arith.constant 0 : index
    %c0_60 = arith.constant 0 : index
    %71 = vector.load %arg10[%c2_58, %c0_59, %c0_60] : memref<3x64x96xf32, #tpu.memory_space<vmem>>, vector<1x64x96xf32>
    %72 = vector.shape_cast %71 : vector<1x64x96xf32> to vector<64x96xf32>
    %cst_61 = arith.constant dense<0.000000e+00> : vector<6x96xf32>
    %73 = tpu.matmul %70, %72, %cst_61 {dimension_numbers = #tpu.dot_dimension_numbers<[1], [0], [0], [1], [0, 0, 1, 1], [], []>} : vector<6x64xf32>, vector<64x96xf32>, vector<6x96xf32> -> vector<6x96xf32>
    %74 = arith.addf %69, %73 : vector<6x96xf32>
    %c0_62 = arith.constant 0 : index
    %c0_63 = arith.constant 0 : index
    %75 = vector.load %arg11[%c0_62, %c0_63] : memref<1x96xf32, #tpu.memory_space<vmem>>, vector<1x96xf32>
    %76 = vector.broadcast %75 : vector<1x96xf32> to vector<6x96xf32>
    %77 = arith.addf %74, %76 : vector<6x96xf32>
    %cst_64 = arith.constant 0.000000e+00 : f32
    %78 = vector.broadcast %cst_64 : f32 to vector<6x96xf32>
    %79 = arith.maximumf %77, %78 : vector<6x96xf32>
    %80 = vector.extract_strided_slice %79 {offsets = [0, 0], sizes = [4, 96], strides = [1, 1]} : vector<6x96xf32> to vector<4x96xf32>
    %c0_65 = arith.constant 0 : index
    %c0_66 = arith.constant 0 : index
    %c0_67 = arith.constant 0 : index
    %81 = vector.load %arg12[%c0_65, %c0_66, %c0_67] : memref<3x96x64xf32, #tpu.memory_space<vmem>>, vector<1x96x64xf32>
    %82 = vector.shape_cast %81 : vector<1x96x64xf32> to vector<96x64xf32>
    %cst_68 = arith.constant dense<0.000000e+00> : vector<4x64xf32>
    %83 = tpu.matmul %80, %82, %cst_68 {dimension_numbers = #tpu.dot_dimension_numbers<[1], [0], [0], [1], [0, 0, 1, 1], [], []>} : vector<4x96xf32>, vector<96x64xf32>, vector<4x64xf32> -> vector<4x64xf32>
    %84 = vector.extract_strided_slice %79 {offsets = [1, 0], sizes = [4, 96], strides = [1, 1]} : vector<6x96xf32> to vector<4x96xf32>
    %c1_69 = arith.constant 1 : index
    %c0_70 = arith.constant 0 : index
    %c0_71 = arith.constant 0 : index
    %85 = vector.load %arg12[%c1_69, %c0_70, %c0_71] : memref<3x96x64xf32, #tpu.memory_space<vmem>>, vector<1x96x64xf32>
    %86 = vector.shape_cast %85 : vector<1x96x64xf32> to vector<96x64xf32>
    %cst_72 = arith.constant dense<0.000000e+00> : vector<4x64xf32>
    %87 = tpu.matmul %84, %86, %cst_72 {dimension_numbers = #tpu.dot_dimension_numbers<[1], [0], [0], [1], [0, 0, 1, 1], [], []>} : vector<4x96xf32>, vector<96x64xf32>, vector<4x64xf32> -> vector<4x64xf32>
    %88 = arith.addf %83, %87 : vector<4x64xf32>
    %89 = vector.extract_strided_slice %79 {offsets = [2, 0], sizes = [4, 96], strides = [1, 1]} : vector<6x96xf32> to vector<4x96xf32>
    %c2_73 = arith.constant 2 : index
    %c0_74 = arith.constant 0 : index
    %c0_75 = arith.constant 0 : index
    %90 = vector.load %arg12[%c2_73, %c0_74, %c0_75] : memref<3x96x64xf32, #tpu.memory_space<vmem>>, vector<1x96x64xf32>
    %91 = vector.shape_cast %90 : vector<1x96x64xf32> to vector<96x64xf32>
    %cst_76 = arith.constant dense<0.000000e+00> : vector<4x64xf32>
    %92 = tpu.matmul %89, %91, %cst_76 {dimension_numbers = #tpu.dot_dimension_numbers<[1], [0], [0], [1], [0, 0, 1, 1], [], []>} : vector<4x96xf32>, vector<96x64xf32>, vector<4x64xf32> -> vector<4x64xf32>
    %93 = arith.addf %88, %92 : vector<4x64xf32>
    %c0_77 = arith.constant 0 : index
    %c0_78 = arith.constant 0 : index
    %94 = vector.load %arg13[%c0_77, %c0_78] : memref<1x64xf32, #tpu.memory_space<vmem>>, vector<1x64xf32>
    %95 = vector.broadcast %94 : vector<1x64xf32> to vector<4x64xf32>
    %96 = arith.addf %93, %95 : vector<4x64xf32>
    %97 = vector.extract_strided_slice %60 {offsets = [2, 0], sizes = [4, 64], strides = [1, 1]} : vector<8x64xf32> to vector<4x64xf32>
    %c0_79 = arith.constant 0 : index
    %c0_80 = arith.constant 0 : index
    %98 = vector.load %arg14[%c0_79, %c0_80] : memref<64x64xf32, #tpu.memory_space<vmem>>, vector<64x64xf32>
    %cst_81 = arith.constant dense<0.000000e+00> : vector<4x64xf32>
    %99 = tpu.matmul %97, %98, %cst_81 {dimension_numbers = #tpu.dot_dimension_numbers<[1], [0], [0], [1], [0, 0, 1, 1], [], []>} : vector<4x64xf32>, vector<64x64xf32>, vector<4x64xf32> -> vector<4x64xf32>
    %c0_82 = arith.constant 0 : index
    %c0_83 = arith.constant 0 : index
    %100 = vector.load %arg15[%c0_82, %c0_83] : memref<1x64xf32, #tpu.memory_space<vmem>>, vector<1x64xf32>
    %101 = vector.broadcast %100 : vector<1x64xf32> to vector<4x64xf32>
    %102 = arith.addf %99, %101 : vector<4x64xf32>
    %103 = arith.addf %96, %102 : vector<4x64xf32>
    %cst_84 = arith.constant 0.000000e+00 : f32
    %104 = vector.broadcast %cst_84 : f32 to vector<4x64xf32>
    %105 = arith.maximumf %103, %104 : vector<4x64xf32>
    %c0_85 = arith.constant 0 : index
    %c0_86 = arith.constant 0 : index
    %c0_87 = arith.constant 0 : index
    %106 = vector.load %arg16[%c0_85, %c0_86, %c0_87] : memref<2x64x128xf32, #tpu.memory_space<vmem>>, vector<1x64x128xf32>
    %107 = vector.shape_cast %106 : vector<1x64x128xf32> to vector<64x128xf32>
    %cst_88 = arith.constant dense<0.000000e+00> : vector<4x128xf32>
    %108 = tpu.matmul %105, %107, %cst_88 {dimension_numbers = #tpu.dot_dimension_numbers<[1], [0], [0], [1], [0, 0, 1, 1], [], []>} : vector<4x64xf32>, vector<64x128xf32>, vector<4x128xf32> -> vector<4x128xf32>
    %c1_89 = arith.constant 1 : index
    %c0_90 = arith.constant 0 : index
    %c0_91 = arith.constant 0 : index
    %109 = vector.load %arg16[%c1_89, %c0_90, %c0_91] : memref<2x64x128xf32, #tpu.memory_space<vmem>>, vector<1x64x128xf32>
    %110 = vector.shape_cast %109 : vector<1x64x128xf32> to vector<64x128xf32>
    %cst_92 = arith.constant dense<0.000000e+00> : vector<4x128xf32>
    %111 = tpu.matmul %105, %110, %cst_92 {dimension_numbers = #tpu.dot_dimension_numbers<[1], [0], [0], [1], [0, 0, 1, 1], [], []>} : vector<4x64xf32>, vector<64x128xf32>, vector<4x128xf32> -> vector<4x128xf32>
    %c0_93 = arith.constant 0 : index
    %c0_94 = arith.constant 0 : index
    %c0_95 = arith.constant 0 : index
    %112 = vector.load %arg17[%c0_93, %c0_94, %c0_95] : memref<2x8x4xf32, #tpu.memory_space<vmem>>, vector<1x8x4xf32>
    %113 = vector.shape_cast %112 : vector<1x8x4xf32> to vector<8x4xf32>
    %cst_96 = arith.constant dense<0.000000e+00> : vector<8x128xf32>
    %114 = tpu.matmul %113, %108, %cst_96 {dimension_numbers = #tpu.dot_dimension_numbers<[1], [0], [0], [1], [0, 0, 1, 1], [], []>} : vector<8x4xf32>, vector<4x128xf32>, vector<8x128xf32> -> vector<8x128xf32>
    %c1_97 = arith.constant 1 : index
    %c0_98 = arith.constant 0 : index
    %c0_99 = arith.constant 0 : index
    %115 = vector.load %arg17[%c1_97, %c0_98, %c0_99] : memref<2x8x4xf32, #tpu.memory_space<vmem>>, vector<1x8x4xf32>
    %116 = vector.shape_cast %115 : vector<1x8x4xf32> to vector<8x4xf32>
    %cst_100 = arith.constant dense<0.000000e+00> : vector<8x128xf32>
    %117 = tpu.matmul %116, %111, %cst_100 {dimension_numbers = #tpu.dot_dimension_numbers<[1], [0], [0], [1], [0, 0, 1, 1], [], []>} : vector<8x4xf32>, vector<4x128xf32>, vector<8x128xf32> -> vector<8x128xf32>
    %118 = arith.addf %114, %117 : vector<8x128xf32>
    %c0_101 = arith.constant 0 : index
    %c0_102 = arith.constant 0 : index
    %119 = vector.load %arg18[%c0_101, %c0_102] : memref<1x128xf32, #tpu.memory_space<vmem>>, vector<1x128xf32>
    %120 = vector.broadcast %119 : vector<1x128xf32> to vector<8x128xf32>
    %121 = arith.addf %118, %120 : vector<8x128xf32>
    %122 = vector.extract_strided_slice %46 {offsets = [4, 32], sizes = [8, 64], strides = [1, 1]} : vector<16x128xf32> to vector<8x64xf32>
    %123 = vector.extract_strided_slice %122 {offsets = [0, 0], sizes = [6, 64], strides = [1, 1]} : vector<8x64xf32> to vector<6x64xf32>
    %c0_103 = arith.constant 0 : index
    %c0_104 = arith.constant 0 : index
    %c0_105 = arith.constant 0 : index
    %124 = vector.load %arg19[%c0_103, %c0_104, %c0_105] : memref<3x64x48xf32, #tpu.memory_space<vmem>>, vector<1x64x48xf32>
    %125 = vector.shape_cast %124 : vector<1x64x48xf32> to vector<64x48xf32>
    %cst_106 = arith.constant dense<0.000000e+00> : vector<6x48xf32>
    %126 = tpu.matmul %123, %125, %cst_106 {dimension_numbers = #tpu.dot_dimension_numbers<[1], [0], [0], [1], [0, 0, 1, 1], [], []>} : vector<6x64xf32>, vector<64x48xf32>, vector<6x48xf32> -> vector<6x48xf32>
    %127 = vector.extract_strided_slice %121 {offsets = [0, 0], sizes = [6, 128], strides = [1, 1]} : vector<8x128xf32> to vector<6x128xf32>
    %c0_107 = arith.constant 0 : index
    %c0_108 = arith.constant 0 : index
    %c0_109 = arith.constant 0 : index
    %128 = vector.load %arg20[%c0_107, %c0_108, %c0_109] : memref<3x128x48xf32, #tpu.memory_space<vmem>>, vector<1x128x48xf32>
    %129 = vector.shape_cast %128 : vector<1x128x48xf32> to vector<128x48xf32>
    %cst_110 = arith.constant dense<0.000000e+00> : vector<6x48xf32>
    %130 = tpu.matmul %127, %129, %cst_110 {dimension_numbers = #tpu.dot_dimension_numbers<[1], [0], [0], [1], [0, 0, 1, 1], [], []>} : vector<6x128xf32>, vector<128x48xf32>, vector<6x48xf32> -> vector<6x48xf32>
    %131 = arith.addf %126, %130 : vector<6x48xf32>
    %132 = vector.extract_strided_slice %122 {offsets = [1, 0], sizes = [6, 64], strides = [1, 1]} : vector<8x64xf32> to vector<6x64xf32>
    %c1_111 = arith.constant 1 : index
    %c0_112 = arith.constant 0 : index
    %c0_113 = arith.constant 0 : index
    %133 = vector.load %arg19[%c1_111, %c0_112, %c0_113] : memref<3x64x48xf32, #tpu.memory_space<vmem>>, vector<1x64x48xf32>
    %134 = vector.shape_cast %133 : vector<1x64x48xf32> to vector<64x48xf32>
    %cst_114 = arith.constant dense<0.000000e+00> : vector<6x48xf32>
    %135 = tpu.matmul %132, %134, %cst_114 {dimension_numbers = #tpu.dot_dimension_numbers<[1], [0], [0], [1], [0, 0, 1, 1], [], []>} : vector<6x64xf32>, vector<64x48xf32>, vector<6x48xf32> -> vector<6x48xf32>
    %136 = arith.addf %131, %135 : vector<6x48xf32>
    %137 = vector.extract_strided_slice %121 {offsets = [1, 0], sizes = [6, 128], strides = [1, 1]} : vector<8x128xf32> to vector<6x128xf32>
    %c1_115 = arith.constant 1 : index
    %c0_116 = arith.constant 0 : index
    %c0_117 = arith.constant 0 : index
    %138 = vector.load %arg20[%c1_115, %c0_116, %c0_117] : memref<3x128x48xf32, #tpu.memory_space<vmem>>, vector<1x128x48xf32>
    %139 = vector.shape_cast %138 : vector<1x128x48xf32> to vector<128x48xf32>
    %cst_118 = arith.constant dense<0.000000e+00> : vector<6x48xf32>
    %140 = tpu.matmul %137, %139, %cst_118 {dimension_numbers = #tpu.dot_dimension_numbers<[1], [0], [0], [1], [0, 0, 1, 1], [], []>} : vector<6x128xf32>, vector<128x48xf32>, vector<6x48xf32> -> vector<6x48xf32>
    %141 = arith.addf %136, %140 : vector<6x48xf32>
    %142 = vector.extract_strided_slice %122 {offsets = [2, 0], sizes = [6, 64], strides = [1, 1]} : vector<8x64xf32> to vector<6x64xf32>
    %c2_119 = arith.constant 2 : index
    %c0_120 = arith.constant 0 : index
    %c0_121 = arith.constant 0 : index
    %143 = vector.load %arg19[%c2_119, %c0_120, %c0_121] : memref<3x64x48xf32, #tpu.memory_space<vmem>>, vector<1x64x48xf32>
    %144 = vector.shape_cast %143 : vector<1x64x48xf32> to vector<64x48xf32>
    %cst_122 = arith.constant dense<0.000000e+00> : vector<6x48xf32>
    %145 = tpu.matmul %142, %144, %cst_122 {dimension_numbers = #tpu.dot_dimension_numbers<[1], [0], [0], [1], [0, 0, 1, 1], [], []>} : vector<6x64xf32>, vector<64x48xf32>, vector<6x48xf32> -> vector<6x48xf32>
    %146 = arith.addf %141, %145 : vector<6x48xf32>
    %147 = vector.extract_strided_slice %121 {offsets = [2, 0], sizes = [6, 128], strides = [1, 1]} : vector<8x128xf32> to vector<6x128xf32>
    %c2_123 = arith.constant 2 : index
    %c0_124 = arith.constant 0 : index
    %c0_125 = arith.constant 0 : index
    %148 = vector.load %arg20[%c2_123, %c0_124, %c0_125] : memref<3x128x48xf32, #tpu.memory_space<vmem>>, vector<1x128x48xf32>
    %149 = vector.shape_cast %148 : vector<1x128x48xf32> to vector<128x48xf32>
    %cst_126 = arith.constant dense<0.000000e+00> : vector<6x48xf32>
    %150 = tpu.matmul %147, %149, %cst_126 {dimension_numbers = #tpu.dot_dimension_numbers<[1], [0], [0], [1], [0, 0, 1, 1], [], []>} : vector<6x128xf32>, vector<128x48xf32>, vector<6x48xf32> -> vector<6x48xf32>
    %151 = arith.addf %146, %150 : vector<6x48xf32>
    %c0_127 = arith.constant 0 : index
    %c0_128 = arith.constant 0 : index
    %152 = vector.load %arg21[%c0_127, %c0_128] : memref<1x48xf32, #tpu.memory_space<vmem>>, vector<1x48xf32>
    %153 = vector.broadcast %152 : vector<1x48xf32> to vector<6x48xf32>
    %154 = arith.addf %151, %153 : vector<6x48xf32>
    %cst_129 = arith.constant 0.000000e+00 : f32
    %155 = vector.broadcast %cst_129 : f32 to vector<6x48xf32>
    %156 = arith.maximumf %154, %155 : vector<6x48xf32>
    %157 = vector.extract_strided_slice %156 {offsets = [0, 0], sizes = [4, 48], strides = [1, 1]} : vector<6x48xf32> to vector<4x48xf32>
    %c0_130 = arith.constant 0 : index
    %c0_131 = arith.constant 0 : index
    %c0_132 = arith.constant 0 : index
    %158 = vector.load %arg22[%c0_130, %c0_131, %c0_132] : memref<3x48x32xf32, #tpu.memory_space<vmem>>, vector<1x48x32xf32>
    %159 = vector.shape_cast %158 : vector<1x48x32xf32> to vector<48x32xf32>
    %cst_133 = arith.constant dense<0.000000e+00> : vector<4x32xf32>
    %160 = tpu.matmul %157, %159, %cst_133 {dimension_numbers = #tpu.dot_dimension_numbers<[1], [0], [0], [1], [0, 0, 1, 1], [], []>} : vector<4x48xf32>, vector<48x32xf32>, vector<4x32xf32> -> vector<4x32xf32>
    %161 = vector.extract_strided_slice %156 {offsets = [1, 0], sizes = [4, 48], strides = [1, 1]} : vector<6x48xf32> to vector<4x48xf32>
    %c1_134 = arith.constant 1 : index
    %c0_135 = arith.constant 0 : index
    %c0_136 = arith.constant 0 : index
    %162 = vector.load %arg22[%c1_134, %c0_135, %c0_136] : memref<3x48x32xf32, #tpu.memory_space<vmem>>, vector<1x48x32xf32>
    %163 = vector.shape_cast %162 : vector<1x48x32xf32> to vector<48x32xf32>
    %cst_137 = arith.constant dense<0.000000e+00> : vector<4x32xf32>
    %164 = tpu.matmul %161, %163, %cst_137 {dimension_numbers = #tpu.dot_dimension_numbers<[1], [0], [0], [1], [0, 0, 1, 1], [], []>} : vector<4x48xf32>, vector<48x32xf32>, vector<4x32xf32> -> vector<4x32xf32>
    %165 = arith.addf %160, %164 : vector<4x32xf32>
    %166 = vector.extract_strided_slice %156 {offsets = [2, 0], sizes = [4, 48], strides = [1, 1]} : vector<6x48xf32> to vector<4x48xf32>
    %c2_138 = arith.constant 2 : index
    %c0_139 = arith.constant 0 : index
    %c0_140 = arith.constant 0 : index
    %167 = vector.load %arg22[%c2_138, %c0_139, %c0_140] : memref<3x48x32xf32, #tpu.memory_space<vmem>>, vector<1x48x32xf32>
    %168 = vector.shape_cast %167 : vector<1x48x32xf32> to vector<48x32xf32>
    %cst_141 = arith.constant dense<0.000000e+00> : vector<4x32xf32>
    %169 = tpu.matmul %166, %168, %cst_141 {dimension_numbers = #tpu.dot_dimension_numbers<[1], [0], [0], [1], [0, 0, 1, 1], [], []>} : vector<4x48xf32>, vector<48x32xf32>, vector<4x32xf32> -> vector<4x32xf32>
    %170 = arith.addf %165, %169 : vector<4x32xf32>
    %c0_142 = arith.constant 0 : index
    %c0_143 = arith.constant 0 : index
    %171 = vector.load %arg23[%c0_142, %c0_143] : memref<1x32xf32, #tpu.memory_space<vmem>>, vector<1x32xf32>
    %172 = vector.broadcast %171 : vector<1x32xf32> to vector<4x32xf32>
    %173 = arith.addf %170, %172 : vector<4x32xf32>
    %174 = vector.extract_strided_slice %122 {offsets = [2, 0], sizes = [4, 64], strides = [1, 1]} : vector<8x64xf32> to vector<4x64xf32>
    %c0_144 = arith.constant 0 : index
    %c0_145 = arith.constant 0 : index
    %175 = vector.load %arg24[%c0_144, %c0_145] : memref<64x32xf32, #tpu.memory_space<vmem>>, vector<64x32xf32>
    %cst_146 = arith.constant dense<0.000000e+00> : vector<4x32xf32>
    %176 = tpu.matmul %174, %175, %cst_146 {dimension_numbers = #tpu.dot_dimension_numbers<[1], [0], [0], [1], [0, 0, 1, 1], [], []>} : vector<4x64xf32>, vector<64x32xf32>, vector<4x32xf32> -> vector<4x32xf32>
    %177 = vector.extract_strided_slice %121 {offsets = [2, 0], sizes = [4, 128], strides = [1, 1]} : vector<8x128xf32> to vector<4x128xf32>
    %c0_147 = arith.constant 0 : index
    %c0_148 = arith.constant 0 : index
    %178 = vector.load %arg25[%c0_147, %c0_148] : memref<128x32xf32, #tpu.memory_space<vmem>>, vector<128x32xf32>
    %cst_149 = arith.constant dense<0.000000e+00> : vector<4x32xf32>
    %179 = tpu.matmul %177, %178, %cst_149 {dimension_numbers = #tpu.dot_dimension_numbers<[1], [0], [0], [1], [0, 0, 1, 1], [], []>} : vector<4x128xf32>, vector<128x32xf32>, vector<4x32xf32> -> vector<4x32xf32>
    %180 = arith.addf %176, %179 : vector<4x32xf32>
    %c0_150 = arith.constant 0 : index
    %c0_151 = arith.constant 0 : index
    %181 = vector.load %arg26[%c0_150, %c0_151] : memref<1x32xf32, #tpu.memory_space<vmem>>, vector<1x32xf32>
    %182 = vector.broadcast %181 : vector<1x32xf32> to vector<4x32xf32>
    %183 = arith.addf %180, %182 : vector<4x32xf32>
    %184 = arith.addf %173, %183 : vector<4x32xf32>
    %cst_152 = arith.constant 0.000000e+00 : f32
    %185 = vector.broadcast %cst_152 : f32 to vector<4x32xf32>
    %186 = arith.maximumf %184, %185 : vector<4x32xf32>
    %c0_153 = arith.constant 0 : index
    %c0_154 = arith.constant 0 : index
    %c0_155 = arith.constant 0 : index
    %187 = vector.load %arg27[%c0_153, %c0_154, %c0_155] : memref<1x4x32xf32, #tpu.memory_space<vmem>>, vector<1x4x32xf32>
    %188 = vector.shape_cast %187 : vector<1x4x32xf32> to vector<4x32xf32>
    %189 = vector.shape_cast %186 : vector<4x32xf32> to vector<1x4x32xf32>
    tpu.vector_store %arg27[%c0_153, %c0_154, %c0_155], %189 {strides = array<i32>} : memref<1x4x32xf32, #tpu.memory_space<vmem>>, vector<1x4x32xf32>,
    return
  }
  func.func @transform_0(%arg0: i32) -> (i32, i32, i32) {
    %c0_i32 = arith.constant 0 : i32
    %c0_i32_0 = arith.constant 0 : i32
    %c0_i32_1 = arith.constant 0 : i32
    return %arg0, %c0_i32, %c0_i32_0 : i32, i32, i32
  }
  func.func @transform_1(%arg0: i32) -> (i32, i32, i32) {
    %c0_i32 = arith.constant 0 : i32
    %c0_i32_0 = arith.constant 0 : i32
    %c0_i32_1 = arith.constant 0 : i32
    %c0_i32_2 = arith.constant 0 : i32
    return %c0_i32, %c0_i32_0, %c0_i32_1 : i32, i32, i32
  }
  func.func @transform_2(%arg0: i32) -> (i32, i32) {
    %c0_i32 = arith.constant 0 : i32
    %c0_i32_0 = arith.constant 0 : i32
    %c0_i32_1 = arith.constant 0 : i32
    return %c0_i32, %c0_i32_0 : i32, i32
  }
  func.func @transform_3(%arg0: i32) -> (i32, i32, i32) {
    %c0_i32 = arith.constant 0 : i32
    %c0_i32_0 = arith.constant 0 : i32
    %c0_i32_1 = arith.constant 0 : i32
    %c0_i32_2 = arith.constant 0 : i32
    return %c0_i32, %c0_i32_0, %c0_i32_1 : i32, i32, i32
  }
  func.func @transform_4(%arg0: i32) -> (i32, i32) {
    %c0_i32 = arith.constant 0 : i32
    %c0_i32_0 = arith.constant 0 : i32
    %c0_i32_1 = arith.constant 0 : i32
    return %c0_i32, %c0_i32_0 : i32, i32
  }
  func.func @transform_5(%arg0: i32) -> (i32, i32) {
    %c0_i32 = arith.constant 0 : i32
    %c0_i32_0 = arith.constant 0 : i32
    %c0_i32_1 = arith.constant 0 : i32
    return %c0_i32, %c0_i32_0 : i32, i32
  }
  func.func @transform_6(%arg0: i32) -> (i32, i32) {
    %c0_i32 = arith.constant 0 : i32
    %c0_i32_0 = arith.constant 0 : i32
    %c0_i32_1 = arith.constant 0 : i32
    return %c0_i32, %c0_i32_0 : i32, i32
  }
  func.func @transform_7(%arg0: i32) -> (i32, i32, i32) {
    %c0_i32 = arith.constant 0 : i32
    %c0_i32_0 = arith.constant 0 : i32
    %c0_i32_1 = arith.constant 0 : i32
    %c0_i32_2 = arith.constant 0 : i32
    return %c0_i32, %c0_i32_0, %c0_i32_1 : i32, i32, i32
  }
  func.func @transform_8(%arg0: i32) -> (i32, i32, i32) {
    %c0_i32 = arith.constant 0 : i32
    %c0_i32_0 = arith.constant 0 : i32
    %c0_i32_1 = arith.constant 0 : i32
    %c0_i32_2 = arith.constant 0 : i32
    return %c0_i32, %c0_i32_0, %c0_i32_1 : i32, i32, i32
  }
  func.func @transform_9(%arg0: i32) -> (i32, i32, i32) {
    %c0_i32 = arith.constant 0 : i32
    %c0_i32_0 = arith.constant 0 : i32
    %c0_i32_1 = arith.constant 0 : i32
    %c0_i32_2 = arith.constant 0 : i32
    return %c0_i32, %c0_i32_0, %c0_i32_1 : i32, i32, i32
  }
  func.func @transform_10(%arg0: i32) -> (i32, i32) {
    %c0_i32 = arith.constant 0 : i32
    %c0_i32_0 = arith.constant 0 : i32
    %c0_i32_1 = arith.constant 0 : i32
    return %c0_i32, %c0_i32_0 : i32, i32
  }
  func.func @transform_11(%arg0: i32) -> (i32, i32, i32) {
    %c0_i32 = arith.constant 0 : i32
    %c0_i32_0 = arith.constant 0 : i32
    %c0_i32_1 = arith.constant 0 : i32
    %c0_i32_2 = arith.constant 0 : i32
    return %c0_i32, %c0_i32_0, %c0_i32_1 : i32, i32, i32
  }
  func.func @transform_12(%arg0: i32) -> (i32, i32) {
    %c0_i32 = arith.constant 0 : i32
    %c0_i32_0 = arith.constant 0 : i32
    %c0_i32_1 = arith.constant 0 : i32
    return %c0_i32, %c0_i32_0 : i32, i32
  }
  func.func @transform_13(%arg0: i32) -> (i32, i32) {
    %c0_i32 = arith.constant 0 : i32
    %c0_i32_0 = arith.constant 0 : i32
    %c0_i32_1 = arith.constant 0 : i32
    return %c0_i32, %c0_i32_0 : i32, i32
  }
  func.func @transform_14(%arg0: i32) -> (i32, i32) {
    %c0_i32 = arith.constant 0 : i32
    %c0_i32_0 = arith.constant 0 : i32
    %c0_i32_1 = arith.constant 0 : i32
    return %c0_i32, %c0_i32_0 : i32, i32
  }
  func.func @transform_15(%arg0: i32) -> (i32, i32, i32) {
    %c0_i32 = arith.constant 0 : i32
    %c0_i32_0 = arith.constant 0 : i32
    %c0_i32_1 = arith.constant 0 : i32
    %c0_i32_2 = arith.constant 0 : i32
    return %c0_i32, %c0_i32_0, %c0_i32_1 : i32, i32, i32
  }
  func.func @transform_16(%arg0: i32) -> (i32, i32, i32) {
    %c0_i32 = arith.constant 0 : i32
    %c0_i32_0 = arith.constant 0 : i32
    %c0_i32_1 = arith.constant 0 : i32
    %c0_i32_2 = arith.constant 0 : i32
    return %c0_i32, %c0_i32_0, %c0_i32_1 : i32, i32, i32
  }
  func.func @transform_17(%arg0: i32) -> (i32, i32) {
    %c0_i32 = arith.constant 0 : i32
    %c0_i32_0 = arith.constant 0 : i32
    %c0_i32_1 = arith.constant 0 : i32
    return %c0_i32, %c0_i32_0 : i32, i32
  }
  func.func @transform_18(%arg0: i32) -> (i32, i32, i32) {
    %c0_i32 = arith.constant 0 : i32
    %c0_i32_0 = arith.constant 0 : i32
    %c0_i32_1 = arith.constant 0 : i32
    %c0_i32_2 = arith.constant 0 : i32
    return %c0_i32, %c0_i32_0, %c0_i32_1 : i32, i32, i32
  }
  func.func @transform_19(%arg0: i32) -> (i32, i32, i32) {
    %c0_i32 = arith.constant 0 : i32
    %c0_i32_0 = arith.constant 0 : i32
    %c0_i32_1 = arith.constant 0 : i32
    %c0_i32_2 = arith.constant 0 : i32
    return %c0_i32, %c0_i32_0, %c0_i32_1 : i32, i32, i32
  }
  func.func @transform_20(%arg0: i32) -> (i32, i32) {
    %c0_i32 = arith.constant 0 : i32
    %c0_i32_0 = arith.constant 0 : i32
    %c0_i32_1 = arith.constant 0 : i32
    return %c0_i32, %c0_i32_0 : i32, i32
  }
  func.func @transform_21(%arg0: i32) -> (i32, i32, i32) {
    %c0_i32 = arith.constant 0 : i32
    %c0_i32_0 = arith.constant 0 : i32
    %c0_i32_1 = arith.constant 0 : i32
    %c0_i32_2 = arith.constant 0 : i32
    return %c0_i32, %c0_i32_0, %c0_i32_1 : i32, i32, i32
  }
  func.func @transform_22(%arg0: i32) -> (i32, i32) {
    %c0_i32 = arith.constant 0 : i32
    %c0_i32_0 = arith.constant 0 : i32
    %c0_i32_1 = arith.constant 0 : i32
    return %c0_i32, %c0_i32_0 : i32, i32
  }
  func.func @transform_23(%arg0: i32) -> (i32, i32) {
    %c0_i32 = arith.constant 0 : i32
    %c0_i32_0 = arith.constant 0 : i32
    %c0_i32_1 = arith.constant 0 : i32
    return %c0_i32, %c0_i32_0 : i32, i32
  }
  func.func @transform_24(%arg0: i32) -> (i32, i32) {
    %c0_i32 = arith.constant 0 : i32
    %c0_i32_0 = arith.constant 0 : i32
    %c0_i32_1 = arith.constant 0 : i32
    return %c0_i32, %c0_i32_0 : i32, i32
  }
  func.func @transform_25(%arg0: i32) -> (i32, i32) {
    %c0_i32 = arith.constant 0 : i32
    %c0_i32_0 = arith.constant 0 : i32
    %c0_i32_1 = arith.constant 0 : i32
    return %c0_i32, %c0_i32_0 : i32, i32
  }
  func.func @transform_26(%arg0: i32) -> (i32, i32, i32) {
    %c0_i32 = arith.constant 0 : i32
    %c0_i32_0 = arith.constant 0 : i32
    %c0_i32_1 = arith.constant 0 : i32
    return %arg0, %c0_i32, %c0_i32_0 : i32, i32, i32
  }
}

</mosaic_0001>

<llo_original>
// kernel: _lambda_.1
$region0: #{_lambda_.1}
  #allocation0 [shape = 'u32[]', space=smem, size = 0x4, offset = 0x4, fixed_abs, tag = 'smem constant byte address 0x4 - core index']
  #allocation1 [shape = 'u32[144,128]{1,0:T(1,128)}', space=vmem, size = 0x12000, scoped, tag = 'internal scratch']
  %s0 = inlined_call_operand.vmem [shape: f32[2,20,80], index: 0, kind: input, shape index: {}]
  %s1 = inlined_call_operand.vmem [shape: f32[3,80,144], index: 1, kind: input, shape index: {}]
  %s2 = inlined_call_operand.vmem [shape: f32[1,144], index: 2, kind: input, shape index: {}]
  %s3 = inlined_call_operand.vmem [shape: f32[3,144,128], index: 3, kind: input, shape index: {}]
  %s4 = inlined_call_operand.vmem [shape: f32[1,128], index: 4, kind: input, shape index: {}]
  %s5 = inlined_call_operand.vmem [shape: f32[80,128], index: 5, kind: input, shape index: {}]
  %s6 = inlined_call_operand.vmem [shape: f32[1,128], index: 6, kind: input, shape index: {}]
  %s7 = inlined_call_operand.vmem [shape: f32[2,8,16], index: 7, kind: input, shape index: {}]
  %s8 = inlined_call_operand.vmem [shape: f32[2,128,64], index: 8, kind: input, shape index: {}]
  %s9 = inlined_call_operand.vmem [shape: f32[3,64,96], index: 9, kind: input, shape index: {}]
  %s10 = inlined_call_operand.vmem [shape: f32[1,96], index: 10, kind: input, shape index: {}]
  %s11 = inlined_call_operand.vmem [shape: f32[3,96,64], index: 11, kind: input, shape index: {}]
  %s12 = inlined_call_operand.vmem [shape: f32[1,64], index: 12, kind: input, shape index: {}]
  %s13 = inlined_call_operand.vmem [shape: f32[64,64], index: 13, kind: input, shape index: {}]
  %s14 = inlined_call_operand.vmem [shape: f32[1,64], index: 14, kind: input, shape index: {}]
  %s15 = inlined_call_operand.vmem [shape: f32[2,64,128], index: 15, kind: input, shape index: {}]
  %s16 = inlined_call_operand.vmem [shape: f32[2,8,4], index: 16, kind: input, shape index: {}]
  %s17 = inlined_call_operand.vmem [shape: f32[1,128], index: 17, kind: input, shape index: {}]
  %s18 = inlined_call_operand.vmem [shape: f32[3,64,48], index: 18, kind: input, shape index: {}]
  %s19 = inlined_call_operand.vmem [shape: f32[3,128,48], index: 19, kind: input, shape index: {}]
  %s20 = inlined_call_operand.vmem [shape: f32[1,48], index: 20, kind: input, shape index: {}]
  %s21 = inlined_call_operand.vmem [shape: f32[3,48,32], index: 21, kind: input, shape index: {}]
  %s22 = inlined_call_operand.vmem [shape: f32[1,32], index: 22, kind: input, shape index: {}]
  %s23 = inlined_call_operand.vmem [shape: f32[64,32], index: 23, kind: input, shape index: {}]
  %s24 = inlined_call_operand.vmem [shape: f32[128,32], index: 24, kind: input, shape index: {}]
  %s25 = inlined_call_operand.vmem [shape: f32[1,32], index: 25, kind: input, shape index: {}]
  %s26 = inlined_call_operand.vmem [shape: f32[2,4,32], index: 26, kind: output, shape index: {}]
  %s27 = sld [smem:[#allocation0]]
  $region137: #{_lambda_.1} parent=0
    _
  %s29 = ssub.s32 1, %s27
  %s30 = scalar_select 0, %s29, %s27
  loop: start=0, step=1, limit=4
  $region2: #{_lambda_.1} parent=0 // loop_pre_header
    _
  $region3: #{_lambda_.1} parent=0 // loop_header
    %s32 = sphi 0, %s36
    %p33 = scmp.ge.s32.totalorder %s32, 4
    %s42 = sphi 0, %s44
    %s45 = sphi 0, %s42
    %s46 = sphi 0, %s45
    %s62 = sphi 0, %s46
    %s66 = sphi 0, %s66
    %s68 = sphi 0, %s66
    %s69 = sphi 0, %s68
    %s83 = sphi 0, %s69
    %s87 = sphi 0, %s87
    %s89 = sphi 0, %s87
    %s90 = sphi 0, %s89
    %s104 = sphi 0, %s90
    %s108 = sphi 0, %s108
    %s110 = sphi 0, %s108
    %s111 = sphi 0, %s110
    %s125 = sphi 0, %s111
    %s129 = sphi 0, %s129
    %s131 = sphi 0, %s129
    %s132 = sphi 0, %s131
    %s146 = sphi 0, %s132
    %s150 = sphi 0, %s150
    %s152 = sphi 0, %s150
    %s153 = sphi 0, %s152
    %s167 = sphi 0, %s153
    %s171 = sphi 0, %s171
    %s173 = sphi 0, %s171
    %s174 = sphi 0, %s173
    %s188 = sphi 0, %s174
    %s192 = sphi 0, %s192
    %s194 = sphi 0, %s192
    %s195 = sphi 0, %s194
    %s209 = sphi 0, %s195
    %s213 = sphi 0, %s213
    %s215 = sphi 0, %s213
    %s216 = sphi 0, %s215
    %s230 = sphi 0, %s216
    %s234 = sphi 0, %s234
    %s236 = sphi 0, %s234
    %s237 = sphi 0, %s236
    %s251 = sphi 0, %s237
    %s255 = sphi 0, %s255
    %s257 = sphi 0, %s255
    %s258 = sphi 0, %s257
    %s272 = sphi 0, %s258
    %s276 = sphi 0, %s276
    %s278 = sphi 0, %s276
    %s279 = sphi 0, %s278
    %s293 = sphi 0, %s279
    %s297 = sphi 0, %s297
    %s299 = sphi 0, %s297
    %s300 = sphi 0, %s299
    %s314 = sphi 0, %s300
    %s318 = sphi 0, %s318
    %s320 = sphi 0, %s318
    %s321 = sphi 0, %s320
    %s335 = sphi 0, %s321
    %s339 = sphi 0, %s339
    %s341 = sphi 0, %s339
    %s342 = sphi 0, %s341
    %s356 = sphi 0, %s342
    %s360 = sphi 0, %s360
    %s362 = sphi 0, %s360
    %s363 = sphi 0, %s362
    %s377 = sphi 0, %s363
    %s381 = sphi 0, %s381
    %s383 = sphi 0, %s381
    %s384 = sphi 0, %s383
    %s398 = sphi 0, %s384
    %s402 = sphi 0, %s402
    %s404 = sphi 0, %s402
    %s405 = sphi 0, %s404
    %s419 = sphi 0, %s405
    %s423 = sphi 0, %s423
    %s425 = sphi 0, %s423
    %s426 = sphi 0, %s425
    %s440 = sphi 0, %s426
    %s444 = sphi 0, %s444
    %s446 = sphi 0, %s444
    %s447 = sphi 0, %s446
    %s461 = sphi 0, %s447
    %s465 = sphi 0, %s465
    %s467 = sphi 0, %s465
    %s468 = sphi 0, %s467
    %s482 = sphi 0, %s468
    %s486 = sphi 0, %s486
    %s488 = sphi 0, %s486
    %s489 = sphi 0, %s488
    %s503 = sphi 0, %s489
    %s507 = sphi 0, %s507
    %s509 = sphi 0, %s507
    %s510 = sphi 0, %s509
    %s524 = sphi 0, %s510
    %s528 = sphi 0, %s528
    %s530 = sphi 0, %s528
    %s531 = sphi 0, %s530
    %s545 = sphi 0, %s531
    %s549 = sphi 0, %s549
    %s551 = sphi 0, %s549
    %s552 = sphi 0, %s551
    %s566 = sphi 0, %s552
    %s570 = sphi 0, %s570
    %s572 = sphi 0, %s570
    %s573 = sphi 0, %s572
    %s587 = sphi 0, %s573
    %s593 = sphi 0, %s595
    %s596 = sphi 0, %s593
    %s597 = sphi 0, %s596
    %s613 = sphi 0, %s597
  $region4: #{_lambda_.1} parent=0 // loop_header_branch
    %35 = sbr.rel (%p33) target = $region8
  $region5: #{_lambda_.1} parent=0 // loop_body
    %s37 = ssub.s32 %s32, 1
    %s38 = ssub.s32 %s32, 2
    %s39 = sadd.s32 %s32, 1
    %s40 = ssub.s32 %s32, %s39
    %p41 = scmp.eq.s32.totalorder %s40, 0
    %s43 = sadd.s32 %s42, 1
    %s44 = scalar_select %p41, %s42, %s43
    %p47 = pneg %p41
    %p48 = scmp.eq.s32.totalorder %s32, 1
    %p49 = por %p47, %p48
    %p50 = scmp.ne.s32.totalorder %s42, %s45
    %p51 = scmp.eq.s32.totalorder %s32, 0
    %p52 = por %p50, %p51
    %p53 = scmp.ne.s32.totalorder %s42, %s45
    %p54 = scmp.eq.s32.totalorder %s37, 1
    %p55 = por %p53, %p54
    %p56 = scmp.ne.s32.totalorder %s45, %s46
    %p57 = scmp.eq.s32.totalorder %s37, 0
    %p58 = por %p56, %p57
    %p59 = scmp.ne.s32.totalorder %s45, %s46
    %p60 = scmp.eq.s32.totalorder %s38, 1
    %p61 = por %p59, %p60
    %p63 = scmp.ne.s32.totalorder %s46, %s62
    %p64 = scmp.eq.s32.totalorder %s38, 0
    %p65 = por %p63, %p64
    %s67 = sadd.s32 %s66, 1
    %p70 = scmp.eq.s32.totalorder %s32, 1
    %p71 = scmp.ne.s32.totalorder %s66, %s68
    %p72 = scmp.eq.s32.totalorder %s32, 0
    %p73 = por %p71, %p72
    %p74 = scmp.ne.s32.totalorder %s66, %s68
    %p75 = scmp.eq.s32.totalorder %s37, 1
    %p76 = por %p74, %p75
    %p77 = scmp.ne.s32.totalorder %s68, %s69
    %p78 = scmp.eq.s32.totalorder %s37, 0
    %p79 = por %p77, %p78
    %p80 = scmp.ne.s32.totalorder %s68, %s69
    %p81 = scmp.eq.s32.totalorder %s38, 1
    %p82 = por %p80, %p81
    %p84 = scmp.ne.s32.totalorder %s69, %s83
    %p85 = scmp.eq.s32.totalorder %s38, 0
    %p86 = por %p84, %p85
    %s88 = sadd.s32 %s87, 1
    %p91 = scmp.eq.s32.totalorder %s32, 1
    %p92 = scmp.ne.s32.totalorder %s87, %s89
    %p93 = scmp.eq.s32.totalorder %s32, 0
    %p94 = por %p92, %p93
    %p95 = scmp.ne.s32.totalorder %s87, %s89
    %p96 = scmp.eq.s32.totalorder %s37, 1
    %p97 = por %p95, %p96
    %p98 = scmp.ne.s32.totalorder %s89, %s90
    %p99 = scmp.eq.s32.totalorder %s37, 0
    %p100 = por %p98, %p99
    %p101 = scmp.ne.s32.totalorder %s89, %s90
    %p102 = scmp.eq.s32.totalorder %s38, 1
    %p103 = por %p101, %p102
    %p105 = scmp.ne.s32.totalorder %s90, %s104
    %p106 = scmp.eq.s32.totalorder %s38, 0
    %p107 = por %p105, %p106
    %s109 = sadd.s32 %s108, 1
    %p112 = scmp.eq.s32.totalorder %s32, 1
    %p113 = scmp.ne.s32.totalorder %s108, %s110
    %p114 = scmp.eq.s32.totalorder %s32, 0
    %p115 = por %p113, %p114
    %p116 = scmp.ne.s32.totalorder %s108, %s110
    %p117 = scmp.eq.s32.totalorder %s37, 1
    %p118 = por %p116, %p117
    %p119 = scmp.ne.s32.totalorder %s110, %s111
    %p120 = scmp.eq.s32.totalorder %s37, 0
    %p121 = por %p119, %p120
    %p122 = scmp.ne.s32.totalorder %s110, %s111
    %p123 = scmp.eq.s32.totalorder %s38, 1
    %p124 = por %p122, %p123
    %p126 = scmp.ne.s32.totalorder %s111, %s125
    %p127 = scmp.eq.s32.totalorder %s38, 0
    %p128 = por %p126, %p127
    %s130 = sadd.s32 %s129, 1
    %p133 = scmp.eq.s32.totalorder %s32, 1
    %p134 = scmp.ne.s32.totalorder %s129, %s131
    %p135 = scmp.eq.s32.totalorder %s32, 0
    %p136 = por %p134, %p135
    %p137 = scmp.ne.s32.totalorder %s129, %s131
    %p138 = scmp.eq.s32.totalorder %s37, 1
    %p139 = por %p137, %p138
    %p140 = scmp.ne.s32.totalorder %s131, %s132
    %p141 = scmp.eq.s32.totalorder %s37, 0
    %p142 = por %p140, %p141
    %p143 = scmp.ne.s32.totalorder %s131, %s132
    %p144 = scmp.eq.s32.totalorder %s38, 1
    %p145 = por %p143, %p144
    %p147 = scmp.ne.s32.totalorder %s132, %s146
    %p148 = scmp.eq.s32.totalorder %s38, 0
    %p149 = por %p147, %p148
    %s151 = sadd.s32 %s150, 1
    %p154 = scmp.eq.s32.totalorder %s32, 1
    %p155 = scmp.ne.s32.totalorder %s150, %s152
    %p156 = scmp.eq.s32.totalorder %s32, 0
    %p157 = por %p155, %p156
    %p158 = scmp.ne.s32.totalorder %s150, %s152
    %p159 = scmp.eq.s32.totalorder %s37, 1
    %p160 = por %p158, %p159
    %p161 = scmp.ne.s32.totalorder %s152, %s153
    %p162 = scmp.eq.s32.totalorder %s37, 0
    %p163 = por %p161, %p162
    %p164 = scmp.ne.s32.totalorder %s152, %s153
    %p165 = scmp.eq.s32.totalorder %s38, 1
    %p166 = por %p164, %p165
    %p168 = scmp.ne.s32.totalorder %s153, %s167
    %p169 = scmp.eq.s32.totalorder %s38, 0
    %p170 = por %p168, %p169
    %s172 = sadd.s32 %s171, 1
    %p175 = scmp.eq.s32.totalorder %s32, 1
    %p176 = scmp.ne.s32.totalorder %s171, %s173
    %p177 = scmp.eq.s32.totalorder %s32, 0
    %p178 = por %p176, %p177
    %p179 = scmp.ne.s32.totalorder %s171, %s173
    %p180 = scmp.eq.s32.totalorder %s37, 1
    %p181 = por %p179, %p180
    %p182 = scmp.ne.s32.totalorder %s173, %s174
    %p183 = scmp.eq.s32.totalorder %s37, 0
    %p184 = por %p182, %p183
    %p185 = scmp.ne.s32.totalorder %s173, %s174
    %p186 = scmp.eq.s32.totalorder %s38, 1
    %p187 = por %p185, %p186
    %p189 = scmp.ne.s32.totalorder %s174, %s188
    %p190 = scmp.eq.s32.totalorder %s38, 0
    %p191 = por %p189, %p190
    %s193 = sadd.s32 %s192, 1
    %p196 = scmp.eq.s32.totalorder %s32, 1
    %p197 = scmp.ne.s32.totalorder %s192, %s194
    %p198 = scmp.eq.s32.totalorder %s32, 0
    %p199 = por %p197, %p198
    %p200 = scmp.ne.s32.totalorder %s192, %s194
    %p201 = scmp.eq.s32.totalorder %s37, 1
    %p202 = por %p200, %p201
    %p203 = scmp.ne.s32.totalorder %s194, %s195
    %p204 = scmp.eq.s32.totalorder %s37, 0
    %p205 = por %p203, %p204
    %p206 = scmp.ne.s32.totalorder %s194, %s195
    %p207 = scmp.eq.s32.totalorder %s38, 1
    %p208 = por %p206, %p207
    %p210 = scmp.ne.s32.totalorder %s195, %s209
    %p211 = scmp.eq.s32.totalorder %s38, 0
    %p212 = por %p210, %p211
    %s214 = sadd.s32 %s213, 1
    %p217 = scmp.eq.s32.totalorder %s32, 1
    %p218 = scmp.ne.s32.totalorder %s213, %s215
    %p219 = scmp.eq.s32.totalorder %s32, 0
    %p220 = por %p218, %p219
    %p221 = scmp.ne.s32.totalorder %s213, %s215
    %p222 = scmp.eq.s32.totalorder %s37, 1
    %p223 = por %p221, %p222
    %p224 = scmp.ne.s32.totalorder %s215, %s216
    %p225 = scmp.eq.s32.totalorder %s37, 0
    %p226 = por %p224, %p225
    %p227 = scmp.ne.s32.totalorder %s215, %s216
    %p228 = scmp.eq.s32.totalorder %s38, 1
    %p229 = por %p227, %p228
    %p231 = scmp.ne.s32.totalorder %s216, %s230
    %p232 = scmp.eq.s32.totalorder %s38, 0
    %p233 = por %p231, %p232
    %s235 = sadd.s32 %s234, 1
    %p238 = scmp.eq.s32.totalorder %s32, 1
    %p239 = scmp.ne.s32.totalorder %s234, %s236
    %p240 = scmp.eq.s32.totalorder %s32, 0
    %p241 = por %p239, %p240
    %p242 = scmp.ne.s32.totalorder %s234, %s236
    %p243 = scmp.eq.s32.totalorder %s37, 1
    %p244 = por %p242, %p243
    %p245 = scmp.ne.s32.totalorder %s236, %s237
    %p246 = scmp.eq.s32.totalorder %s37, 0
    %p247 = por %p245, %p246
    %p248 = scmp.ne.s32.totalorder %s236, %s237
    %p249 = scmp.eq.s32.totalorder %s38, 1
    %p250 = por %p248, %p249
    %p252 = scmp.ne.s32.totalorder %s237, %s251
    %p253 = scmp.eq.s32.totalorder %s38, 0
    %p254 = por %p252, %p253
    %s256 = sadd.s32 %s255, 1
    %p259 = scmp.eq.s32.totalorder %s32, 1
    %p260 = scmp.ne.s32.totalorder %s255, %s257
    %p261 = scmp.eq.s32.totalorder %s32, 0
    %p262 = por %p260, %p261
    %p263 = scmp.ne.s32.totalorder %s255, %s257
    %p264 = scmp.eq.s32.totalorder %s37, 1
    %p265 = por %p263, %p264
    %p266 = scmp.ne.s32.totalorder %s257, %s258
    %p267 = scmp.eq.s32.totalorder %s37, 0
    %p268 = por %p266, %p267
    %p269 = scmp.ne.s32.totalorder %s257, %s258
    %p270 = scmp.eq.s32.totalorder %s38, 1
    %p271 = por %p269, %p270
    %p273 = scmp.ne.s32.totalorder %s258, %s272
    %p274 = scmp.eq.s32.totalorder %s38, 0
    %p275 = por %p273, %p274
    %s277 = sadd.s32 %s276, 1
    %p280 = scmp.eq.s32.totalorder %s32, 1
    %p281 = scmp.ne.s32.totalorder %s276, %s278
    %p282 = scmp.eq.s32.totalorder %s32, 0
    %p283 = por %p281, %p282
    %p284 = scmp.ne.s32.totalorder %s276, %s278
    %p285 = scmp.eq.s32.totalorder %s37, 1
    %p286 = por %p284, %p285
    %p287 = scmp.ne.s32.totalorder %s278, %s279
    %p288 = scmp.eq.s32.totalorder %s37, 0
    %p289 = por %p287, %p288
    %p290 = scmp.ne.s32.totalorder %s278, %s279
    %p291 = scmp.eq.s32.totalorder %s38, 1
    %p292 = por %p290, %p291
    %p294 = scmp.ne.s32.totalorder %s279, %s293
    %p295 = scmp.eq.s32.totalorder %s38, 0
    %p296 = por %p294, %p295
    %s298 = sadd.s32 %s297, 1
    %p301 = scmp.eq.s32.totalorder %s32, 1
    %p302 = scmp.ne.s32.totalorder %s297, %s299
    %p303 = scmp.eq.s32.totalorder %s32, 0
    %p304 = por %p302, %p303
    %p305 = scmp.ne.s32.totalorder %s297, %s299
    %p306 = scmp.eq.s32.totalorder %s37, 1
    %p307 = por %p305, %p306
    %p308 = scmp.ne.s32.totalorder %s299, %s300
    %p309 = scmp.eq.s32.totalorder %s37, 0
    %p310 = por %p308, %p309
    %p311 = scmp.ne.s32.totalorder %s299, %s300
    %p312 = scmp.eq.s32.totalorder %s38, 1
    %p313 = por %p311, %p312
    %p315 = scmp.ne.s32.totalorder %s300, %s314
    %p316 = scmp.eq.s32.totalorder %s38, 0
    %p317 = por %p315, %p316
    %s319 = sadd.s32 %s318, 1
    %p322 = scmp.eq.s32.totalorder %s32, 1
    %p323 = scmp.ne.s32.totalorder %s318, %s320
    %p324 = scmp.eq.s32.totalorder %s32, 0
    %p325 = por %p323, %p324
    %p326 = scmp.ne.s32.totalorder %s318, %s320
    %p327 = scmp.eq.s32.totalorder %s37, 1
    %p328 = por %p326, %p327
    %p329 = scmp.ne.s32.totalorder %s320, %s321
    %p330 = scmp.eq.s32.totalorder %s37, 0
    %p331 = por %p329, %p330
    %p332 = scmp.ne.s32.totalorder %s320, %s321
    %p333 = scmp.eq.s32.totalorder %s38, 1
    %p334 = por %p332, %p333
    %p336 = scmp.ne.s32.totalorder %s321, %s335
    %p337 = scmp.eq.s32.totalorder %s38, 0
    %p338 = por %p336, %p337
    %s340 = sadd.s32 %s339, 1
    %p343 = scmp.eq.s32.totalorder %s32, 1
    %p344 = scmp.ne.s32.totalorder %s339, %s341
    %p345 = scmp.eq.s32.totalorder %s32, 0
    %p346 = por %p344, %p345
    %p347 = scmp.ne.s32.totalorder %s339, %s341
    %p348 = scmp.eq.s32.totalorder %s37, 1
    %p349 = por %p347, %p348
    %p350 = scmp.ne.s32.totalorder %s341, %s342
    %p351 = scmp.eq.s32.totalorder %s37, 0
    %p352 = por %p350, %p351
    %p353 = scmp.ne.s32.totalorder %s341, %s342
    %p354 = scmp.eq.s32.totalorder %s38, 1
    %p355 = por %p353, %p354
    %p357 = scmp.ne.s32.totalorder %s342, %s356
    %p358 = scmp.eq.s32.totalorder %s38, 0
    %p359 = por %p357, %p358
    %s361 = sadd.s32 %s360, 1
    %p364 = scmp.eq.s32.totalorder %s32, 1
    %p365 = scmp.ne.s32.totalorder %s360, %s362
    %p366 = scmp.eq.s32.totalorder %s32, 0
    %p367 = por %p365, %p366
    %p368 = scmp.ne.s32.totalorder %s360, %s362
    %p369 = scmp.eq.s32.totalorder %s37, 1
    %p370 = por %p368, %p369
    %p371 = scmp.ne.s32.totalorder %s362, %s363
    %p372 = scmp.eq.s32.totalorder %s37, 0
    %p373 = por %p371, %p372
    %p374 = scmp.ne.s32.totalorder %s362, %s363
    %p375 = scmp.eq.s32.totalorder %s38, 1
    %p376 = por %p374, %p375
    %p378 = scmp.ne.s32.totalorder %s363, %s377
    %p379 = scmp.eq.s32.totalorder %s38, 0
    %p380 = por %p378, %p379
    %s382 = sadd.s32 %s381, 1
    %p385 = scmp.eq.s32.totalorder %s32, 1
    %p386 = scmp.ne.s32.totalorder %s381, %s383
    %p387 = scmp.eq.s32.totalorder %s32, 0
    %p388 = por %p386, %p387
    %p389 = scmp.ne.s32.totalorder %s381, %s383
    %p390 = scmp.eq.s32.totalorder %s37, 1
    %p391 = por %p389, %p390
    %p392 = scmp.ne.s32.totalorder %s383, %s384
    %p393 = scmp.eq.s32.totalorder %s37, 0
    %p394 = por %p392, %p393
    %p395 = scmp.ne.s32.totalorder %s383, %s384
    %p396 = scmp.eq.s32.totalorder %s38, 1
    %p397 = por %p395, %p396
    %p399 = scmp.ne.s32.totalorder %s384, %s398
    %p400 = scmp.eq.s32.totalorder %s38, 0
    %p401 = por %p399, %p400
    %s403 = sadd.s32 %s402, 1
    %p406 = scmp.eq.s32.totalorder %s32, 1
    %p407 = scmp.ne.s32.totalorder %s402, %s404
    %p408 = scmp.eq.s32.totalorder %s32, 0
    %p409 = por %p407, %p408
    %p410 = scmp.ne.s32.totalorder %s402, %s404
    %p411 = scmp.eq.s32.totalorder %s37, 1
    %p412 = por %p410, %p411
    %p413 = scmp.ne.s32.totalorder %s404, %s405
    %p414 = scmp.eq.s32.totalorder %s37, 0
    %p415 = por %p413, %p414
    %p416 = scmp.ne.s32.totalorder %s404, %s405
    %p417 = scmp.eq.s32.totalorder %s38, 1
    %p418 = por %p416, %p417
    %p420 = scmp.ne.s32.totalorder %s405, %s419
    %p421 = scmp.eq.s32.totalorder %s38, 0
    %p422 = por %p420, %p421
    %s424 = sadd.s32 %s423, 1
    %p427 = scmp.eq.s32.totalorder %s32, 1
    %p428 = scmp.ne.s32.totalorder %s423, %s425
    %p429 = scmp.eq.s32.totalorder %s32, 0
    %p430 = por %p428, %p429
    %p431 = scmp.ne.s32.totalorder %s423, %s425
    %p432 = scmp.eq.s32.totalorder %s37, 1
    %p433 = por %p431, %p432
    %p434 = scmp.ne.s32.totalorder %s425, %s426
    %p435 = scmp.eq.s32.totalorder %s37, 0
    %p436 = por %p434, %p435
    %p437 = scmp.ne.s32.totalorder %s425, %s426
    %p438 = scmp.eq.s32.totalorder %s38, 1
    %p439 = por %p437, %p438
    %p441 = scmp.ne.s32.totalorder %s426, %s440
    %p442 = scmp.eq.s32.totalorder %s38, 0
    %p443 = por %p441, %p442
    %s445 = sadd.s32 %s444, 1
    %p448 = scmp.eq.s32.totalorder %s32, 1
    %p449 = scmp.ne.s32.totalorder %s444, %s446
    %p450 = scmp.eq.s32.totalorder %s32, 0
    %p451 = por %p449, %p450
    %p452 = scmp.ne.s32.totalorder %s444, %s446
    %p453 = scmp.eq.s32.totalorder %s37, 1
    %p454 = por %p452, %p453
    %p455 = scmp.ne.s32.totalorder %s446, %s447
    %p456 = scmp.eq.s32.totalorder %s37, 0
    %p457 = por %p455, %p456
    %p458 = scmp.ne.s32.totalorder %s446, %s447
    %p459 = scmp.eq.s32.totalorder %s38, 1
    %p460 = por %p458, %p459
    %p462 = scmp.ne.s32.totalorder %s447, %s461
    %p463 = scmp.eq.s32.totalorder %s38, 0
    %p464 = por %p462, %p463
    %s466 = sadd.s32 %s465, 1
    %p469 = scmp.eq.s32.totalorder %s32, 1
    %p470 = scmp.ne.s32.totalorder %s465, %s467
    %p471 = scmp.eq.s32.totalorder %s32, 0
    %p472 = por %p470, %p471
    %p473 = scmp.ne.s32.totalorder %s465, %s467
    %p474 = scmp.eq.s32.totalorder %s37, 1
    %p475 = por %p473, %p474
    %p476 = scmp.ne.s32.totalorder %s467, %s468
    %p477 = scmp.eq.s32.totalorder %s37, 0
    %p478 = por %p476, %p477
    %p479 = scmp.ne.s32.totalorder %s467, %s468
    %p480 = scmp.eq.s32.totalorder %s38, 1
    %p481 = por %p479, %p480
    %p483 = scmp.ne.s32.totalorder %s468, %s482
    %p484 = scmp.eq.s32.totalorder %s38, 0
    %p485 = por %p483, %p484
    %s487 = sadd.s32 %s486, 1
    %p490 = scmp.eq.s32.totalorder %s32, 1
    %p491 = scmp.ne.s32.totalorder %s486, %s488
    %p492 = scmp.eq.s32.totalorder %s32, 0
    %p493 = por %p491, %p492
    %p494 = scmp.ne.s32.totalorder %s486, %s488
    %p495 = scmp.eq.s32.totalorder %s37, 1
    %p496 = por %p494, %p495
    %p497 = scmp.ne.s32.totalorder %s488, %s489
    %p498 = scmp.eq.s32.totalorder %s37, 0
    %p499 = por %p497, %p498
    %p500 = scmp.ne.s32.totalorder %s488, %s489
    %p501 = scmp.eq.s32.totalorder %s38, 1
    %p502 = por %p500, %p501
    %p504 = scmp.ne.s32.totalorder %s489, %s503
    %p505 = scmp.eq.s32.totalorder %s38, 0
    %p506 = por %p504, %p505
    %s508 = sadd.s32 %s507, 1
    %p511 = scmp.eq.s32.totalorder %s32, 1
    %p512 = scmp.ne.s32.totalorder %s507, %s509
    %p513 = scmp.eq.s32.totalorder %s32, 0
    %p514 = por %p512, %p513
    %p515 = scmp.ne.s32.totalorder %s507, %s509
    %p516 = scmp.eq.s32.totalorder %s37, 1
    %p517 = por %p515, %p516
    %p518 = scmp.ne.s32.totalorder %s509, %s510
    %p519 = scmp.eq.s32.totalorder %s37, 0
    %p520 = por %p518, %p519
    %p521 = scmp.ne.s32.totalorder %s509, %s510
    %p522 = scmp.eq.s32.totalorder %s38, 1
    %p523 = por %p521, %p522
    %p525 = scmp.ne.s32.totalorder %s510, %s524
    %p526 = scmp.eq.s32.totalorder %s38, 0
    %p527 = por %p525, %p526
    %s529 = sadd.s32 %s528, 1
    %p532 = scmp.eq.s32.totalorder %s32, 1
    %p533 = scmp.ne.s32.totalorder %s528, %s530
    %p534 = scmp.eq.s32.totalorder %s32, 0
    %p535 = por %p533, %p534
    %p536 = scmp.ne.s32.totalorder %s528, %s530
    %p537 = scmp.eq.s32.totalorder %s37, 1
    %p538 = por %p536, %p537
    %p539 = scmp.ne.s32.totalorder %s530, %s531
    %p540 = scmp.eq.s32.totalorder %s37, 0
    %p541 = por %p539, %p540
    %p542 = scmp.ne.s32.totalorder %s530, %s531
    %p543 = scmp.eq.s32.totalorder %s38, 1
    %p544 = por %p542, %p543
    %p546 = scmp.ne.s32.totalorder %s531, %s545
    %p547 = scmp.eq.s32.totalorder %s38, 0
    %p548 = por %p546, %p547
    %s550 = sadd.s32 %s549, 1
    %p553 = scmp.eq.s32.totalorder %s32, 1
    %p554 = scmp.ne.s32.totalorder %s549, %s551
    %p555 = scmp.eq.s32.totalorder %s32, 0
    %p556 = por %p554, %p555
    %p557 = scmp.ne.s32.totalorder %s549, %s551
    %p558 = scmp.eq.s32.totalorder %s37, 1
    %p559 = por %p557, %p558
    %p560 = scmp.ne.s32.totalorder %s551, %s552
    %p561 = scmp.eq.s32.totalorder %s37, 0
    %p562 = por %p560, %p561
    %p563 = scmp.ne.s32.totalorder %s551, %s552
    %p564 = scmp.eq.s32.totalorder %s38, 1
    %p565 = por %p563, %p564
    %p567 = scmp.ne.s32.totalorder %s552, %s566
    %p568 = scmp.eq.s32.totalorder %s38, 0
    %p569 = por %p567, %p568
    %s571 = sadd.s32 %s570, 1
    %p574 = scmp.eq.s32.totalorder %s32, 1
    %p575 = scmp.ne.s32.totalorder %s570, %s572
    %p576 = scmp.eq.s32.totalorder %s32, 0
    %p577 = por %p575, %p576
    %p578 = scmp.ne.s32.totalorder %s570, %s572
    %p579 = scmp.eq.s32.totalorder %s37, 1
    %p580 = por %p578, %p579
    %p581 = scmp.ne.s32.totalorder %s572, %s573
    %p582 = scmp.eq.s32.totalorder %s37, 0
    %p583 = por %p581, %p582
    %p584 = scmp.ne.s32.totalorder %s572, %s573
    %p585 = scmp.eq.s32.totalorder %s38, 1
    %p586 = por %p584, %p585
    %p588 = scmp.ne.s32.totalorder %s573, %s587
    %p589 = scmp.eq.s32.totalorder %s38, 0
    %p590 = por %p588, %p589
    %s591 = ssub.s32 %s32, %s39
    %p592 = scmp.eq.s32.totalorder %s591, 0
    %s594 = sadd.s32 %s593, 1
    %s595 = scalar_select %p592, %s593, %s594
    %p598 = pneg %p592
    %p599 = scmp.eq.s32.totalorder %s32, 1
    %p600 = por %p598, %p599
    %p601 = scmp.ne.s32.totalorder %s593, %s596
    %p602 = scmp.eq.s32.totalorder %s32, 0
    %p603 = por %p601, %p602
    %p604 = scmp.ne.s32.totalorder %s593, %s596
    %p605 = scmp.eq.s32.totalorder %s37, 1
    %p606 = por %p604, %p605
    %p607 = scmp.ne.s32.totalorder %s596, %s597
    %p608 = scmp.eq.s32.totalorder %s37, 0
    %p609 = por %p607, %p608
    %p610 = scmp.ne.s32.totalorder %s596, %s597
    %p611 = scmp.eq.s32.totalorder %s38, 1
    %p612 = por %p610, %p611
    %p614 = scmp.ne.s32.totalorder %s597, %s613
    %p615 = scmp.eq.s32.totalorder %s38, 0
    %p616 = por %p614, %p615
    %p617 = scmp.le.s32.totalorder 1, %s32
    %p618 = scmp.lt.s32.totalorder %s32, 3
    %p619 = pnand %p617, %p618
    %p620 = pneg %p619
    // Predicated region
    $region9: #{_lambda_.1} parent=5 // pred_check
      _
    $region10: #{_lambda_.1} parent=5 // pred_check_branch
      %622 = sbr.rel (%p619) target = $region12
    $region11: #{_lambda_.1} parent=5 // pred_region
      %s623 = ssub.s32 %s32, 1
      // Predicated region
      $region13: #{_lambda_.1} parent=11 // pred_check
        %p624 = pneg %p79
      $region14: #{_lambda_.1} parent=11 // pred_check_branch
        %626 = sbr.rel (%p624) target = $region16
      $region15: #{_lambda_.1} parent=11 // pred_region
        _
      $region16: #{_lambda_.1} parent=11 // pred_fallthru
        _
      // Predicated region
      $region17: #{_lambda_.1} parent=11 // pred_check
        %p627 = pneg %p100
      $region18: #{_lambda_.1} parent=11 // pred_check_branch
        %629 = sbr.rel (%p627) target = $region20
      $region19: #{_lambda_.1} parent=11 // pred_region
        _
      $region20: #{_lambda_.1} parent=11 // pred_fallthru
        _
      // Predicated region
      $region21: #{_lambda_.1} parent=11 // pred_check
        %p630 = pneg %p121
      $region22: #{_lambda_.1} parent=11 // pred_check_branch
        %632 = sbr.rel (%p630) target = $region24
      $region23: #{_lambda_.1} parent=11 // pred_region
        _
      $region24: #{_lambda_.1} parent=11 // pred_fallthru
        _
      // Predicated region
      $region25: #{_lambda_.1} parent=11 // pred_check
        %p633 = pneg %p142
      $region26: #{_lambda_.1} parent=11 // pred_check_branch
        %635 = sbr.rel (%p633) target = $region28
      $region27: #{_lambda_.1} parent=11 // pred_region
        _
      $region28: #{_lambda_.1} parent=11 // pred_fallthru
        _
      // Predicated region
      $region29: #{_lambda_.1} parent=11 // pred_check
        %p636 = pneg %p163
      $region30: #{_lambda_.1} parent=11 // pred_check_branch
        %638 = sbr.rel (%p636) target = $region32
      $region31: #{_lambda_.1} parent=11 // pred_region
        _
      $region32: #{_lambda_.1} parent=11 // pred_fallthru
        _
      // Predicated region
      $region33: #{_lambda_.1} parent=11 // pred_check
        %p639 = pneg %p184
      $region34: #{_lambda_.1} parent=11 // pred_check_branch
        %641 = sbr.rel (%p639) target = $region36
      $region35: #{_lambda_.1} parent=11 // pred_region
        _
      $region36: #{_lambda_.1} parent=11 // pred_fallthru
        _
      // Predicated region
      $region37: #{_lambda_.1} parent=11 // pred_check
        %p642 = pneg %p205
      $region38: #{_lambda_.1} parent=11 // pred_check_branch
        %644 = sbr.rel (%p642) target = $region40
      $region39: #{_lambda_.1} parent=11 // pred_region
        _
      $region40: #{_lambda_.1} parent=11 // pred_fallthru
        _
      // Predicated region
      $region41: #{_lambda_.1} parent=11 // pred_check
        %p645 = pneg %p226
      $region42: #{_lambda_.1} parent=11 // pred_check_branch
        %647 = sbr.rel (%p645) target = $region44
      $region43: #{_lambda_.1} parent=11 // pred_region
        _
      $region44: #{_lambda_.1} parent=11 // pred_fallthru
        _
      // Predicated region
      $region45: #{_lambda_.1} parent=11 // pred_check
        %p648 = pneg %p247
      $region46: #{_lambda_.1} parent=11 // pred_check_branch
        %650 = sbr.rel (%p648) target = $region48
      $region47: #{_lambda_.1} parent=11 // pred_region
        _
      $region48: #{_lambda_.1} parent=11 // pred_fallthru
        _
      // Predicated region
      $region49: #{_lambda_.1} parent=11 // pred_check
        %p651 = pneg %p268
      $region50: #{_lambda_.1} parent=11 // pred_check_branch
        %653 = sbr.rel (%p651) target = $region52
      $region51: #{_lambda_.1} parent=11 // pred_region
        _
      $region52: #{_lambda_.1} parent=11 // pred_fallthru
        _
      // Predicated region
      $region53: #{_lambda_.1} parent=11 // pred_check
        %p654 = pneg %p289
      $region54: #{_lambda_.1} parent=11 // pred_check_branch
        %656 = sbr.rel (%p654) target = $region56
      $region55: #{_lambda_.1} parent=11 // pred_region
        _
      $region56: #{_lambda_.1} parent=11 // pred_fallthru
        _
      // Predicated region
      $region57: #{_lambda_.1} parent=11 // pred_check
        %p657 = pneg %p310
      $region58: #{_lambda_.1} parent=11 // pred_check_branch
        %659 = sbr.rel (%p657) target = $region60
      $region59: #{_lambda_.1} parent=11 // pred_region
        _
      $region60: #{_lambda_.1} parent=11 // pred_fallthru
        _
      // Predicated region
      $region61: #{_lambda_.1} parent=11 // pred_check
        %p660 = pneg %p331
      $region62: #{_lambda_.1} parent=11 // pred_check_branch
        %662 = sbr.rel (%p660) target = $region64
      $region63: #{_lambda_.1} parent=11 // pred_region
        _
      $region64: #{_lambda_.1} parent=11 // pred_fallthru
        _
      // Predicated region
      $region65: #{_lambda_.1} parent=11 // pred_check
        %p663 = pneg %p352
      $region66: #{_lambda_.1} parent=11 // pred_check_branch
        %665 = sbr.rel (%p663) target = $region68
      $region67: #{_lambda_.1} parent=11 // pred_region
        _
      $region68: #{_lambda_.1} parent=11 // pred_fallthru
        _
      // Predicated region
      $region69: #{_lambda_.1} parent=11 // pred_check
        %p666 = pneg %p373
      $region70: #{_lambda_.1} parent=11 // pred_check_branch
        %668 = sbr.rel (%p666) target = $region72
      $region71: #{_lambda_.1} parent=11 // pred_region
        _
      $region72: #{_lambda_.1} parent=11 // pred_fallthru
        _
      // Predicated region
      $region73: #{_lambda_.1} parent=11 // pred_check
        %p669 = pneg %p394
      $region74: #{_lambda_.1} parent=11 // pred_check_branch
        %671 = sbr.rel (%p669) target = $region76
      $region75: #{_lambda_.1} parent=11 // pred_region
        _
      $region76: #{_lambda_.1} parent=11 // pred_fallthru
        _
      // Predicated region
      $region77: #{_lambda_.1} parent=11 // pred_check
        %p672 = pneg %p415
      $region78: #{_lambda_.1} parent=11 // pred_check_branch
        %674 = sbr.rel (%p672) target = $region80
      $region79: #{_lambda_.1} parent=11 // pred_region
        _
      $region80: #{_lambda_.1} parent=11 // pred_fallthru
        _
      // Predicated region
      $region81: #{_lambda_.1} parent=11 // pred_check
        %p675 = pneg %p436
      $region82: #{_lambda_.1} parent=11 // pred_check_branch
        %677 = sbr.rel (%p675) target = $region84
      $region83: #{_lambda_.1} parent=11 // pred_region
        _
      $region84: #{_lambda_.1} parent=11 // pred_fallthru
        _
      // Predicated region
      $region85: #{_lambda_.1} parent=11 // pred_check
        %p678 = pneg %p457
      $region86: #{_lambda_.1} parent=11 // pred_check_branch
        %680 = sbr.rel (%p678) target = $region88
      $region87: #{_lambda_.1} parent=11 // pred_region
        _
      $region88: #{_lambda_.1} parent=11 // pred_fallthru
        _
      // Predicated region
      $region89: #{_lambda_.1} parent=11 // pred_check
        %p681 = pneg %p478
      $region90: #{_lambda_.1} parent=11 // pred_check_branch
        %683 = sbr.rel (%p681) target = $region92
      $region91: #{_lambda_.1} parent=11 // pred_region
        _
      $region92: #{_lambda_.1} parent=11 // pred_fallthru
        _
      // Predicated region
      $region93: #{_lambda_.1} parent=11 // pred_check
        %p684 = pneg %p499
      $region94: #{_lambda_.1} parent=11 // pred_check_branch
        %686 = sbr.rel (%p684) target = $region96
      $region95: #{_lambda_.1} parent=11 // pred_region
        _
      $region96: #{_lambda_.1} parent=11 // pred_fallthru
        _
      // Predicated region
      $region97: #{_lambda_.1} parent=11 // pred_check
        %p687 = pneg %p520
      $region98: #{_lambda_.1} parent=11 // pred_check_branch
        %689 = sbr.rel (%p687) target = $region100
      $region99: #{_lambda_.1} parent=11 // pred_region
        _
      $region100: #{_lambda_.1} parent=11 // pred_fallthru
        _
      // Predicated region
      $region101: #{_lambda_.1} parent=11 // pred_check
        %p690 = pneg %p541
      $region102: #{_lambda_.1} parent=11 // pred_check_branch
        %692 = sbr.rel (%p690) target = $region104
      $region103: #{_lambda_.1} parent=11 // pred_region
        _
      $region104: #{_lambda_.1} parent=11 // pred_fallthru
        _
      // Predicated region
      $region105: #{_lambda_.1} parent=11 // pred_check
        %p693 = pneg %p562
      $region106: #{_lambda_.1} parent=11 // pred_check_branch
        %695 = sbr.rel (%p693) target = $region108
      $region107: #{_lambda_.1} parent=11 // pred_region
        _
      $region108: #{_lambda_.1} parent=11 // pred_fallthru
        _
      // Predicated region
      $region109: #{_lambda_.1} parent=11 // pred_check
        %p696 = pneg %p583
      $region110: #{_lambda_.1} parent=11 // pred_check_branch
        %698 = sbr.rel (%p696) target = $region112
      $region111: #{_lambda_.1} parent=11 // pred_region
        _
      $region112: #{_lambda_.1} parent=11 // pred_fallthru
        _
    $region12: #{_lambda_.1} parent=5 // pred_fallthru
      _
    %p699 = scmp.lt.s32.totalorder %s32, 2
    // Predicated region
    $region113: #{_lambda_.1} parent=5 // pred_check
      %p700 = pneg %p699
    $region114: #{_lambda_.1} parent=5 // pred_check_branch
      %702 = sbr.rel (%p700) target = $region116
    $region115: #{_lambda_.1} parent=5 // pred_region
      // Predicated region
      $region117: #{_lambda_.1} parent=115 // pred_check
        %p703 = pneg %p52
      $region118: #{_lambda_.1} parent=115 // pred_check_branch
        %705 = sbr.rel (%p703) target = $region120
      $region119: #{_lambda_.1} parent=115 // pred_region
        %p706 = scmp.lt.s32.totalorder %s32, 1
        %s707 = scalar_select %p706, %s32, 1
        %s708 = smul.addr %s707, 3
        %s709 = smul.addr %s708, 8
        %s710 = scalar_lea.vmem %s0, %s709
      $region120: #{_lambda_.1} parent=115 // pred_fallthru
        _
    $region116: #{_lambda_.1} parent=5 // pred_fallthru
      _
    %p711 = scmp.le.s32.totalorder 1, %s32
    %p712 = scmp.lt.s32.totalorder %s32, 3
    %p713 = pnand %p711, %p712
    %p714 = pneg %p713
    // Predicated region
    $region121: #{_lambda_.1} parent=5 // pred_check
      _
    $region122: #{_lambda_.1} parent=5 // pred_check_branch
      %716 = sbr.rel (%p713) target = $region124
    $region123: #{_lambda_.1} parent=5 // pred_region
      %s717 = ssub.s32 %s32, 1
      %p718 = scmp.lt.s32.totalorder %s37, 1
      %s719 = scalar_select %p718, %s37, 1
      %s720 = smul.addr %s719, 3
      %s721 = smul.addr %s720, 8
      %s722 = scalar_lea.vmem %s0, %s721
      %p723 = pneg %p58
      %p724 = pneg %p55
      %p725 = pneg %p79
      %p726 = pneg %p76
      %p727 = pneg %p100
      %p728 = pneg %p97
      %p729 = pneg %p121
      %p730 = pneg %p118
      %p731 = pneg %p142
      %p732 = pneg %p139
      %p733 = pneg %p163
      %p734 = pneg %p160
      %p735 = pneg %p184
      %p736 = pneg %p181
      %p737 = pneg %p205
      %p738 = pneg %p202
      %p739 = pneg %p226
      %p740 = pneg %p223
      %p741 = pneg %p247
      %p742 = pneg %p244
      %p743 = pneg %p268
      %p744 = pneg %p265
      %p745 = pneg %p289
      %p746 = pneg %p286
      %p747 = pneg %p310
      %p748 = pneg %p307
      %p749 = pneg %p331
      %p750 = pneg %p328
      %p751 = pneg %p352
      %p752 = pneg %p349
      %p753 = pneg %p373
      %p754 = pneg %p370
      %p755 = pneg %p394
      %p756 = pneg %p391
      %p757 = pneg %p415
      %p758 = pneg %p412
      %p759 = pneg %p436
      %p760 = pneg %p433
      %p761 = pneg %p457
      %p762 = pneg %p454
      %p763 = pneg %p478
      %p764 = pneg %p475
      %p765 = pneg %p499
      %p766 = pneg %p496
      %p767 = pneg %p520
      %p768 = pneg %p517
      %p769 = pneg %p541
      %p770 = pneg %p538
      %p771 = pneg %p562
      %p772 = pneg %p559
      %p773 = pneg %p583
      %p774 = pneg %p580
      %p775 = pneg %p609
      %p776 = pneg %p606
      %p777 = scmp.lt.s32.totalorder %s37, 1
      %s778 = scalar_select %p777, %s37, 1
      %s779 = smul.addr %s778, 4
      %s780 = scalar_lea.vmem %s26, %s779
      %p781 = scmp.lt.s32.totalorder %s37, 1
      %s782 = scalar_select %p781, %s37, 1
      %s783 = smul.addr %s782, 3
      %s784 = smul.addr %s783, 8
      %s785 = scalar_lea.vmem %s0, %s784
      %p786 = scmp.lt.s32.totalorder %s37, 1
      %s787 = scalar_select %p786, %s37, 1
      %s788 = smul.addr %s787, 4
      %s789 = scalar_lea.vmem %s26, %s788
      %v790 = vld [vmem:[%s785] sm:$0xff]
      %v791 = vld [vmem:[%s785 + $0x8] sm:$0xff]
      %v792 = vld [vmem:[%s785 + $0x10] sm:$0xf]
      %v793 = vld [vmem:[%s1] sm:$0xff]
      %v794 = vld [vmem:[%s1 + $0x8] sm:$0xff]
      %v795 = vld [vmem:[%s1 + $0x10] sm:$0xff]
      %v796 = vld [vmem:[%s1 + $0x18] sm:$0xff]
      %v797 = vld [vmem:[%s1 + $0x20] sm:$0xff]
      %v798 = vld [vmem:[%s1 + $0x28] sm:$0xff]
      %v799 = vld [vmem:[%s1 + $0x30] sm:$0xff]
      %v800 = vld [vmem:[%s1 + $0x38] sm:$0xff]
      %v801 = vld [vmem:[%s1 + $0x40] sm:$0xff]
      %v802 = vld [vmem:[%s1 + $0x48] sm:$0xff]
      %v803 = vld [vmem:[%s1 + $0x50] sm:$0xff]
      %v804 = vld [vmem:[%s1 + $0x58] sm:$0xff]
      %v805 = vld [vmem:[%s1 + $0x60] sm:$0xff]
      %v806 = vld [vmem:[%s1 + $0x68] sm:$0xff]
      %v807 = vld [vmem:[%s1 + $0x70] sm:$0xff]
      %v808 = vld [vmem:[%s1 + $0x78] sm:$0xff]
      %v809 = vld [vmem:[%s1 + $0x80] sm:$0xff]
      %v810 = vld [vmem:[%s1 + $0x88] sm:$0xff]
      %v811 = vld [vmem:[%s1 + $0x90] sm:$0xff]
      %v812 = vld [vmem:[%s1 + $0x98] sm:$0xff]
      %s813 = scalar_lea.vmem %s1, 160
      %v814 = vld [vmem:[%s813] sm:$0xff]
      %v815 = vld [vmem:[%s813 + $0x8] sm:$0xff]
      %v816 = vld [vmem:[%s813 + $0x10] sm:$0xff]
      %v817 = vld [vmem:[%s813 + $0x18] sm:$0xff]
      %v818 = vld [vmem:[%s813 + $0x20] sm:$0xff]
      %v819 = vld [vmem:[%s813 + $0x28] sm:$0xff]
      %v820 = vld [vmem:[%s813 + $0x30] sm:$0xff]
      %v821 = vld [vmem:[%s813 + $0x38] sm:$0xff]
      %v822 = vld [vmem:[%s813 + $0x40] sm:$0xff]
      %v823 = vld [vmem:[%s813 + $0x48] sm:$0xff]
      %v824 = vld [vmem:[%s813 + $0x50] sm:$0xff]
      %v825 = vld [vmem:[%s813 + $0x58] sm:$0xff]
      %v826 = vld [vmem:[%s813 + $0x60] sm:$0xff]
      %v827 = vld [vmem:[%s813 + $0x68] sm:$0xff]
      %v828 = vld [vmem:[%s813 + $0x70] sm:$0xff]
      %v829 = vld [vmem:[%s813 + $0x78] sm:$0xff]
      %v830 = vld [vmem:[%s813 + $0x80] sm:$0xff]
      %v831 = vld [vmem:[%s813 + $0x88] sm:$0xff]
      %v832 = vld [vmem:[%s813 + $0x90] sm:$0xff]
      %v833 = vld [vmem:[%s813 + $0x98] sm:$0xff]
      %vm837 = vcmask 1046528
      %v838 = vrot.slane %v790, 1
      %v839 = vrot.slane %v791, 1
      %v840 = vsel %vm837, %v838, %v839
      %v841 = vrot.slane %v792, 1
      %v842 = vsel %vm837, %v839, %v841
      %vm843 = vcmask 654336
      %v844 = vsel %vm843, %v840, 0
      %v846 = vsel %vm843, %v842, 0
      %v848 = vsel %vm843, %v841, 0
      %850 = vmatprep.subr.mxu0 %v815
      %851 = vmatpush1.msra.mxu0 %v814
      %852 = vmatprep.subr.mxu0 %v817
      %853 = vmatpush1.msra.mxu0 %v816
      %854 = vmatprep.subr.mxu0 %v819
      %855 = vmatpush1.msra.mxu0 %v818
      %856 = vmatprep.subr.mxu0 %v821
      %857 = vmatpush1.msra.mxu0 %v820
      %858 = vmatprep.subr.mxu0 %v823
      %859 = vmatpush1.msra.mxu0 %v822
      %860 = vmatprep.subr.mxu0 %v825
      %861 = vmatpush1.msra.mxu0 %v824
      %862 = vmatprep.subr.mxu0 %v827
      %863 = vmatpush1.msra.mxu0 %v826
      %864 = vmatprep.subr.mxu0 %v829
      %865 = vmatpush1.msra.mxu0 %v828
      %866 = vmatprep.subr.mxu0 %v831
      %867 = vmatpush1.msra.mxu0 %v830
      %868 = vmatprep.subr.mxu0 %v833
      %869 = vmatpush1.msra.mxu0 %v832
      %870 = vmatprep.subr.mxu0 0.0
      %871 = vmatpush1.msra.mxu0 0.0
      %872 = vmatprep.subr.mxu0 0.0
      %873 = vmatpush1.msra.mxu0 0.0
      %874 = vmatprep.subr.mxu0 0.0
      %875 = vmatpush1.msra.mxu0 0.0
      %876 = vmatprep.subr.mxu0 0.0
      %877 = vmatpush1.msra.mxu0 0.0
      %878 = vmatprep.subr.mxu0 0.0
      %879 = vmatpush1.msra.mxu0 0.0
      %880 = vmatprep.subr.mxu0 0.0
      %881 = vmatpush1.msra.mxu0 0.0
      %882 = vmatprep.subr.mxu0 0.0
      %883 = vmatpush1.msra.mxu0 0.0
      %884 = vmatprep.subr.mxu0 0.0
      %885 = vmatpush1.msra.mxu0 0.0
      %886 = vmatprep.subr.mxu0 0.0
      %887 = vmatpush1.msra.mxu0 0.0
      %888 = vmatprep.subr.mxu0 0.0
      %889 = vmatpush1.msra.mxu0 0.0
      %890 = vmatprep.subr.mxu0 0.0
      %891 = vmatpush1.msra.mxu0 0.0
      %892 = vmatprep.subr.mxu0 0.0
      %893 = vmatpush1.msra.mxu0 0.0
      %894 = vmatprep.subr.mxu0 0.0
      %895 = vmatpush1.msra.mxu0 0.0
      %896 = vmatprep.subr.mxu0 0.0
      %897 = vmatpush1.msra.mxu0 0.0
      %898 = vmatprep.subr.mxu0 0.0
      %899 = vmatpush1.msra.mxu0 0.0
      %900 = vmatprep.subr.mxu0 0.0
      %901 = vmatpush1.msra.mxu0 0.0
      %902 = vmatprep.subr.mxu0 0.0
      %903 = vmatpush1.msra.mxu0 0.0
      %904 = vmatprep.subr.mxu0 0.0
      %905 = vmatpush1.msra.mxu0 0.0
      %906 = vmatprep.subr.mxu0 0.0
      %907 = vmatpush1.msra.mxu0 0.0
      %908 = vmatprep.subr.mxu0 0.0
      %909 = vmatpush1.msra.mxu0 0.0
      %910 = vmatprep.subr.mxu0 0.0
      %911 = vmatpush1.msra.mxu0 0.0
      %912 = vmatprep.subr.mxu0 0.0
      %913 = vmatpush1.msra.mxu0 0.0
      %914 = vmatprep.mubr.f32.mxu0 0.0
      %915 = vmatmul.mubr.f32.gmra.mrb[0].mxu0 %v844
      %v916 = vpop.f32.mrb[0].mxu0
      %v917 = vadd.f32 0.0, %v916
      %v918 = vpop.f32.mrb[0].mxu0
      %v919 = vadd.f32 0.0, %v918
      %920 = vmatprep.mubr.f32.mxu0 0.0
      %921 = vmatmul.mubr.f32.gmra.mrb[0].mxu0 %v846
      %v922 = vpop.f32.mrb[0].mxu0
      %v923 = vadd.f32 0.0, %v922
      %v924 = vpop.f32.mrb[0].mxu0
      %v925 = vadd.f32 0.0, %v924
      %926 = vmatprep.mubr.f32.mxu0 0.0
      %927 = vmatmul.mubr.f32.gmra.mrb[0].mxu0 %v848
      %v928 = vpop.f32.mrb[0].mxu0
      %v929 = vadd.f32 0.0, %v928
      %v930 = vpop.f32.mrb[0].mxu0
      %v931 = vadd.f32 0.0, %v930
      %932 = vdwg.mxu0
      %v933 = vsel %vm843, %v790, 0
      %v935 = vsel %vm843, %v791, 0
      %v937 = vsel %vm843, %v792, 0
      %939 = vmatprep.subr.mxu0 %v794
      %940 = vmatpush1.msra.mxu0 %v793
      %941 = vmatprep.subr.mxu0 %v796
      %942 = vmatpush1.msra.mxu0 %v795
      %943 = vmatprep.subr.mxu0 %v798
      %944 = vmatpush1.msra.mxu0 %v797
      %945 = vmatprep.subr.mxu0 %v800
      %946 = vmatpush1.msra.mxu0 %v799
      %947 = vmatprep.subr.mxu0 %v802
      %948 = vmatpush1.msra.mxu0 %v801
      %949 = vmatprep.subr.mxu0 %v804
      %950 = vmatpush1.msra.mxu0 %v803
      %951 = vmatprep.subr.mxu0 %v806
      %952 = vmatpush1.msra.mxu0 %v805
      %953 = vmatprep.subr.mxu0 %v808
      %954 = vmatpush1.msra.mxu0 %v807
      %955 = vmatprep.subr.mxu0 %v810
      %956 = vmatpush1.msra.mxu0 %v809
      %957 = vmatprep.subr.mxu0 %v812
      %958 = vmatpush1.msra.mxu0 %v811
      %959 = vmatprep.subr.mxu0 0.0
      %960 = vmatpush1.msra.mxu0 0.0
      %961 = vmatprep.subr.mxu0 0.0
      %962 = vmatpush1.msra.mxu0 0.0
      %963 = vmatprep.subr.mxu0 0.0
      %964 = vmatpush1.msra.mxu0 0.0
      %965 = vmatprep.subr.mxu0 0.0
      %966 = vmatpush1.msra.mxu0 0.0
      %967 = vmatprep.subr.mxu0 0.0
      %968 = vmatpush1.msra.mxu0 0.0
      %969 = vmatprep.subr.mxu0 0.0
      %970 = vmatpush1.msra.mxu0 0.0
      %971 = vmatprep.subr.mxu0 0.0
      %972 = vmatpush1.msra.mxu0 0.0
      %973 = vmatprep.subr.mxu0 0.0
      %974 = vmatpush1.msra.mxu0 0.0
      %975 = vmatprep.subr.mxu0 0.0
      %976 = vmatpush1.msra.mxu0 0.0
      %977 = vmatprep.subr.mxu0 0.0
      %978 = vmatpush1.msra.mxu0 0.0
      %979 = vmatprep.subr.mxu0 0.0
      %980 = vmatpush1.msra.mxu0 0.0
      %981 = vmatprep.subr.mxu0 0.0
      %982 = vmatpush1.msra.mxu0 0.0
      %983 = vmatprep.subr.mxu0 0.0
      %984 = vmatpush1.msra.mxu0 0.0
      %985 = vmatprep.subr.mxu0 0.0
      %986 = vmatpush1.msra.mxu0 0.0
      %987 = vmatprep.subr.mxu0 0.0
      %988 = vmatpush1.msra.mxu0 0.0
      %989 = vmatprep.subr.mxu0 0.0
      %990 = vmatpush1.msra.mxu0 0.0
      %991 = vmatprep.subr.mxu0 0.0
      %992 = vmatpush1.msra.mxu0 0.0
      %993 = vmatprep.subr.mxu0 0.0
      %994 = vmatpush1.msra.mxu0 0.0
      %995 = vmatprep.subr.mxu0 0.0
      %996 = vmatpush1.msra.mxu0 0.0
      %997 = vmatprep.subr.mxu0 0.0
      %998 = vmatpush1.msra.mxu0 0.0
      %999 = vmatprep.subr.mxu0 0.0
      %1000 = vmatpush1.msra.mxu0 0.0
      %1001 = vmatprep.subr.mxu0 0.0
      %1002 = vmatpush1.msra.mxu0 0.0
      %1003 = vmatprep.mubr.f32.mxu0 0.0
      %1004 = vmatmul.mubr.f32.gmra.mrb[0].mxu0 %v933
      %v1005 = vpop.f32.mrb[0].mxu0
      %v1006 = vadd.f32 %v917, %v1005
      %v1007 = vpop.f32.mrb[0].mxu0
      %v1008 = vadd.f32 %v919, %v1007
      %1009 = vmatprep.mubr.f32.mxu0 0.0
      %1010 = vmatmul.mubr.f32.gmra.mrb[0].mxu0 %v935
      %v1011 = vpop.f32.mrb[0].mxu0
      %v1012 = vadd.f32 %v923, %v1011
      %v1013 = vpop.f32.mrb[0].mxu0
      %v1014 = vadd.f32 %v925, %v1013
      %1015 = vmatprep.mubr.f32.mxu0 0.0
      %1016 = vmatmul.mubr.f32.gmra.mrb[0].mxu0 %v937
      %v1017 = vpop.f32.mrb[0].mxu0
      %v1018 = vadd.f32 %v929, %v1017
      %v1019 = vpop.f32.mrb[0].mxu0
      %v1020 = vadd.f32 %v931, %v1019
      %1021 = vdwg.mxu0
      %s1022 = scalar_lea.vmem %s1, 320
      %v1023 = vld [vmem:[%s1022] sm:$0xff]
      %v1024 = vld [vmem:[%s1022 + $0x8] sm:$0xff]
      %v1025 = vld [vmem:[%s1022 + $0x10] sm:$0xff]
      %v1026 = vld [vmem:[%s1022 + $0x18] sm:$0xff]
      %v1027 = vld [vmem:[%s1022 + $0x20] sm:$0xff]
      %v1028 = vld [vmem:[%s1022 + $0x28] sm:$0xff]
      %v1029 = vld [vmem:[%s1022 + $0x30] sm:$0xff]
      %v1030 = vld [vmem:[%s1022 + $0x38] sm:$0xff]
      %v1031 = vld [vmem:[%s1022 + $0x40] sm:$0xff]
      %v1032 = vld [vmem:[%s1022 + $0x48] sm:$0xff]
      %v1033 = vld [vmem:[%s1022 + $0x50] sm:$0xff]
      %v1034 = vld [vmem:[%s1022 + $0x58] sm:$0xff]
      %v1035 = vld [vmem:[%s1022 + $0x60] sm:$0xff]
      %v1036 = vld [vmem:[%s1022 + $0x68] sm:$0xff]
      %v1037 = vld [vmem:[%s1022 + $0x70] sm:$0xff]
      %v1038 = vld [vmem:[%s1022 + $0x78] sm:$0xff]
      %v1039 = vld [vmem:[%s1022 + $0x80] sm:$0xff]
      %v1040 = vld [vmem:[%s1022 + $0x88] sm:$0xff]
      %v1041 = vld [vmem:[%s1022 + $0x90] sm:$0xff]
      %v1042 = vld [vmem:[%s1022 + $0x98] sm:$0xff]
      %vm1043 = vcmask 1045504
      %v1044 = vrot.slane %v790, 2
      %v1045 = vrot.slane %v791, 2
      %v1046 = vsel %vm1043, %v1044, %v1045
      %v1047 = vrot.slane %v792, 2
      %v1048 = vsel %vm1043, %v1045, %v1047
      %v1049 = vsel %vm843, %v1046, 0
      %v1051 = vsel %vm843, %v1048, 0
      %v1053 = vsel %vm843, %v1047, 0
      %1055 = vmatprep.subr.mxu0 %v1024
      %1056 = vmatpush1.msra.mxu0 %v1023
      %1057 = vmatprep.subr.mxu0 %v1026
      %1058 = vmatpush1.msra.mxu0 %v1025
      %1059 = vmatprep.subr.mxu0 %v1028
      %1060 = vmatpush1.msra.mxu0 %v1027
      %1061 = vmatprep.subr.mxu0 %v1030
      %1062 = vmatpush1.msra.mxu0 %v1029
      %1063 = vmatprep.subr.mxu0 %v1032
      %1064 = vmatpush1.msra.mxu0 %v1031
      %1065 = vmatprep.subr.mxu0 %v1034
      %1066 = vmatpush1.msra.mxu0 %v1033
      %1067 = vmatprep.subr.mxu0 %v1036
      %1068 = vmatpush1.msra.mxu0 %v1035
      %1069 = vmatprep.subr.mxu0 %v1038
      %1070 = vmatpush1.msra.mxu0 %v1037
      %1071 = vmatprep.subr.mxu0 %v1040
      %1072 = vmatpush1.msra.mxu0 %v1039
      %1073 = vmatprep.subr.mxu0 %v1042
      %1074 = vmatpush1.msra.mxu0 %v1041
      %1075 = vmatprep.subr.mxu0 0.0
      %1076 = vmatpush1.msra.mxu0 0.0
      %1077 = vmatprep.subr.mxu0 0.0
      %1078 = vmatpush1.msra.mxu0 0.0
      %1079 = vmatprep.subr.mxu0 0.0
      %1080 = vmatpush1.msra.mxu0 0.0
      %1081 = vmatprep.subr.mxu0 0.0
      %1082 = vmatpush1.msra.mxu0 0.0
      %1083 = vmatprep.subr.mxu0 0.0
      %1084 = vmatpush1.msra.mxu0 0.0
      %1085 = vmatprep.subr.mxu0 0.0
      %1086 = vmatpush1.msra.mxu0 0.0
      %1087 = vmatprep.subr.mxu0 0.0
      %1088 = vmatpush1.msra.mxu0 0.0
      %1089 = vmatprep.subr.mxu0 0.0
      %1090 = vmatpush1.msra.mxu0 0.0
      %1091 = vmatprep.subr.mxu0 0.0
      %1092 = vmatpush1.msra.mxu0 0.0
      %1093 = vmatprep.subr.mxu0 0.0
      %1094 = vmatpush1.msra.mxu0 0.0
      %1095 = vmatprep.subr.mxu0 0.0
      %1096 = vmatpush1.msra.mxu0 0.0
      %1097 = vmatprep.subr.mxu0 0.0
      %1098 = vmatpush1.msra.mxu0 0.0
      %1099 = vmatprep.subr.mxu0 0.0
      %1100 = vmatpush1.msra.mxu0 0.0
      %1101 = vmatprep.subr.mxu0 0.0
      %1102 = vmatpush1.msra.mxu0 0.0
      %1103 = vmatprep.subr.mxu0 0.0
      %1104 = vmatpush1.msra.mxu0 0.0
      %1105 = vmatprep.subr.mxu0 0.0
      %1106 = vmatpush1.msra.mxu0 0.0
      %1107 = vmatprep.subr.mxu0 0.0
      %1108 = vmatpush1.msra.mxu0 0.0
      %1109 = vmatprep.subr.mxu0 0.0
      %1110 = vmatpush1.msra.mxu0 0.0
      %1111 = vmatprep.subr.mxu0 0.0
      %1112 = vmatpush1.msra.mxu0 0.0
      %1113 = vmatprep.subr.mxu0 0.0
      %1114 = vmatpush1.msra.mxu0 0.0
      %1115 = vmatprep.subr.mxu0 0.0
      %1116 = vmatpush1.msra.mxu0 0.0
      %1117 = vmatprep.subr.mxu0 0.0
      %1118 = vmatpush1.msra.mxu0 0.0
      %1119 = vmatprep.mubr.f32.mxu0 0.0
      %1120 = vmatmul.mubr.f32.gmra.mrb[0].mxu0 %v1049
      %v1121 = vpop.f32.mrb[0].mxu0
      %v1122 = vadd.f32 0.0, %v1121
      %v1123 = vpop.f32.mrb[0].mxu0
      %v1124 = vadd.f32 0.0, %v1123
      %1125 = vmatprep.mubr.f32.mxu0 0.0
      %1126 = vmatmul.mubr.f32.gmra.mrb[0].mxu0 %v1051
      %v1127 = vpop.f32.mrb[0].mxu0
      %v1128 = vadd.f32 0.0, %v1127
      %v1129 = vpop.f32.mrb[0].mxu0
      %v1130 = vadd.f32 0.0, %v1129
      %1131 = vmatprep.mubr.f32.mxu0 0.0
      %1132 = vmatmul.mubr.f32.gmra.mrb[0].mxu0 %v1053
      %v1133 = vpop.f32.mrb[0].mxu0
      %v1134 = vadd.f32 0.0, %v1133
      %v1135 = vpop.f32.mrb[0].mxu0
      %v1136 = vadd.f32 0.0, %v1135
      %1137 = vdwg.mxu0
      %v1138 = vadd.f32 %v1006, %v1122
      %v1139 = vadd.f32 %v1008, %v1124
      %v1140 = vadd.f32 %v1012, %v1128
      %v1141 = vadd.f32 %v1014, %v1130
      %v1142 = vadd.f32 %v1018, %v1134
      %v1143 = vadd.f32 %v1020, %v1136
      %v1144 = vld [vmem:[%s2] sm:$0x3]
      %v1146 = vlaneseq
      %v1147 = vshrl.u32 %v1146, 7
      %v1148 = vsub.s32 0, %v1147
      %v1149 = vrot.slane %v1144, %v1148
      %v1150 = vlaneseq
      %v1151 = vshrl.u32 %v1150, 7
      %v1152 = vsub.s32 1, %v1151
      %v1153 = vrot.slane %v1144, %v1152
      %v1156 = vadd.f32 %v1138, %v1149
      %v1157 = vadd.f32 %v1139, %v1153
      %v1158 = vadd.f32 %v1140, %v1149
      %v1159 = vadd.f32 %v1141, %v1153
      %v1160 = vadd.f32 %v1142, %v1149
      %v1161 = vadd.f32 %v1143, %v1153
      %v1162 = vmax.f32 %v1156, 0.0
      %v1163 = vmax.f32 %v1157, 0.0
      %v1164 = vmax.f32 %v1158, 0.0
      %v1165 = vmax.f32 %v1159, 0.0
      %v1166 = vmax.f32 %v1160, 0.0
      %v1167 = vmax.f32 %v1161, 0.0
      %v1168 = vld [vmem:[%s3] sm:$0xff]
      %v1169 = vld [vmem:[%s3 + $0x8] sm:$0xff]
      %v1170 = vld [vmem:[%s3 + $0x10] sm:$0xff]
      %v1171 = vld [vmem:[%s3 + $0x18] sm:$0xff]
      %v1172 = vld [vmem:[%s3 + $0x20] sm:$0xff]
      %v1173 = vld [vmem:[%s3 + $0x28] sm:$0xff]
      %v1174 = vld [vmem:[%s3 + $0x30] sm:$0xff]
      %v1175 = vld [vmem:[%s3 + $0x38] sm:$0xff]
      %v1176 = vld [vmem:[%s3 + $0x40] sm:$0xff]
      %v1177 = vld [vmem:[%s3 + $0x48] sm:$0xff]
      %v1178 = vld [vmem:[%s3 + $0x50] sm:$0xff]
      %v1179 = vld [vmem:[%s3 + $0x58] sm:$0xff]
      %v1180 = vld [vmem:[%s3 + $0x60] sm:$0xff]
      %v1181 = vld [vmem:[%s3 + $0x68] sm:$0xff]
      %v1182 = vld [vmem:[%s3 + $0x70] sm:$0xff]
      %v1183 = vld [vmem:[%s3 + $0x78] sm:$0xff]
      %v1184 = vld [vmem:[%s3 + $0x80] sm:$0xff]
      %v1185 = vld [vmem:[%s3 + $0x88] sm:$0xff]
      %s1186 = scalar_lea.vmem %s3, 144
      %v1187 = vld [vmem:[%s1186] sm:$0xff]
      %v1188 = vld [vmem:[%s1186 + $0x8] sm:$0xff]
      %v1189 = vld [vmem:[%s1186 + $0x10] sm:$0xff]
      %v1190 = vld [vmem:[%s1186 + $0x18] sm:$0xff]
      %v1191 = vld [vmem:[%s1186 + $0x20] sm:$0xff]
      %v1192 = vld [vmem:[%s1186 + $0x28] sm:$0xff]
      %v1193 = vld [vmem:[%s1186 + $0x30] sm:$0xff]
      %v1194 = vld [vmem:[%s1186 + $0x38] sm:$0xff]
      %v1195 = vld [vmem:[%s1186 + $0x40] sm:$0xff]
      %v1196 = vld [vmem:[%s1186 + $0x48] sm:$0xff]
      %v1197 = vld [vmem:[%s1186 + $0x50] sm:$0xff]
      %v1198 = vld [vmem:[%s1186 + $0x58] sm:$0xff]
      %v1199 = vld [vmem:[%s1186 + $0x60] sm:$0xff]
      %v1200 = vld [vmem:[%s1186 + $0x68] sm:$0xff]
      %v1201 = vld [vmem:[%s1186 + $0x70] sm:$0xff]
      %v1202 = vld [vmem:[%s1186 + $0x78] sm:$0xff]
      %v1203 = vld [vmem:[%s1186 + $0x80] sm:$0xff]
      %v1204 = vld [vmem:[%s1186 + $0x88] sm:$0xff]
      %v1211 = vrot.slane %v1162, 1
      %v1212 = vrot.slane %v1164, 1
      %v1213 = vsel %vm837, %v1211, %v1212
      %v1214 = vrot.slane %v1163, 1
      %v1215 = vrot.slane %v1165, 1
      %v1216 = vsel %vm837, %v1214, %v1215
      %v1217 = vrot.slane %v1166, 1
      %v1218 = vsel %vm837, %v1212, %v1217
      %v1219 = vrot.slane %v1167, 1
      %v1220 = vsel %vm837, %v1215, %v1219
      %vm1223 = vcmask 130048
      %v1224 = vsel %vm1223, %v1216, 0
      %v1226 = vsel %vm1223, %v1220, 0
      %1228 = vmatprep.subr.mxu0 0.0
      %1229 = vmatpush1.msra.mxu0 %v1187
      %1230 = vmatprep.subr.mxu0 0.0
      %1231 = vmatpush1.msra.mxu0 %v1188
      %1232 = vmatprep.subr.mxu0 0.0
      %1233 = vmatpush1.msra.mxu0 %v1189
      %1234 = vmatprep.subr.mxu0 0.0
      %1235 = vmatpush1.msra.mxu0 %v1190
      %1236 = vmatprep.subr.mxu0 0.0
      %1237 = vmatpush1.msra.mxu0 %v1191
      %1238 = vmatprep.subr.mxu0 0.0
      %1239 = vmatpush1.msra.mxu0 %v1192
      %1240 = vmatprep.subr.mxu0 0.0
      %1241 = vmatpush1.msra.mxu0 %v1193
      %1242 = vmatprep.subr.mxu0 0.0
      %1243 = vmatpush1.msra.mxu0 %v1194
      %1244 = vmatprep.subr.mxu0 0.0
      %1245 = vmatpush1.msra.mxu0 %v1195
      %1246 = vmatprep.subr.mxu0 0.0
      %1247 = vmatpush1.msra.mxu0 %v1196
      %1248 = vmatprep.subr.mxu0 0.0
      %1249 = vmatpush1.msra.mxu0 %v1197
      %1250 = vmatprep.subr.mxu0 0.0
      %1251 = vmatpush1.msra.mxu0 %v1198
      %1252 = vmatprep.subr.mxu0 0.0
      %1253 = vmatpush1.msra.mxu0 %v1199
      %1254 = vmatprep.subr.mxu0 0.0
      %1255 = vmatpush1.msra.mxu0 %v1200
      %1256 = vmatprep.subr.mxu0 0.0
      %1257 = vmatpush1.msra.mxu0 %v1201
      %1258 = vmatprep.subr.mxu0 0.0
      %1259 = vmatpush1.msra.mxu0 %v1202
      %1260 = vmatprep.subr.mxu0 0.0
      %1261 = vmatpush1.msra.mxu0 %v1203
      %1262 = vmatprep.subr.mxu0 0.0
      %1263 = vmatpush1.msra.mxu0 %v1204
      %1264 = vmatprep.subr.mxu0 0.0
      %1265 = vmatpush1.msra.mxu0 0.0
      %1266 = vmatprep.subr.mxu0 0.0
      %1267 = vmatpush1.msra.mxu0 0.0
      %1268 = vmatprep.subr.mxu0 0.0
      %1269 = vmatpush1.msra.mxu0 0.0
      %1270 = vmatprep.subr.mxu0 0.0
      %1271 = vmatpush1.msra.mxu0 0.0
      %1272 = vmatprep.subr.mxu0 0.0
      %1273 = vmatpush1.msra.mxu0 0.0
      %1274 = vmatprep.subr.mxu0 0.0
      %1275 = vmatpush1.msra.mxu0 0.0
      %1276 = vmatprep.subr.mxu0 0.0
      %1277 = vmatpush1.msra.mxu0 0.0
      %1278 = vmatprep.subr.mxu0 0.0
      %1279 = vmatpush1.msra.mxu0 0.0
      %1280 = vmatprep.subr.mxu0 0.0
      %1281 = vmatpush1.msra.mxu0 0.0
      %1282 = vmatprep.subr.mxu0 0.0
      %1283 = vmatpush1.msra.mxu0 0.0
      %1284 = vmatprep.subr.mxu0 0.0
      %1285 = vmatpush1.msra.mxu0 0.0
      %1286 = vmatprep.subr.mxu0 0.0
      %1287 = vmatpush1.msra.mxu0 0.0
      %1288 = vmatprep.subr.mxu0 0.0
      %1289 = vmatpush1.msra.mxu0 0.0
      %1290 = vmatprep.subr.mxu0 0.0
      %1291 = vmatpush1.msra.mxu0 0.0
      %1292 = vmatprep.mubr.f32.mxu0 %v1224
      %1293 = vmatmul.mubr.f32.gmra.mrb[0].mxu0 %v1213
      %v1294 = vpop.f32.mrb[0].mxu0
      %v1295 = vadd.f32 0.0, %v1294
      %v1296 = vpop.f32.mrb[0].mxu0
      %1297 = vmatprep.mubr.f32.mxu0 %v1226
      %1298 = vmatmul.mubr.f32.gmra.mrb[0].mxu0 %v1218
      %v1299 = vpop.f32.mrb[0].mxu0
      %v1300 = vadd.f32 0.0, %v1299
      %v1301 = vpop.f32.mrb[0].mxu0
      %1302 = vdwg.mxu0
      %v1303 = vsel %vm1223, %v1163, 0
      %v1305 = vsel %vm1223, %v1165, 0
      %1307 = vmatprep.subr.mxu0 0.0
      %1308 = vmatpush1.msra.mxu0 %v1168
      %1309 = vmatprep.subr.mxu0 0.0
      %1310 = vmatpush1.msra.mxu0 %v1169
      %1311 = vmatprep.subr.mxu0 0.0
      %1312 = vmatpush1.msra.mxu0 %v1170
      %1313 = vmatprep.subr.mxu0 0.0
      %1314 = vmatpush1.msra.mxu0 %v1171
      %1315 = vmatprep.subr.mxu0 0.0
      %1316 = vmatpush1.msra.mxu0 %v1172
      %1317 = vmatprep.subr.mxu0 0.0
      %1318 = vmatpush1.msra.mxu0 %v1173
      %1319 = vmatprep.subr.mxu0 0.0
      %1320 = vmatpush1.msra.mxu0 %v1174
      %1321 = vmatprep.subr.mxu0 0.0
      %1322 = vmatpush1.msra.mxu0 %v1175
      %1323 = vmatprep.subr.mxu0 0.0
      %1324 = vmatpush1.msra.mxu0 %v1176
      %1325 = vmatprep.subr.mxu0 0.0
      %1326 = vmatpush1.msra.mxu0 %v1177
      %1327 = vmatprep.subr.mxu0 0.0
      %1328 = vmatpush1.msra.mxu0 %v1178
      %1329 = vmatprep.subr.mxu0 0.0
      %1330 = vmatpush1.msra.mxu0 %v1179
      %1331 = vmatprep.subr.mxu0 0.0
      %1332 = vmatpush1.msra.mxu0 %v1180
      %1333 = vmatprep.subr.mxu0 0.0
      %1334 = vmatpush1.msra.mxu0 %v1181
      %1335 = vmatprep.subr.mxu0 0.0
      %1336 = vmatpush1.msra.mxu0 %v1182
      %1337 = vmatprep.subr.mxu0 0.0
      %1338 = vmatpush1.msra.mxu0 %v1183
      %1339 = vmatprep.subr.mxu0 0.0
      %1340 = vmatpush1.msra.mxu0 %v1184
      %1341 = vmatprep.subr.mxu0 0.0
      %1342 = vmatpush1.msra.mxu0 %v1185
      %1343 = vmatprep.subr.mxu0 0.0
      %1344 = vmatpush1.msra.mxu0 0.0
      %1345 = vmatprep.subr.mxu0 0.0
      %1346 = vmatpush1.msra.mxu0 0.0
      %1347 = vmatprep.subr.mxu0 0.0
      %1348 = vmatpush1.msra.mxu0 0.0
      %1349 = vmatprep.subr.mxu0 0.0
      %1350 = vmatpush1.msra.mxu0 0.0
      %1351 = vmatprep.subr.mxu0 0.0
      %1352 = vmatpush1.msra.mxu0 0.0
      %1353 = vmatprep.subr.mxu0 0.0
      %1354 = vmatpush1.msra.mxu0 0.0
      %1355 = vmatprep.subr.mxu0 0.0
      %1356 = vmatpush1.msra.mxu0 0.0
      %1357 = vmatprep.subr.mxu0 0.0
      %1358 = vmatpush1.msra.mxu0 0.0
      %1359 = vmatprep.subr.mxu0 0.0
      %1360 = vmatpush1.msra.mxu0 0.0
      %1361 = vmatprep.subr.mxu0 0.0
      %1362 = vmatpush1.msra.mxu0 0.0
      %1363 = vmatprep.subr.mxu0 0.0
      %1364 = vmatpush1.msra.mxu0 0.0
      %1365 = vmatprep.subr.mxu0 0.0
      %1366 = vmatpush1.msra.mxu0 0.0
      %1367 = vmatprep.subr.mxu0 0.0
      %1368 = vmatpush1.msra.mxu0 0.0
      %1369 = vmatprep.subr.mxu0 0.0
      %1370 = vmatpush1.msra.mxu0 0.0
      %1371 = vmatprep.mubr.f32.mxu0 %v1303
      %1372 = vmatmul.mubr.f32.gmra.mrb[0].mxu0 %v1162
      %v1373 = vpop.f32.mrb[0].mxu0
      %v1374 = vadd.f32 %v1295, %v1373
      %v1375 = vpop.f32.mrb[0].mxu0
      %1376 = vmatprep.mubr.f32.mxu0 %v1305
      %1377 = vmatmul.mubr.f32.gmra.mrb[0].mxu0 %v1164
      %v1378 = vpop.f32.mrb[0].mxu0
      %v1379 = vadd.f32 %v1300, %v1378
      %v1380 = vpop.f32.mrb[0].mxu0
      %1381 = vdwg.mxu0
      %s1382 = scalar_lea.vmem %s3, 288
      %v1383 = vld [vmem:[%s1382] sm:$0xff]
      %v1384 = vld [vmem:[%s1382 + $0x8] sm:$0xff]
      %v1385 = vld [vmem:[%s1382 + $0x10] sm:$0xff]
      %v1386 = vld [vmem:[%s1382 + $0x18] sm:$0xff]
      %v1387 = vld [vmem:[%s1382 + $0x20] sm:$0xff]
      %v1388 = vld [vmem:[%s1382 + $0x28] sm:$0xff]
      %v1389 = vld [vmem:[%s1382 + $0x30] sm:$0xff]
      %v1390 = vld [vmem:[%s1382 + $0x38] sm:$0xff]
      %v1391 = vld [vmem:[%s1382 + $0x40] sm:$0xff]
      %v1392 = vld [vmem:[%s1382 + $0x48] sm:$0xff]
      %v1393 = vld [vmem:[%s1382 + $0x50] sm:$0xff]
      %v1394 = vld [vmem:[%s1382 + $0x58] sm:$0xff]
      %v1395 = vld [vmem:[%s1382 + $0x60] sm:$0xff]
      %v1396 = vld [vmem:[%s1382 + $0x68] sm:$0xff]
      %v1397 = vld [vmem:[%s1382 + $0x70] sm:$0xff]
      %v1398 = vld [vmem:[%s1382 + $0x78] sm:$0xff]
      %v1399 = vld [vmem:[%s1382 + $0x80] sm:$0xff]
      %v1400 = vld [vmem:[%s1382 + $0x88] sm:$0xff]
      %v1401 = vrot.slane %v1162, 2
      %v1402 = vrot.slane %v1164, 2
      %v1403 = vsel %vm1043, %v1401, %v1402
      %v1404 = vrot.slane %v1163, 2
      %v1405 = vrot.slane %v1165, 2
      %v1406 = vsel %vm1043, %v1404, %v1405
      %v1407 = vrot.slane %v1166, 2
      %v1408 = vsel %vm1043, %v1402, %v1407
      %v1409 = vrot.slane %v1167, 2
      %v1410 = vsel %vm1043, %v1405, %v1409
      %v1413 = vsel %vm1223, %v1406, 0
      %v1415 = vsel %vm1223, %v1410, 0
      %1417 = vmatprep.subr.mxu0 0.0
      %1418 = vmatpush1.msra.mxu0 %v1383
      %1419 = vmatprep.subr.mxu0 0.0
      %1420 = vmatpush1.msra.mxu0 %v1384
      %1421 = vmatprep.subr.mxu0 0.0
      %1422 = vmatpush1.msra.mxu0 %v1385
      %1423 = vmatprep.subr.mxu0 0.0
      %1424 = vmatpush1.msra.mxu0 %v1386
      %1425 = vmatprep.subr.mxu0 0.0
      %1426 = vmatpush1.msra.mxu0 %v1387
      %1427 = vmatprep.subr.mxu0 0.0
      %1428 = vmatpush1.msra.mxu0 %v1388
      %1429 = vmatprep.subr.mxu0 0.0
      %1430 = vmatpush1.msra.mxu0 %v1389
      %1431 = vmatprep.subr.mxu0 0.0
      %1432 = vmatpush1.msra.mxu0 %v1390
      %1433 = vmatprep.subr.mxu0 0.0
      %1434 = vmatpush1.msra.mxu0 %v1391
      %1435 = vmatprep.subr.mxu0 0.0
      %1436 = vmatpush1.msra.mxu0 %v1392
      %1437 = vmatprep.subr.mxu0 0.0
      %1438 = vmatpush1.msra.mxu0 %v1393
      %1439 = vmatprep.subr.mxu0 0.0
      %1440 = vmatpush1.msra.mxu0 %v1394
      %1441 = vmatprep.subr.mxu0 0.0
      %1442 = vmatpush1.msra.mxu0 %v1395
      %1443 = vmatprep.subr.mxu0 0.0
      %1444 = vmatpush1.msra.mxu0 %v1396
      %1445 = vmatprep.subr.mxu0 0.0
      %1446 = vmatpush1.msra.mxu0 %v1397
      %1447 = vmatprep.subr.mxu0 0.0
      %1448 = vmatpush1.msra.mxu0 %v1398
      %1449 = vmatprep.subr.mxu0 0.0
      %1450 = vmatpush1.msra.mxu0 %v1399
      %1451 = vmatprep.subr.mxu0 0.0
      %1452 = vmatpush1.msra.mxu0 %v1400
      %1453 = vmatprep.subr.mxu0 0.0
      %1454 = vmatpush1.msra.mxu0 0.0
      %1455 = vmatprep.subr.mxu0 0.0
      %1456 = vmatpush1.msra.mxu0 0.0
      %1457 = vmatprep.subr.mxu0 0.0
      %1458 = vmatpush1.msra.mxu0 0.0
      %1459 = vmatprep.subr.mxu0 0.0
      %1460 = vmatpush1.msra.mxu0 0.0
      %1461 = vmatprep.subr.mxu0 0.0
      %1462 = vmatpush1.msra.mxu0 0.0
      %1463 = vmatprep.subr.mxu0 0.0
      %1464 = vmatpush1.msra.mxu0 0.0
      %1465 = vmatprep.subr.mxu0 0.0
      %1466 = vmatpush1.msra.mxu0 0.0
      %1467 = vmatprep.subr.mxu0 0.0
      %1468 = vmatpush1.msra.mxu0 0.0
      %1469 = vmatprep.subr.mxu0 0.0
      %1470 = vmatpush1.msra.mxu0 0.0
      %1471 = vmatprep.subr.mxu0 0.0
      %1472 = vmatpush1.msra.mxu0 0.0
      %1473 = vmatprep.subr.mxu0 0.0
      %1474 = vmatpush1.msra.mxu0 0.0
      %1475 = vmatprep.subr.mxu0 0.0
      %1476 = vmatpush1.msra.mxu0 0.0
      %1477 = vmatprep.subr.mxu0 0.0
      %1478 = vmatpush1.msra.mxu0 0.0
      %1479 = vmatprep.subr.mxu0 0.0
      %1480 = vmatpush1.msra.mxu0 0.0
      %1481 = vmatprep.mubr.f32.mxu0 %v1413
      %1482 = vmatmul.mubr.f32.gmra.mrb[0].mxu0 %v1403
      %v1483 = vpop.f32.mrb[0].mxu0
      %v1484 = vadd.f32 0.0, %v1483
      %v1485 = vpop.f32.mrb[0].mxu0
      %1486 = vmatprep.mubr.f32.mxu0 %v1415
      %1487 = vmatmul.mubr.f32.gmra.mrb[0].mxu0 %v1408
      %v1488 = vpop.f32.mrb[0].mxu0
      %v1489 = vadd.f32 0.0, %v1488
      %v1490 = vpop.f32.mrb[0].mxu0
      %1491 = vdwg.mxu0
      %v1492 = vadd.f32 %v1374, %v1484
      %v1493 = vadd.f32 %v1379, %v1489
      %v1494 = vld [vmem:[%s4] sm:$0x1]
      %v1496 = vlaneseq
      %v1497 = vshrl.u32 %v1496, 7
      %v1498 = vsub.s32 0, %v1497
      %v1499 = vrot.slane %v1494, %v1498
      %v1501 = vadd.f32 %v1492, %v1499
      %v1502 = vadd.f32 %v1493, %v1499
      %v1503 = vld [vmem:[%s5] sm:$0xff]
      %v1504 = vld [vmem:[%s5 + $0x8] sm:$0xff]
      %v1505 = vld [vmem:[%s5 + $0x10] sm:$0xff]
      %v1506 = vld [vmem:[%s5 + $0x18] sm:$0xff]
      %v1507 = vld [vmem:[%s5 + $0x20] sm:$0xff]
      %v1508 = vld [vmem:[%s5 + $0x28] sm:$0xff]
      %v1509 = vld [vmem:[%s5 + $0x30] sm:$0xff]
      %v1510 = vld [vmem:[%s5 + $0x38] sm:$0xff]
      %v1511 = vld [vmem:[%s5 + $0x40] sm:$0xff]
      %v1512 = vld [vmem:[%s5 + $0x48] sm:$0xff]
      %v1513 = vld [vmem:[%s6] sm:$0x1]
      %v1515 = vlaneseq
      %v1516 = vshrl.u32 %v1515, 7
      %v1517 = vsub.s32 0, %v1516
      %v1518 = vrot.slane %v1513, %v1517
      %1520 = vmatprep.subr.mxu0 0.0
      %1521 = vmatpush1.msra.mxu0 %v1503
      %1522 = vmatprep.subr.mxu0 0.0
      %1523 = vmatpush1.msra.mxu0 %v1504
      %1524 = vmatprep.subr.mxu0 0.0
      %1525 = vmatpush1.msra.mxu0 %v1505
      %1526 = vmatprep.subr.mxu0 0.0
      %1527 = vmatpush1.msra.mxu0 %v1506
      %1528 = vmatprep.subr.mxu0 0.0
      %1529 = vmatpush1.msra.mxu0 %v1507
      %1530 = vmatprep.subr.mxu0 0.0
      %1531 = vmatpush1.msra.mxu0 %v1508
      %1532 = vmatprep.subr.mxu0 0.0
      %1533 = vmatpush1.msra.mxu0 %v1509
      %1534 = vmatprep.subr.mxu0 0.0
      %1535 = vmatpush1.msra.mxu0 %v1510
      %1536 = vmatprep.subr.mxu0 0.0
      %1537 = vmatpush1.msra.mxu0 %v1511
      %1538 = vmatprep.subr.mxu0 0.0
      %1539 = vmatpush1.msra.mxu0 %v1512
      %1540 = vmatprep.subr.mxu0 0.0
      %1541 = vmatpush1.msra.mxu0 0.0
      %1542 = vmatprep.subr.mxu0 0.0
      %1543 = vmatpush1.msra.mxu0 0.0
      %1544 = vmatprep.subr.mxu0 0.0
      %1545 = vmatpush1.msra.mxu0 0.0
      %1546 = vmatprep.subr.mxu0 0.0
      %1547 = vmatpush1.msra.mxu0 0.0
      %1548 = vmatprep.subr.mxu0 0.0
      %1549 = vmatpush1.msra.mxu0 0.0
      %1550 = vmatprep.subr.mxu0 0.0
      %1551 = vmatpush1.msra.mxu0 0.0
      %1552 = vmatprep.subr.mxu0 0.0
      %1553 = vmatpush1.msra.mxu0 0.0
      %1554 = vmatprep.subr.mxu0 0.0
      %1555 = vmatpush1.msra.mxu0 0.0
      %1556 = vmatprep.subr.mxu0 0.0
      %1557 = vmatpush1.msra.mxu0 0.0
      %1558 = vmatprep.subr.mxu0 0.0
      %1559 = vmatpush1.msra.mxu0 0.0
      %1560 = vmatprep.subr.mxu0 0.0
      %1561 = vmatpush1.msra.mxu0 0.0
      %1562 = vmatprep.subr.mxu0 0.0
      %1563 = vmatpush1.msra.mxu0 0.0
      %1564 = vmatprep.subr.mxu0 0.0
      %1565 = vmatpush1.msra.mxu0 0.0
      %1566 = vmatprep.subr.mxu0 0.0
      %1567 = vmatpush1.msra.mxu0 0.0
      %1568 = vmatprep.subr.mxu0 0.0
      %1569 = vmatpush1.msra.mxu0 0.0
      %1570 = vmatprep.subr.mxu0 0.0
      %1571 = vmatpush1.msra.mxu0 0.0
      %1572 = vmatprep.subr.mxu0 0.0
      %1573 = vmatpush1.msra.mxu0 0.0
      %1574 = vmatprep.subr.mxu0 0.0
      %1575 = vmatpush1.msra.mxu0 0.0
      %1576 = vmatprep.subr.mxu0 0.0
      %1577 = vmatpush1.msra.mxu0 0.0
      %1578 = vmatprep.subr.mxu0 0.0
      %1579 = vmatpush1.msra.mxu0 0.0
      %1580 = vmatprep.subr.mxu0 0.0
      %1581 = vmatpush1.msra.mxu0 0.0
      %1582 = vmatprep.subr.mxu0 0.0
      %1583 = vmatpush1.msra.mxu0 0.0
      %1584 = vmatprep.mubr.f32.mxu0 0.0
      %1585 = vmatmul.mubr.f32.gmra.mrb[0].mxu0 %v1049
      %v1586 = vpop.f32.mrb[0].mxu0
      %v1587 = vadd.f32 %v1518, %v1586
      %v1588 = vpop.f32.mrb[0].mxu0
      %1589 = vmatprep.mubr.f32.mxu0 0.0
      %1590 = vmatmul.mubr.f32.gmra.mrb[0].mxu0 %v1051
      %v1591 = vpop.f32.mrb[0].mxu0
      %v1592 = vadd.f32 %v1518, %v1591
      %v1593 = vpop.f32.mrb[0].mxu0
      %1594 = vdwg.mxu0
      %v1595 = vadd.f32 %v1501, %v1587
      %v1596 = vadd.f32 %v1502, %v1592
      %v1597 = vmax.f32 %v1595, 0.0
      %v1598 = vmax.f32 %v1596, 0.0
      %v1599 = vld [vmem:[%s7] sm:$0xff]
      %v1601 = vsel %vm1223, %v1599, 0
      %1603 = vmatprep.subr.mxu0 0.0
      %1604 = vmatpush1.msra.mxu0 %v1597
      %1605 = vmatprep.subr.mxu0 0.0
      %1606 = vmatpush1.msra.mxu0 %v1598
      %1607 = vmatprep.subr.mxu0 0.0
      %1608 = vmatpush1.msra.mxu0 0.0
      %1609 = vmatprep.subr.mxu0 0.0
      %1610 = vmatpush1.msra.mxu0 0.0
      %1611 = vmatprep.subr.mxu0 0.0
      %1612 = vmatpush1.msra.mxu0 0.0
      %1613 = vmatprep.subr.mxu0 0.0
      %1614 = vmatpush1.msra.mxu0 0.0
      %1615 = vmatprep.subr.mxu0 0.0
      %1616 = vmatpush1.msra.mxu0 0.0
      %1617 = vmatprep.subr.mxu0 0.0
      %1618 = vmatpush1.msra.mxu0 0.0
      %1619 = vmatprep.subr.mxu0 0.0
      %1620 = vmatpush1.msra.mxu0 0.0
      %1621 = vmatprep.subr.mxu0 0.0
      %1622 = vmatpush1.msra.mxu0 0.0
      %1623 = vmatprep.subr.mxu0 0.0
      %1624 = vmatpush1.msra.mxu0 0.0
      %1625 = vmatprep.subr.mxu0 0.0
      %1626 = vmatpush1.msra.mxu0 0.0
      %1627 = vmatprep.subr.mxu0 0.0
      %1628 = vmatpush1.msra.mxu0 0.0
      %1629 = vmatprep.subr.mxu0 0.0
      %1630 = vmatpush1.msra.mxu0 0.0
      %1631 = vmatprep.subr.mxu0 0.0
      %1632 = vmatpush1.msra.mxu0 0.0
      %1633 = vmatprep.subr.mxu0 0.0
      %1634 = vmatpush1.msra.mxu0 0.0
      %1635 = vmatprep.subr.mxu0 0.0
      %1636 = vmatpush1.msra.mxu0 0.0
      %1637 = vmatprep.subr.mxu0 0.0
      %1638 = vmatpush1.msra.mxu0 0.0
      %1639 = vmatprep.subr.mxu0 0.0
      %1640 = vmatpush1.msra.mxu0 0.0
      %1641 = vmatprep.subr.mxu0 0.0
      %1642 = vmatpush1.msra.mxu0 0.0
      %1643 = vmatprep.subr.mxu0 0.0
      %1644 = vmatpush1.msra.mxu0 0.0
      %1645 = vmatprep.subr.mxu0 0.0
      %1646 = vmatpush1.msra.mxu0 0.0
      %1647 = vmatprep.subr.mxu0 0.0
      %1648 = vmatpush1.msra.mxu0 0.0
      %1649 = vmatprep.subr.mxu0 0.0
      %1650 = vmatpush1.msra.mxu0 0.0
      %1651 = vmatprep.subr.mxu0 0.0
      %1652 = vmatpush1.msra.mxu0 0.0
      %1653 = vmatprep.subr.mxu0 0.0
      %1654 = vmatpush1.msra.mxu0 0.0
      %1655 = vmatprep.subr.mxu0 0.0
      %1656 = vmatpush1.msra.mxu0 0.0
      %1657 = vmatprep.subr.mxu0 0.0
      %1658 = vmatpush1.msra.mxu0 0.0
      %1659 = vmatprep.subr.mxu0 0.0
      %1660 = vmatpush1.msra.mxu0 0.0
      %1661 = vmatprep.subr.mxu0 0.0
      %1662 = vmatpush1.msra.mxu0 0.0
      %1663 = vmatprep.subr.mxu0 0.0
      %1664 = vmatpush1.msra.mxu0 0.0
      %1665 = vmatprep.subr.mxu0 0.0
      %1666 = vmatpush1.msra.mxu0 0.0
      %1667 = vmatprep.mubr.f32.mxu0 0.0
      %1668 = vmatmul.mubr.f32.gmra.mrb[0].mxu0 %v1601
      %v1669 = vpop.f32.mrb[0].mxu0
      %v1670 = vadd.f32 0.0, %v1669
      %v1671 = vpop.f32.mrb[0].mxu0
      %1672 = vdwg.mxu0
      %s1673 = scalar_lea.vmem %s7, 8
      %v1674 = vld [vmem:[%s1673] sm:$0xff]
      %v1676 = vsel %vm1223, %v1674, 0
      %1678 = vmatprep.subr.mxu0 0.0
      %1679 = vmatpush1.msra.mxu0 %v1597
      %1680 = vmatprep.subr.mxu0 0.0
      %1681 = vmatpush1.msra.mxu0 %v1598
      %1682 = vmatprep.subr.mxu0 0.0
      %1683 = vmatpush1.msra.mxu0 0.0
      %1684 = vmatprep.subr.mxu0 0.0
      %1685 = vmatpush1.msra.mxu0 0.0
      %1686 = vmatprep.subr.mxu0 0.0
      %1687 = vmatpush1.msra.mxu0 0.0
      %1688 = vmatprep.subr.mxu0 0.0
      %1689 = vmatpush1.msra.mxu0 0.0
      %1690 = vmatprep.subr.mxu0 0.0
      %1691 = vmatpush1.msra.mxu0 0.0
      %1692 = vmatprep.subr.mxu0 0.0
      %1693 = vmatpush1.msra.mxu0 0.0
      %1694 = vmatprep.subr.mxu0 0.0
      %1695 = vmatpush1.msra.mxu0 0.0
      %1696 = vmatprep.subr.mxu0 0.0
      %1697 = vmatpush1.msra.mxu0 0.0
      %1698 = vmatprep.subr.mxu0 0.0
      %1699 = vmatpush1.msra.mxu0 0.0
      %1700 = vmatprep.subr.mxu0 0.0
      %1701 = vmatpush1.msra.mxu0 0.0
      %1702 = vmatprep.subr.mxu0 0.0
      %1703 = vmatpush1.msra.mxu0 0.0
      %1704 = vmatprep.subr.mxu0 0.0
      %1705 = vmatpush1.msra.mxu0 0.0
      %1706 = vmatprep.subr.mxu0 0.0
      %1707 = vmatpush1.msra.mxu0 0.0
      %1708 = vmatprep.subr.mxu0 0.0
      %1709 = vmatpush1.msra.mxu0 0.0
      %1710 = vmatprep.subr.mxu0 0.0
      %1711 = vmatpush1.msra.mxu0 0.0
      %1712 = vmatprep.subr.mxu0 0.0
      %1713 = vmatpush1.msra.mxu0 0.0
      %1714 = vmatprep.subr.mxu0 0.0
      %1715 = vmatpush1.msra.mxu0 0.0
      %1716 = vmatprep.subr.mxu0 0.0
      %1717 = vmatpush1.msra.mxu0 0.0
      %1718 = vmatprep.subr.mxu0 0.0
      %1719 = vmatpush1.msra.mxu0 0.0
      %1720 = vmatprep.subr.mxu0 0.0
      %1721 = vmatpush1.msra.mxu0 0.0
      %1722 = vmatprep.subr.mxu0 0.0
      %1723 = vmatpush1.msra.mxu0 0.0
      %1724 = vmatprep.subr.mxu0 0.0
      %1725 = vmatpush1.msra.mxu0 0.0
      %1726 = vmatprep.subr.mxu0 0.0
      %1727 = vmatpush1.msra.mxu0 0.0
      %1728 = vmatprep.subr.mxu0 0.0
      %1729 = vmatpush1.msra.mxu0 0.0
      %1730 = vmatprep.subr.mxu0 0.0
      %1731 = vmatpush1.msra.mxu0 0.0
      %1732 = vmatprep.subr.mxu0 0.0
      %1733 = vmatpush1.msra.mxu0 0.0
      %1734 = vmatprep.subr.mxu0 0.0
      %1735 = vmatpush1.msra.mxu0 0.0
      %1736 = vmatprep.subr.mxu0 0.0
      %1737 = vmatpush1.msra.mxu0 0.0
      %1738 = vmatprep.subr.mxu0 0.0
      %1739 = vmatpush1.msra.mxu0 0.0
      %1740 = vmatprep.subr.mxu0 0.0
      %1741 = vmatpush1.msra.mxu0 0.0
      %1742 = vmatprep.mubr.f32.mxu0 0.0
      %1743 = vmatmul.mubr.f32.gmra.mrb[0].mxu0 %v1676
      %v1744 = vpop.f32.mrb[0].mxu0
      %v1745 = vadd.f32 0.0, %v1744
      %v1746 = vpop.f32.mrb[0].mxu0
      %1747 = vdwg.mxu0
      %v1748 = vmax.f32 %v1670, %v1745
      %v1749 = vld [vmem:[%s8] sm:$0xff]
      %v1750 = vld [vmem:[%s8 + $0x8] sm:$0xff]
      %v1751 = vld [vmem:[%s8 + $0x10] sm:$0xff]
      %v1752 = vld [vmem:[%s8 + $0x18] sm:$0xff]
      %v1753 = vld [vmem:[%s8 + $0x20] sm:$0xff]
      %v1754 = vld [vmem:[%s8 + $0x28] sm:$0xff]
      %v1755 = vld [vmem:[%s8 + $0x30] sm:$0xff]
      %v1756 = vld [vmem:[%s8 + $0x38] sm:$0xff]
      %v1757 = vld [vmem:[%s8 + $0x40] sm:$0xff]
      %v1758 = vld [vmem:[%s8 + $0x48] sm:$0xff]
      %v1759 = vld [vmem:[%s8 + $0x50] sm:$0xff]
      %v1760 = vld [vmem:[%s8 + $0x58] sm:$0xff]
      %v1761 = vld [vmem:[%s8 + $0x60] sm:$0xff]
      %v1762 = vld [vmem:[%s8 + $0x68] sm:$0xff]
      %v1763 = vld [vmem:[%s8 + $0x70] sm:$0xff]
      %v1764 = vld [vmem:[%s8 + $0x78] sm:$0xff]
      %1765 = vmatprep.subr.mxu0 0.0
      %1766 = vmatpush1.msra.mxu0 %v1749
      %1767 = vmatprep.subr.mxu0 0.0
      %1768 = vmatpush1.msra.mxu0 %v1750
      %1769 = vmatprep.subr.mxu0 0.0
      %1770 = vmatpush1.msra.mxu0 %v1751
      %1771 = vmatprep.subr.mxu0 0.0
      %1772 = vmatpush1.msra.mxu0 %v1752
      %1773 = vmatprep.subr.mxu0 0.0
      %1774 = vmatpush1.msra.mxu0 %v1753
      %1775 = vmatprep.subr.mxu0 0.0
      %1776 = vmatpush1.msra.mxu0 %v1754
      %1777 = vmatprep.subr.mxu0 0.0
      %1778 = vmatpush1.msra.mxu0 %v1755
      %1779 = vmatprep.subr.mxu0 0.0
      %1780 = vmatpush1.msra.mxu0 %v1756
      %1781 = vmatprep.subr.mxu0 0.0
      %1782 = vmatpush1.msra.mxu0 %v1757
      %1783 = vmatprep.subr.mxu0 0.0
      %1784 = vmatpush1.msra.mxu0 %v1758
      %1785 = vmatprep.subr.mxu0 0.0
      %1786 = vmatpush1.msra.mxu0 %v1759
      %1787 = vmatprep.subr.mxu0 0.0
      %1788 = vmatpush1.msra.mxu0 %v1760
      %1789 = vmatprep.subr.mxu0 0.0
      %1790 = vmatpush1.msra.mxu0 %v1761
      %1791 = vmatprep.subr.mxu0 0.0
      %1792 = vmatpush1.msra.mxu0 %v1762
      %1793 = vmatprep.subr.mxu0 0.0
      %1794 = vmatpush1.msra.mxu0 %v1763
      %1795 = vmatprep.subr.mxu0 0.0
      %1796 = vmatpush1.msra.mxu0 %v1764
      %1797 = vmatprep.subr.mxu0 0.0
      %1798 = vmatpush1.msra.mxu0 0.0
      %1799 = vmatprep.subr.mxu0 0.0
      %1800 = vmatpush1.msra.mxu0 0.0
      %1801 = vmatprep.subr.mxu0 0.0
      %1802 = vmatpush1.msra.mxu0 0.0
      %1803 = vmatprep.subr.mxu0 0.0
      %1804 = vmatpush1.msra.mxu0 0.0
      %1805 = vmatprep.subr.mxu0 0.0
      %1806 = vmatpush1.msra.mxu0 0.0
      %1807 = vmatprep.subr.mxu0 0.0
      %1808 = vmatpush1.msra.mxu0 0.0
      %1809 = vmatprep.subr.mxu0 0.0
      %1810 = vmatpush1.msra.mxu0 0.0
      %1811 = vmatprep.subr.mxu0 0.0
      %1812 = vmatpush1.msra.mxu0 0.0
      %1813 = vmatprep.subr.mxu0 0.0
      %1814 = vmatpush1.msra.mxu0 0.0
      %1815 = vmatprep.subr.mxu0 0.0
      %1816 = vmatpush1.msra.mxu0 0.0
      %1817 = vmatprep.subr.mxu0 0.0
      %1818 = vmatpush1.msra.mxu0 0.0
      %1819 = vmatprep.subr.mxu0 0.0
      %1820 = vmatpush1.msra.mxu0 0.0
      %1821 = vmatprep.subr.mxu0 0.0
      %1822 = vmatpush1.msra.mxu0 0.0
      %1823 = vmatprep.subr.mxu0 0.0
      %1824 = vmatpush1.msra.mxu0 0.0
      %1825 = vmatprep.subr.mxu0 0.0
      %1826 = vmatpush1.msra.mxu0 0.0
      %1827 = vmatprep.subr.mxu0 0.0
      %1828 = vmatpush1.msra.mxu0 0.0
      %1829 = vmatprep.mubr.f32.mxu0 0.0
      %1830 = vmatmul.mubr.f32.gmra.mrb[0].mxu0 %v1748
      %v1831 = vpop.f32.mrb[0].mxu0
      %v1832 = vadd.f32 0.0, %v1831
      %v1833 = vpop.f32.mrb[0].mxu0
      %1834 = vdwg.mxu0
      %s1835 = scalar_lea.vmem %s8, 128
      %v1836 = vld [vmem:[%s1835] sm:$0xff]
      %v1837 = vld [vmem:[%s1835 + $0x8] sm:$0xff]
      %v1838 = vld [vmem:[%s1835 + $0x10] sm:$0xff]
      %v1839 = vld [vmem:[%s1835 + $0x18] sm:$0xff]
      %v1840 = vld [vmem:[%s1835 + $0x20] sm:$0xff]
      %v1841 = vld [vmem:[%s1835 + $0x28] sm:$0xff]
      %v1842 = vld [vmem:[%s1835 + $0x30] sm:$0xff]
      %v1843 = vld [vmem:[%s1835 + $0x38] sm:$0xff]
      %v1844 = vld [vmem:[%s1835 + $0x40] sm:$0xff]
      %v1845 = vld [vmem:[%s1835 + $0x48] sm:$0xff]
      %v1846 = vld [vmem:[%s1835 + $0x50] sm:$0xff]
      %v1847 = vld [vmem:[%s1835 + $0x58] sm:$0xff]
      %v1848 = vld [vmem:[%s1835 + $0x60] sm:$0xff]
      %v1849 = vld [vmem:[%s1835 + $0x68] sm:$0xff]
      %v1850 = vld [vmem:[%s1835 + $0x70] sm:$0xff]
      %v1851 = vld [vmem:[%s1835 + $0x78] sm:$0xff]
      %1852 = vmatprep.subr.mxu0 0.0
      %1853 = vmatpush1.msra.mxu0 %v1836
      %1854 = vmatprep.subr.mxu0 0.0
      %1855 = vmatpush1.msra.mxu0 %v1837
      %1856 = vmatprep.subr.mxu0 0.0
      %1857 = vmatpush1.msra.mxu0 %v1838
      %1858 = vmatprep.subr.mxu0 0.0
      %1859 = vmatpush1.msra.mxu0 %v1839
      %1860 = vmatprep.subr.mxu0 0.0
      %1861 = vmatpush1.msra.mxu0 %v1840
      %1862 = vmatprep.subr.mxu0 0.0
      %1863 = vmatpush1.msra.mxu0 %v1841
      %1864 = vmatprep.subr.mxu0 0.0
      %1865 = vmatpush1.msra.mxu0 %v1842
      %1866 = vmatprep.subr.mxu0 0.0
      %1867 = vmatpush1.msra.mxu0 %v1843
      %1868 = vmatprep.subr.mxu0 0.0
      %1869 = vmatpush1.msra.mxu0 %v1844
      %1870 = vmatprep.subr.mxu0 0.0
      %1871 = vmatpush1.msra.mxu0 %v1845
      %1872 = vmatprep.subr.mxu0 0.0
      %1873 = vmatpush1.msra.mxu0 %v1846
      %1874 = vmatprep.subr.mxu0 0.0
      %1875 = vmatpush1.msra.mxu0 %v1847
      %1876 = vmatprep.subr.mxu0 0.0
      %1877 = vmatpush1.msra.mxu0 %v1848
      %1878 = vmatprep.subr.mxu0 0.0
      %1879 = vmatpush1.msra.mxu0 %v1849
      %1880 = vmatprep.subr.mxu0 0.0
      %1881 = vmatpush1.msra.mxu0 %v1850
      %1882 = vmatprep.subr.mxu0 0.0
      %1883 = vmatpush1.msra.mxu0 %v1851
      %1884 = vmatprep.subr.mxu0 0.0
      %1885 = vmatpush1.msra.mxu0 0.0
      %1886 = vmatprep.subr.mxu0 0.0
      %1887 = vmatpush1.msra.mxu0 0.0
      %1888 = vmatprep.subr.mxu0 0.0
      %1889 = vmatpush1.msra.mxu0 0.0
      %1890 = vmatprep.subr.mxu0 0.0
      %1891 = vmatpush1.msra.mxu0 0.0
      %1892 = vmatprep.subr.mxu0 0.0
      %1893 = vmatpush1.msra.mxu0 0.0
      %1894 = vmatprep.subr.mxu0 0.0
      %1895 = vmatpush1.msra.mxu0 0.0
      %1896 = vmatprep.subr.mxu0 0.0
      %1897 = vmatpush1.msra.mxu0 0.0
      %1898 = vmatprep.subr.mxu0 0.0
      %1899 = vmatpush1.msra.mxu0 0.0
      %1900 = vmatprep.subr.mxu0 0.0
      %1901 = vmatpush1.msra.mxu0 0.0
      %1902 = vmatprep.subr.mxu0 0.0
      %1903 = vmatpush1.msra.mxu0 0.0
      %1904 = vmatprep.subr.mxu0 0.0
      %1905 = vmatpush1.msra.mxu0 0.0
      %1906 = vmatprep.subr.mxu0 0.0
      %1907 = vmatpush1.msra.mxu0 0.0
      %1908 = vmatprep.subr.mxu0 0.0
      %1909 = vmatpush1.msra.mxu0 0.0
      %1910 = vmatprep.subr.mxu0 0.0
      %1911 = vmatpush1.msra.mxu0 0.0
      %1912 = vmatprep.subr.mxu0 0.0
      %1913 = vmatpush1.msra.mxu0 0.0
      %1914 = vmatprep.subr.mxu0 0.0
      %1915 = vmatpush1.msra.mxu0 0.0
      %1916 = vmatprep.mubr.f32.mxu0 0.0
      %1917 = vmatmul.mubr.f32.gmra.mrb[0].mxu0 %v1748
      %v1918 = vpop.f32.mrb[0].mxu0
      %v1919 = vadd.f32 0.0, %v1918
      %v1920 = vpop.f32.mrb[0].mxu0
      %1921 = vdwg.mxu0
      %v1922 = vmax.f32 %v1832, %v1919
      %v1923 = vld [vmem:[%s9] sm:$0xff]
      %v1924 = vld [vmem:[%s9 + $0x8] sm:$0xff]
      %v1925 = vld [vmem:[%s9 + $0x10] sm:$0xff]
      %v1926 = vld [vmem:[%s9 + $0x18] sm:$0xff]
      %v1927 = vld [vmem:[%s9 + $0x20] sm:$0xff]
      %v1928 = vld [vmem:[%s9 + $0x28] sm:$0xff]
      %v1929 = vld [vmem:[%s9 + $0x30] sm:$0xff]
      %v1930 = vld [vmem:[%s9 + $0x38] sm:$0xff]
      %s1931 = scalar_lea.vmem %s9, 64
      %v1932 = vld [vmem:[%s1931] sm:$0xff]
      %v1933 = vld [vmem:[%s1931 + $0x8] sm:$0xff]
      %v1934 = vld [vmem:[%s1931 + $0x10] sm:$0xff]
      %v1935 = vld [vmem:[%s1931 + $0x18] sm:$0xff]
      %v1936 = vld [vmem:[%s1931 + $0x20] sm:$0xff]
      %v1937 = vld [vmem:[%s1931 + $0x28] sm:$0xff]
      %v1938 = vld [vmem:[%s1931 + $0x30] sm:$0xff]
      %v1939 = vld [vmem:[%s1931 + $0x38] sm:$0xff]
      %v1941 = vrot.slane %v1922, 1
      %vm1942 = vcmask 523264
      %v1943 = vsel %vm1942, %v1941, 0
      %1945 = vmatprep.subr.mxu0 0.0
      %1946 = vmatpush1.msra.mxu0 %v1932
      %1947 = vmatprep.subr.mxu0 0.0
      %1948 = vmatpush1.msra.mxu0 %v1933
      %1949 = vmatprep.subr.mxu0 0.0
      %1950 = vmatpush1.msra.mxu0 %v1934
      %1951 = vmatprep.subr.mxu0 0.0
      %1952 = vmatpush1.msra.mxu0 %v1935
      %1953 = vmatprep.subr.mxu0 0.0
      %1954 = vmatpush1.msra.mxu0 %v1936
      %1955 = vmatprep.subr.mxu0 0.0
      %1956 = vmatpush1.msra.mxu0 %v1937
      %1957 = vmatprep.subr.mxu0 0.0
      %1958 = vmatpush1.msra.mxu0 %v1938
      %1959 = vmatprep.subr.mxu0 0.0
      %1960 = vmatpush1.msra.mxu0 %v1939
      %1961 = vmatprep.subr.mxu0 0.0
      %1962 = vmatpush1.msra.mxu0 0.0
      %1963 = vmatprep.subr.mxu0 0.0
      %1964 = vmatpush1.msra.mxu0 0.0
      %1965 = vmatprep.subr.mxu0 0.0
      %1966 = vmatpush1.msra.mxu0 0.0
      %1967 = vmatprep.subr.mxu0 0.0
      %1968 = vmatpush1.msra.mxu0 0.0
      %1969 = vmatprep.subr.mxu0 0.0
      %1970 = vmatpush1.msra.mxu0 0.0
      %1971 = vmatprep.subr.mxu0 0.0
      %1972 = vmatpush1.msra.mxu0 0.0
      %1973 = vmatprep.subr.mxu0 0.0
      %1974 = vmatpush1.msra.mxu0 0.0
      %1975 = vmatprep.subr.mxu0 0.0
      %1976 = vmatpush1.msra.mxu0 0.0
      %1977 = vmatprep.subr.mxu0 0.0
      %1978 = vmatpush1.msra.mxu0 0.0
      %1979 = vmatprep.subr.mxu0 0.0
      %1980 = vmatpush1.msra.mxu0 0.0
      %1981 = vmatprep.subr.mxu0 0.0
      %1982 = vmatpush1.msra.mxu0 0.0
      %1983 = vmatprep.subr.mxu0 0.0
      %1984 = vmatpush1.msra.mxu0 0.0
      %1985 = vmatprep.subr.mxu0 0.0
      %1986 = vmatpush1.msra.mxu0 0.0
      %1987 = vmatprep.subr.mxu0 0.0
      %1988 = vmatpush1.msra.mxu0 0.0
      %1989 = vmatprep.subr.mxu0 0.0
      %1990 = vmatpush1.msra.mxu0 0.0
      %1991 = vmatprep.subr.mxu0 0.0
      %1992 = vmatpush1.msra.mxu0 0.0
      %1993 = vmatprep.subr.mxu0 0.0
      %1994 = vmatpush1.msra.mxu0 0.0
      %1995 = vmatprep.subr.mxu0 0.0
      %1996 = vmatpush1.msra.mxu0 0.0
      %1997 = vmatprep.subr.mxu0 0.0
      %1998 = vmatpush1.msra.mxu0 0.0
      %1999 = vmatprep.subr.mxu0 0.0
      %2000 = vmatpush1.msra.mxu0 0.0
      %2001 = vmatprep.subr.mxu0 0.0
      %2002 = vmatpush1.msra.mxu0 0.0
      %2003 = vmatprep.subr.mxu0 0.0
      %2004 = vmatpush1.msra.mxu0 0.0
      %2005 = vmatprep.subr.mxu0 0.0
      %2006 = vmatpush1.msra.mxu0 0.0
      %2007 = vmatprep.subr.mxu0 0.0
      %2008 = vmatpush1.msra.mxu0 0.0
      %2009 = vmatprep.mubr.f32.mxu0 0.0
      %2010 = vmatmul.mubr.f32.gmra.mrb[0].mxu0 %v1943
      %v2011 = vpop.f32.mrb[0].mxu0
      %v2012 = vadd.f32 0.0, %v2011
      %v2013 = vpop.f32.mrb[0].mxu0
      %2014 = vdwg.mxu0
      %v2015 = vsel %vm1942, %v1922, 0
      %2017 = vmatprep.subr.mxu0 0.0
      %2018 = vmatpush1.msra.mxu0 %v1923
      %2019 = vmatprep.subr.mxu0 0.0
      %2020 = vmatpush1.msra.mxu0 %v1924
      %2021 = vmatprep.subr.mxu0 0.0
      %2022 = vmatpush1.msra.mxu0 %v1925
      %2023 = vmatprep.subr.mxu0 0.0
      %2024 = vmatpush1.msra.mxu0 %v1926
      %2025 = vmatprep.subr.mxu0 0.0
      %2026 = vmatpush1.msra.mxu0 %v1927
      %2027 = vmatprep.subr.mxu0 0.0
      %2028 = vmatpush1.msra.mxu0 %v1928
      %2029 = vmatprep.subr.mxu0 0.0
      %2030 = vmatpush1.msra.mxu0 %v1929
      %2031 = vmatprep.subr.mxu0 0.0
      %2032 = vmatpush1.msra.mxu0 %v1930
      %2033 = vmatprep.subr.mxu0 0.0
      %2034 = vmatpush1.msra.mxu0 0.0
      %2035 = vmatprep.subr.mxu0 0.0
      %2036 = vmatpush1.msra.mxu0 0.0
      %2037 = vmatprep.subr.mxu0 0.0
      %2038 = vmatpush1.msra.mxu0 0.0
      %2039 = vmatprep.subr.mxu0 0.0
      %2040 = vmatpush1.msra.mxu0 0.0
      %2041 = vmatprep.subr.mxu0 0.0
      %2042 = vmatpush1.msra.mxu0 0.0
      %2043 = vmatprep.subr.mxu0 0.0
      %2044 = vmatpush1.msra.mxu0 0.0
      %2045 = vmatprep.subr.mxu0 0.0
      %2046 = vmatpush1.msra.mxu0 0.0
      %2047 = vmatprep.subr.mxu0 0.0
      %2048 = vmatpush1.msra.mxu0 0.0
      %2049 = vmatprep.subr.mxu0 0.0
      %2050 = vmatpush1.msra.mxu0 0.0
      %2051 = vmatprep.subr.mxu0 0.0
      %2052 = vmatpush1.msra.mxu0 0.0
      %2053 = vmatprep.subr.mxu0 0.0
      %2054 = vmatpush1.msra.mxu0 0.0
      %2055 = vmatprep.subr.mxu0 0.0
      %2056 = vmatpush1.msra.mxu0 0.0
      %2057 = vmatprep.subr.mxu0 0.0
      %2058 = vmatpush1.msra.mxu0 0.0
      %2059 = vmatprep.subr.mxu0 0.0
      %2060 = vmatpush1.msra.mxu0 0.0
      %2061 = vmatprep.subr.mxu0 0.0
      %2062 = vmatpush1.msra.mxu0 0.0
      %2063 = vmatprep.subr.mxu0 0.0
      %2064 = vmatpush1.msra.mxu0 0.0
      %2065 = vmatprep.subr.mxu0 0.0
      %2066 = vmatpush1.msra.mxu0 0.0
      %2067 = vmatprep.subr.mxu0 0.0
      %2068 = vmatpush1.msra.mxu0 0.0
      %2069 = vmatprep.subr.mxu0 0.0
      %2070 = vmatpush1.msra.mxu0 0.0
      %2071 = vmatprep.subr.mxu0 0.0
      %2072 = vmatpush1.msra.mxu0 0.0
      %2073 = vmatprep.subr.mxu0 0.0
      %2074 = vmatpush1.msra.mxu0 0.0
      %2075 = vmatprep.subr.mxu0 0.0
      %2076 = vmatpush1.msra.mxu0 0.0
      %2077 = vmatprep.subr.mxu0 0.0
      %2078 = vmatpush1.msra.mxu0 0.0
      %2079 = vmatprep.subr.mxu0 0.0
      %2080 = vmatpush1.msra.mxu0 0.0
      %2081 = vmatprep.mubr.f32.mxu0 0.0
      %2082 = vmatmul.mubr.f32.gmra.mrb[0].mxu0 %v2015
      %v2083 = vpop.f32.mrb[0].mxu0
      %v2084 = vadd.f32 %v2012, %v2083
      %v2085 = vpop.f32.mrb[0].mxu0
      %2086 = vdwg.mxu0
      %s2087 = scalar_lea.vmem %s9, 128
      %v2088 = vld [vmem:[%s2087] sm:$0xff]
      %v2089 = vld [vmem:[%s2087 + $0x8] sm:$0xff]
      %v2090 = vld [vmem:[%s2087 + $0x10] sm:$0xff]
      %v2091 = vld [vmem:[%s2087 + $0x18] sm:$0xff]
      %v2092 = vld [vmem:[%s2087 + $0x20] sm:$0xff]
      %v2093 = vld [vmem:[%s2087 + $0x28] sm:$0xff]
      %v2094 = vld [vmem:[%s2087 + $0x30] sm:$0xff]
      %v2095 = vld [vmem:[%s2087 + $0x38] sm:$0xff]
      %v2096 = vrot.slane %v1922, 2
      %v2097 = vsel %vm1942, %v2096, 0
      %2099 = vmatprep.subr.mxu0 0.0
      %2100 = vmatpush1.msra.mxu0 %v2088
      %2101 = vmatprep.subr.mxu0 0.0
      %2102 = vmatpush1.msra.mxu0 %v2089
      %2103 = vmatprep.subr.mxu0 0.0
      %2104 = vmatpush1.msra.mxu0 %v2090
      %2105 = vmatprep.subr.mxu0 0.0
      %2106 = vmatpush1.msra.mxu0 %v2091
      %2107 = vmatprep.subr.mxu0 0.0
      %2108 = vmatpush1.msra.mxu0 %v2092
      %2109 = vmatprep.subr.mxu0 0.0
      %2110 = vmatpush1.msra.mxu0 %v2093
      %2111 = vmatprep.subr.mxu0 0.0
      %2112 = vmatpush1.msra.mxu0 %v2094
      %2113 = vmatprep.subr.mxu0 0.0
      %2114 = vmatpush1.msra.mxu0 %v2095
      %2115 = vmatprep.subr.mxu0 0.0
      %2116 = vmatpush1.msra.mxu0 0.0
      %2117 = vmatprep.subr.mxu0 0.0
      %2118 = vmatpush1.msra.mxu0 0.0
      %2119 = vmatprep.subr.mxu0 0.0
      %2120 = vmatpush1.msra.mxu0 0.0
      %2121 = vmatprep.subr.mxu0 0.0
      %2122 = vmatpush1.msra.mxu0 0.0
      %2123 = vmatprep.subr.mxu0 0.0
      %2124 = vmatpush1.msra.mxu0 0.0
      %2125 = vmatprep.subr.mxu0 0.0
      %2126 = vmatpush1.msra.mxu0 0.0
      %2127 = vmatprep.subr.mxu0 0.0
      %2128 = vmatpush1.msra.mxu0 0.0
      %2129 = vmatprep.subr.mxu0 0.0
      %2130 = vmatpush1.msra.mxu0 0.0
      %2131 = vmatprep.subr.mxu0 0.0
      %2132 = vmatpush1.msra.mxu0 0.0
      %2133 = vmatprep.subr.mxu0 0.0
      %2134 = vmatpush1.msra.mxu0 0.0
      %2135 = vmatprep.subr.mxu0 0.0
      %2136 = vmatpush1.msra.mxu0 0.0
      %2137 = vmatprep.subr.mxu0 0.0
      %2138 = vmatpush1.msra.mxu0 0.0
      %2139 = vmatprep.subr.mxu0 0.0
      %2140 = vmatpush1.msra.mxu0 0.0
      %2141 = vmatprep.subr.mxu0 0.0
      %2142 = vmatpush1.msra.mxu0 0.0
      %2143 = vmatprep.subr.mxu0 0.0
      %2144 = vmatpush1.msra.mxu0 0.0
      %2145 = vmatprep.subr.mxu0 0.0
      %2146 = vmatpush1.msra.mxu0 0.0
      %2147 = vmatprep.subr.mxu0 0.0
      %2148 = vmatpush1.msra.mxu0 0.0
      %2149 = vmatprep.subr.mxu0 0.0
      %2150 = vmatpush1.msra.mxu0 0.0
      %2151 = vmatprep.subr.mxu0 0.0
      %2152 = vmatpush1.msra.mxu0 0.0
      %2153 = vmatprep.subr.mxu0 0.0
      %2154 = vmatpush1.msra.mxu0 0.0
      %2155 = vmatprep.subr.mxu0 0.0
      %2156 = vmatpush1.msra.mxu0 0.0
      %2157 = vmatprep.subr.mxu0 0.0
      %2158 = vmatpush1.msra.mxu0 0.0
      %2159 = vmatprep.subr.mxu0 0.0
      %2160 = vmatpush1.msra.mxu0 0.0
      %2161 = vmatprep.subr.mxu0 0.0
      %2162 = vmatpush1.msra.mxu0 0.0
      %2163 = vmatprep.mubr.f32.mxu0 0.0
      %2164 = vmatmul.mubr.f32.gmra.mrb[0].mxu0 %v2097
      %v2165 = vpop.f32.mrb[0].mxu0
      %v2166 = vadd.f32 0.0, %v2165
      %v2167 = vpop.f32.mrb[0].mxu0
      %2168 = vdwg.mxu0
      %v2169 = vadd.f32 %v2084, %v2166
      %v2170 = vld [vmem:[%s10] sm:$0x1]
      %v2172 = vlaneseq
      %v2173 = vshrl.u32 %v2172, 7
      %v2174 = vsub.s32 0, %v2173
      %v2175 = vrot.slane %v2170, %v2174
      %v2177 = vadd.f32 %v2169, %v2175
      %v2178 = vmax.f32 %v2177, 0.0
      %v2179 = vld [vmem:[%s11] sm:$0xff]
      %v2180 = vld [vmem:[%s11 + $0x8] sm:$0xff]
      %v2181 = vld [vmem:[%s11 + $0x10] sm:$0xff]
      %v2182 = vld [vmem:[%s11 + $0x18] sm:$0xff]
      %v2183 = vld [vmem:[%s11 + $0x20] sm:$0xff]
      %v2184 = vld [vmem:[%s11 + $0x28] sm:$0xff]
      %v2185 = vld [vmem:[%s11 + $0x30] sm:$0xff]
      %v2186 = vld [vmem:[%s11 + $0x38] sm:$0xff]
      %v2187 = vld [vmem:[%s11 + $0x40] sm:$0xff]
      %v2188 = vld [vmem:[%s11 + $0x48] sm:$0xff]
      %v2189 = vld [vmem:[%s11 + $0x50] sm:$0xff]
      %v2190 = vld [vmem:[%s11 + $0x58] sm:$0xff]
      %s2191 = scalar_lea.vmem %s11, 96
      %v2192 = vld [vmem:[%s2191] sm:$0xff]
      %v2193 = vld [vmem:[%s2191 + $0x8] sm:$0xff]
      %v2194 = vld [vmem:[%s2191 + $0x10] sm:$0xff]
      %v2195 = vld [vmem:[%s2191 + $0x18] sm:$0xff]
      %v2196 = vld [vmem:[%s2191 + $0x20] sm:$0xff]
      %v2197 = vld [vmem:[%s2191 + $0x28] sm:$0xff]
      %v2198 = vld [vmem:[%s2191 + $0x30] sm:$0xff]
      %v2199 = vld [vmem:[%s2191 + $0x38] sm:$0xff]
      %v2200 = vld [vmem:[%s2191 + $0x40] sm:$0xff]
      %v2201 = vld [vmem:[%s2191 + $0x48] sm:$0xff]
      %v2202 = vld [vmem:[%s2191 + $0x50] sm:$0xff]
      %v2203 = vld [vmem:[%s2191 + $0x58] sm:$0xff]
      %v2205 = vrot.slane %v2178, 1
      %vm2206 = vcmask 785408
      %v2207 = vsel %vm2206, %v2205, 0
      %2209 = vmatprep.subr.mxu0 0.0
      %2210 = vmatpush1.msra.mxu0 %v2192
      %2211 = vmatprep.subr.mxu0 0.0
      %2212 = vmatpush1.msra.mxu0 %v2193
      %2213 = vmatprep.subr.mxu0 0.0
      %2214 = vmatpush1.msra.mxu0 %v2194
      %2215 = vmatprep.subr.mxu0 0.0
      %2216 = vmatpush1.msra.mxu0 %v2195
      %2217 = vmatprep.subr.mxu0 0.0
      %2218 = vmatpush1.msra.mxu0 %v2196
      %2219 = vmatprep.subr.mxu0 0.0
      %2220 = vmatpush1.msra.mxu0 %v2197
      %2221 = vmatprep.subr.mxu0 0.0
      %2222 = vmatpush1.msra.mxu0 %v2198
      %2223 = vmatprep.subr.mxu0 0.0
      %2224 = vmatpush1.msra.mxu0 %v2199
      %2225 = vmatprep.subr.mxu0 0.0
      %2226 = vmatpush1.msra.mxu0 %v2200
      %2227 = vmatprep.subr.mxu0 0.0
      %2228 = vmatpush1.msra.mxu0 %v2201
      %2229 = vmatprep.subr.mxu0 0.0
      %2230 = vmatpush1.msra.mxu0 %v2202
      %2231 = vmatprep.subr.mxu0 0.0
      %2232 = vmatpush1.msra.mxu0 %v2203
      %2233 = vmatprep.subr.mxu0 0.0
      %2234 = vmatpush1.msra.mxu0 0.0
      %2235 = vmatprep.subr.mxu0 0.0
      %2236 = vmatpush1.msra.mxu0 0.0
      %2237 = vmatprep.subr.mxu0 0.0
      %2238 = vmatpush1.msra.mxu0 0.0
      %2239 = vmatprep.subr.mxu0 0.0
      %2240 = vmatpush1.msra.mxu0 0.0
      %2241 = vmatprep.subr.mxu0 0.0
      %2242 = vmatpush1.msra.mxu0 0.0
      %2243 = vmatprep.subr.mxu0 0.0
      %2244 = vmatpush1.msra.mxu0 0.0
      %2245 = vmatprep.subr.mxu0 0.0
      %2246 = vmatpush1.msra.mxu0 0.0
      %2247 = vmatprep.subr.mxu0 0.0
      %2248 = vmatpush1.msra.mxu0 0.0
      %2249 = vmatprep.subr.mxu0 0.0
      %2250 = vmatpush1.msra.mxu0 0.0
      %2251 = vmatprep.subr.mxu0 0.0
      %2252 = vmatpush1.msra.mxu0 0.0
      %2253 = vmatprep.subr.mxu0 0.0
      %2254 = vmatpush1.msra.mxu0 0.0
      %2255 = vmatprep.subr.mxu0 0.0
      %2256 = vmatpush1.msra.mxu0 0.0
      %2257 = vmatprep.subr.mxu0 0.0
      %2258 = vmatpush1.msra.mxu0 0.0
      %2259 = vmatprep.subr.mxu0 0.0
      %2260 = vmatpush1.msra.mxu0 0.0
      %2261 = vmatprep.subr.mxu0 0.0
      %2262 = vmatpush1.msra.mxu0 0.0
      %2263 = vmatprep.subr.mxu0 0.0
      %2264 = vmatpush1.msra.mxu0 0.0
      %2265 = vmatprep.subr.mxu0 0.0
      %2266 = vmatpush1.msra.mxu0 0.0
      %2267 = vmatprep.subr.mxu0 0.0
      %2268 = vmatpush1.msra.mxu0 0.0
      %2269 = vmatprep.subr.mxu0 0.0
      %2270 = vmatpush1.msra.mxu0 0.0
      %2271 = vmatprep.subr.mxu0 0.0
      %2272 = vmatpush1.msra.mxu0 0.0
      %2273 = vmatprep.mubr.f32.mxu0 0.0
      %2274 = vmatmul.mubr.f32.gmra.mrb[0].mxu0 %v2207
      %v2275 = vpop.f32.mrb[0].mxu0
      %v2276 = vadd.f32 0.0, %v2275
      %v2277 = vpop.f32.mrb[0].mxu0
      %2278 = vdwg.mxu0
      %v2279 = vsel %vm2206, %v2178, 0
      %2281 = vmatprep.subr.mxu0 0.0
      %2282 = vmatpush1.msra.mxu0 %v2179
      %2283 = vmatprep.subr.mxu0 0.0
      %2284 = vmatpush1.msra.mxu0 %v2180
      %2285 = vmatprep.subr.mxu0 0.0
      %2286 = vmatpush1.msra.mxu0 %v2181
      %2287 = vmatprep.subr.mxu0 0.0
      %2288 = vmatpush1.msra.mxu0 %v2182
      %2289 = vmatprep.subr.mxu0 0.0
      %2290 = vmatpush1.msra.mxu0 %v2183
      %2291 = vmatprep.subr.mxu0 0.0
      %2292 = vmatpush1.msra.mxu0 %v2184
      %2293 = vmatprep.subr.mxu0 0.0
      %2294 = vmatpush1.msra.mxu0 %v2185
      %2295 = vmatprep.subr.mxu0 0.0
      %2296 = vmatpush1.msra.mxu0 %v2186
      %2297 = vmatprep.subr.mxu0 0.0
      %2298 = vmatpush1.msra.mxu0 %v2187
      %2299 = vmatprep.subr.mxu0 0.0
      %2300 = vmatpush1.msra.mxu0 %v2188
      %2301 = vmatprep.subr.mxu0 0.0
      %2302 = vmatpush1.msra.mxu0 %v2189
      %2303 = vmatprep.subr.mxu0 0.0
      %2304 = vmatpush1.msra.mxu0 %v2190
      %2305 = vmatprep.subr.mxu0 0.0
      %2306 = vmatpush1.msra.mxu0 0.0
      %2307 = vmatprep.subr.mxu0 0.0
      %2308 = vmatpush1.msra.mxu0 0.0
      %2309 = vmatprep.subr.mxu0 0.0
      %2310 = vmatpush1.msra.mxu0 0.0
      %2311 = vmatprep.subr.mxu0 0.0
      %2312 = vmatpush1.msra.mxu0 0.0
      %2313 = vmatprep.subr.mxu0 0.0
      %2314 = vmatpush1.msra.mxu0 0.0
      %2315 = vmatprep.subr.mxu0 0.0
      %2316 = vmatpush1.msra.mxu0 0.0
      %2317 = vmatprep.subr.mxu0 0.0
      %2318 = vmatpush1.msra.mxu0 0.0
      %2319 = vmatprep.subr.mxu0 0.0
      %2320 = vmatpush1.msra.mxu0 0.0
      %2321 = vmatprep.subr.mxu0 0.0
      %2322 = vmatpush1.msra.mxu0 0.0
      %2323 = vmatprep.subr.mxu0 0.0
      %2324 = vmatpush1.msra.mxu0 0.0
      %2325 = vmatprep.subr.mxu0 0.0
      %2326 = vmatpush1.msra.mxu0 0.0
      %2327 = vmatprep.subr.mxu0 0.0
      %2328 = vmatpush1.msra.mxu0 0.0
      %2329 = vmatprep.subr.mxu0 0.0
      %2330 = vmatpush1.msra.mxu0 0.0
      %2331 = vmatprep.subr.mxu0 0.0
      %2332 = vmatpush1.msra.mxu0 0.0
      %2333 = vmatprep.subr.mxu0 0.0
      %2334 = vmatpush1.msra.mxu0 0.0
      %2335 = vmatprep.subr.mxu0 0.0
      %2336 = vmatpush1.msra.mxu0 0.0
      %2337 = vmatprep.subr.mxu0 0.0
      %2338 = vmatpush1.msra.mxu0 0.0
      %2339 = vmatprep.subr.mxu0 0.0
      %2340 = vmatpush1.msra.mxu0 0.0
      %2341 = vmatprep.subr.mxu0 0.0
      %2342 = vmatpush1.msra.mxu0 0.0
      %2343 = vmatprep.subr.mxu0 0.0
      %2344 = vmatpush1.msra.mxu0 0.0
      %2345 = vmatprep.mubr.f32.mxu0 0.0
      %2346 = vmatmul.mubr.f32.gmra.mrb[0].mxu0 %v2279
      %v2347 = vpop.f32.mrb[0].mxu0
      %v2348 = vadd.f32 %v2276, %v2347
      %v2349 = vpop.f32.mrb[0].mxu0
      %2350 = vdwg.mxu0
      %s2351 = scalar_lea.vmem %s11, 192
      %v2352 = vld [vmem:[%s2351] sm:$0xff]
      %v2353 = vld [vmem:[%s2351 + $0x8] sm:$0xff]
      %v2354 = vld [vmem:[%s2351 + $0x10] sm:$0xff]
      %v2355 = vld [vmem:[%s2351 + $0x18] sm:$0xff]
      %v2356 = vld [vmem:[%s2351 + $0x20] sm:$0xff]
      %v2357 = vld [vmem:[%s2351 + $0x28] sm:$0xff]
      %v2358 = vld [vmem:[%s2351 + $0x30] sm:$0xff]
      %v2359 = vld [vmem:[%s2351 + $0x38] sm:$0xff]
      %v2360 = vld [vmem:[%s2351 + $0x40] sm:$0xff]
      %v2361 = vld [vmem:[%s2351 + $0x48] sm:$0xff]
      %v2362 = vld [vmem:[%s2351 + $0x50] sm:$0xff]
      %v2363 = vld [vmem:[%s2351 + $0x58] sm:$0xff]
      %v2364 = vrot.slane %v2178, 2
      %v2365 = vsel %vm2206, %v2364, 0
      %2367 = vmatprep.subr.mxu0 0.0
      %2368 = vmatpush1.msra.mxu0 %v2352
      %2369 = vmatprep.subr.mxu0 0.0
      %2370 = vmatpush1.msra.mxu0 %v2353
      %2371 = vmatprep.subr.mxu0 0.0
      %2372 = vmatpush1.msra.mxu0 %v2354
      %2373 = vmatprep.subr.mxu0 0.0
      %2374 = vmatpush1.msra.mxu0 %v2355
      %2375 = vmatprep.subr.mxu0 0.0
      %2376 = vmatpush1.msra.mxu0 %v2356
      %2377 = vmatprep.subr.mxu0 0.0
      %2378 = vmatpush1.msra.mxu0 %v2357
      %2379 = vmatprep.subr.mxu0 0.0
      %2380 = vmatpush1.msra.mxu0 %v2358
      %2381 = vmatprep.subr.mxu0 0.0
      %2382 = vmatpush1.msra.mxu0 %v2359
      %2383 = vmatprep.subr.mxu0 0.0
      %2384 = vmatpush1.msra.mxu0 %v2360
      %2385 = vmatprep.subr.mxu0 0.0
      %2386 = vmatpush1.msra.mxu0 %v2361
      %2387 = vmatprep.subr.mxu0 0.0
      %2388 = vmatpush1.msra.mxu0 %v2362
      %2389 = vmatprep.subr.mxu0 0.0
      %2390 = vmatpush1.msra.mxu0 %v2363
      %2391 = vmatprep.subr.mxu0 0.0
      %2392 = vmatpush1.msra.mxu0 0.0
      %2393 = vmatprep.subr.mxu0 0.0
      %2394 = vmatpush1.msra.mxu0 0.0
      %2395 = vmatprep.subr.mxu0 0.0
      %2396 = vmatpush1.msra.mxu0 0.0
      %2397 = vmatprep.subr.mxu0 0.0
      %2398 = vmatpush1.msra.mxu0 0.0
      %2399 = vmatprep.subr.mxu0 0.0
      %2400 = vmatpush1.msra.mxu0 0.0
      %2401 = vmatprep.subr.mxu0 0.0
      %2402 = vmatpush1.msra.mxu0 0.0
      %2403 = vmatprep.subr.mxu0 0.0
      %2404 = vmatpush1.msra.mxu0 0.0
      %2405 = vmatprep.subr.mxu0 0.0
      %2406 = vmatpush1.msra.mxu0 0.0
      %2407 = vmatprep.subr.mxu0 0.0
      %2408 = vmatpush1.msra.mxu0 0.0
      %2409 = vmatprep.subr.mxu0 0.0
      %2410 = vmatpush1.msra.mxu0 0.0
      %2411 = vmatprep.subr.mxu0 0.0
      %2412 = vmatpush1.msra.mxu0 0.0
      %2413 = vmatprep.subr.mxu0 0.0
      %2414 = vmatpush1.msra.mxu0 0.0
      %2415 = vmatprep.subr.mxu0 0.0
      %2416 = vmatpush1.msra.mxu0 0.0
      %2417 = vmatprep.subr.mxu0 0.0
      %2418 = vmatpush1.msra.mxu0 0.0
      %2419 = vmatprep.subr.mxu0 0.0
      %2420 = vmatpush1.msra.mxu0 0.0
      %2421 = vmatprep.subr.mxu0 0.0
      %2422 = vmatpush1.msra.mxu0 0.0
      %2423 = vmatprep.subr.mxu0 0.0
      %2424 = vmatpush1.msra.mxu0 0.0
      %2425 = vmatprep.subr.mxu0 0.0
      %2426 = vmatpush1.msra.mxu0 0.0
      %2427 = vmatprep.subr.mxu0 0.0
      %2428 = vmatpush1.msra.mxu0 0.0
      %2429 = vmatprep.subr.mxu0 0.0
      %2430 = vmatpush1.msra.mxu0 0.0
      %2431 = vmatprep.mubr.f32.mxu0 0.0
      %2432 = vmatmul.mubr.f32.gmra.mrb[0].mxu0 %v2365
      %v2433 = vpop.f32.mrb[0].mxu0
      %v2434 = vadd.f32 0.0, %v2433
      %v2435 = vpop.f32.mrb[0].mxu0
      %2436 = vdwg.mxu0
      %v2437 = vadd.f32 %v2348, %v2434
      %v2438 = vld [vmem:[%s12] sm:$0x1]
      %v2440 = vlaneseq
      %v2441 = vshrl.u32 %v2440, 7
      %v2442 = vsub.s32 0, %v2441
      %v2443 = vrot.slane %v2438, %v2442
      %v2445 = vadd.f32 %v2437, %v2443
      %v2446 = vld [vmem:[%s13] sm:$0xff]
      %v2447 = vld [vmem:[%s13 + $0x8] sm:$0xff]
      %v2448 = vld [vmem:[%s13 + $0x10] sm:$0xff]
      %v2449 = vld [vmem:[%s13 + $0x18] sm:$0xff]
      %v2450 = vld [vmem:[%s13 + $0x20] sm:$0xff]
      %v2451 = vld [vmem:[%s13 + $0x28] sm:$0xff]
      %v2452 = vld [vmem:[%s13 + $0x30] sm:$0xff]
      %v2453 = vld [vmem:[%s13 + $0x38] sm:$0xff]
      %v2454 = vld [vmem:[%s14] sm:$0x1]
      %v2456 = vlaneseq
      %v2457 = vshrl.u32 %v2456, 7
      %v2458 = vsub.s32 0, %v2457
      %v2459 = vrot.slane %v2454, %v2458
      %2461 = vmatprep.subr.mxu0 0.0
      %2462 = vmatpush1.msra.mxu0 %v2446
      %2463 = vmatprep.subr.mxu0 0.0
      %2464 = vmatpush1.msra.mxu0 %v2447
      %2465 = vmatprep.subr.mxu0 0.0
      %2466 = vmatpush1.msra.mxu0 %v2448
      %2467 = vmatprep.subr.mxu0 0.0
      %2468 = vmatpush1.msra.mxu0 %v2449
      %2469 = vmatprep.subr.mxu0 0.0
      %2470 = vmatpush1.msra.mxu0 %v2450
      %2471 = vmatprep.subr.mxu0 0.0
      %2472 = vmatpush1.msra.mxu0 %v2451
      %2473 = vmatprep.subr.mxu0 0.0
      %2474 = vmatpush1.msra.mxu0 %v2452
      %2475 = vmatprep.subr.mxu0 0.0
      %2476 = vmatpush1.msra.mxu0 %v2453
      %2477 = vmatprep.subr.mxu0 0.0
      %2478 = vmatpush1.msra.mxu0 0.0
      %2479 = vmatprep.subr.mxu0 0.0
      %2480 = vmatpush1.msra.mxu0 0.0
      %2481 = vmatprep.subr.mxu0 0.0
      %2482 = vmatpush1.msra.mxu0 0.0
      %2483 = vmatprep.subr.mxu0 0.0
      %2484 = vmatpush1.msra.mxu0 0.0
      %2485 = vmatprep.subr.mxu0 0.0
      %2486 = vmatpush1.msra.mxu0 0.0
      %2487 = vmatprep.subr.mxu0 0.0
      %2488 = vmatpush1.msra.mxu0 0.0
      %2489 = vmatprep.subr.mxu0 0.0
      %2490 = vmatpush1.msra.mxu0 0.0
      %2491 = vmatprep.subr.mxu0 0.0
      %2492 = vmatpush1.msra.mxu0 0.0
      %2493 = vmatprep.subr.mxu0 0.0
      %2494 = vmatpush1.msra.mxu0 0.0
      %2495 = vmatprep.subr.mxu0 0.0
      %2496 = vmatpush1.msra.mxu0 0.0
      %2497 = vmatprep.subr.mxu0 0.0
      %2498 = vmatpush1.msra.mxu0 0.0
      %2499 = vmatprep.subr.mxu0 0.0
      %2500 = vmatpush1.msra.mxu0 0.0
      %2501 = vmatprep.subr.mxu0 0.0
      %2502 = vmatpush1.msra.mxu0 0.0
      %2503 = vmatprep.subr.mxu0 0.0
      %2504 = vmatpush1.msra.mxu0 0.0
      %2505 = vmatprep.subr.mxu0 0.0
      %2506 = vmatpush1.msra.mxu0 0.0
      %2507 = vmatprep.subr.mxu0 0.0
      %2508 = vmatpush1.msra.mxu0 0.0
      %2509 = vmatprep.subr.mxu0 0.0
      %2510 = vmatpush1.msra.mxu0 0.0
      %2511 = vmatprep.subr.mxu0 0.0
      %2512 = vmatpush1.msra.mxu0 0.0
      %2513 = vmatprep.subr.mxu0 0.0
      %2514 = vmatpush1.msra.mxu0 0.0
      %2515 = vmatprep.subr.mxu0 0.0
      %2516 = vmatpush1.msra.mxu0 0.0
      %2517 = vmatprep.subr.mxu0 0.0
      %2518 = vmatpush1.msra.mxu0 0.0
      %2519 = vmatprep.subr.mxu0 0.0
      %2520 = vmatpush1.msra.mxu0 0.0
      %2521 = vmatprep.subr.mxu0 0.0
      %2522 = vmatpush1.msra.mxu0 0.0
      %2523 = vmatprep.subr.mxu0 0.0
      %2524 = vmatpush1.msra.mxu0 0.0
      %2525 = vmatprep.mubr.f32.mxu0 0.0
      %2526 = vmatmul.mubr.f32.gmra.mrb[0].mxu0 %v2097
      %v2527 = vpop.f32.mrb[0].mxu0
      %v2528 = vadd.f32 %v2459, %v2527
      %v2529 = vpop.f32.mrb[0].mxu0
      %2530 = vdwg.mxu0
      %v2531 = vadd.f32 %v2445, %v2528
      %v2532 = vmax.f32 %v2531, 0.0
      %v2533 = vld [vmem:[%s15] sm:$0xff]
      %v2534 = vld [vmem:[%s15 + $0x8] sm:$0xff]
      %v2535 = vld [vmem:[%s15 + $0x10] sm:$0xff]
      %v2536 = vld [vmem:[%s15 + $0x18] sm:$0xff]
      %v2537 = vld [vmem:[%s15 + $0x20] sm:$0xff]
      %v2538 = vld [vmem:[%s15 + $0x28] sm:$0xff]
      %v2539 = vld [vmem:[%s15 + $0x30] sm:$0xff]
      %v2540 = vld [vmem:[%s15 + $0x38] sm:$0xff]
      %v2542 = vsel %vm1942, %v2532, 0
      %2544 = vmatprep.subr.mxu0 0.0
      %2545 = vmatpush1.msra.mxu0 %v2533
      %2546 = vmatprep.subr.mxu0 0.0
      %2547 = vmatpush1.msra.mxu0 %v2534
      %2548 = vmatprep.subr.mxu0 0.0
      %2549 = vmatpush1.msra.mxu0 %v2535
      %2550 = vmatprep.subr.mxu0 0.0
      %2551 = vmatpush1.msra.mxu0 %v2536
      %2552 = vmatprep.subr.mxu0 0.0
      %2553 = vmatpush1.msra.mxu0 %v2537
      %2554 = vmatprep.subr.mxu0 0.0
      %2555 = vmatpush1.msra.mxu0 %v2538
      %2556 = vmatprep.subr.mxu0 0.0
      %2557 = vmatpush1.msra.mxu0 %v2539
      %2558 = vmatprep.subr.mxu0 0.0
      %2559 = vmatpush1.msra.mxu0 %v2540
      %2560 = vmatprep.subr.mxu0 0.0
      %2561 = vmatpush1.msra.mxu0 0.0
      %2562 = vmatprep.subr.mxu0 0.0
      %2563 = vmatpush1.msra.mxu0 0.0
      %2564 = vmatprep.subr.mxu0 0.0
      %2565 = vmatpush1.msra.mxu0 0.0
      %2566 = vmatprep.subr.mxu0 0.0
      %2567 = vmatpush1.msra.mxu0 0.0
      %2568 = vmatprep.subr.mxu0 0.0
      %2569 = vmatpush1.msra.mxu0 0.0
      %2570 = vmatprep.subr.mxu0 0.0
      %2571 = vmatpush1.msra.mxu0 0.0
      %2572 = vmatprep.subr.mxu0 0.0
      %2573 = vmatpush1.msra.mxu0 0.0
      %2574 = vmatprep.subr.mxu0 0.0
      %2575 = vmatpush1.msra.mxu0 0.0
      %2576 = vmatprep.subr.mxu0 0.0
      %2577 = vmatpush1.msra.mxu0 0.0
      %2578 = vmatprep.subr.mxu0 0.0
      %2579 = vmatpush1.msra.mxu0 0.0
      %2580 = vmatprep.subr.mxu0 0.0
      %2581 = vmatpush1.msra.mxu0 0.0
      %2582 = vmatprep.subr.mxu0 0.0
      %2583 = vmatpush1.msra.mxu0 0.0
      %2584 = vmatprep.subr.mxu0 0.0
      %2585 = vmatpush1.msra.mxu0 0.0
      %2586 = vmatprep.subr.mxu0 0.0
      %2587 = vmatpush1.msra.mxu0 0.0
      %2588 = vmatprep.subr.mxu0 0.0
      %2589 = vmatpush1.msra.mxu0 0.0
      %2590 = vmatprep.subr.mxu0 0.0
      %2591 = vmatpush1.msra.mxu0 0.0
      %2592 = vmatprep.subr.mxu0 0.0
      %2593 = vmatpush1.msra.mxu0 0.0
      %2594 = vmatprep.subr.mxu0 0.0
      %2595 = vmatpush1.msra.mxu0 0.0
      %2596 = vmatprep.subr.mxu0 0.0
      %2597 = vmatpush1.msra.mxu0 0.0
      %2598 = vmatprep.subr.mxu0 0.0
      %2599 = vmatpush1.msra.mxu0 0.0
      %2600 = vmatprep.subr.mxu0 0.0
      %2601 = vmatpush1.msra.mxu0 0.0
      %2602 = vmatprep.subr.mxu0 0.0
      %2603 = vmatpush1.msra.mxu0 0.0
      %2604 = vmatprep.subr.mxu0 0.0
      %2605 = vmatpush1.msra.mxu0 0.0
      %2606 = vmatprep.subr.mxu0 0.0
      %2607 = vmatpush1.msra.mxu0 0.0
      %2608 = vmatprep.mubr.f32.mxu0 0.0
      %2609 = vmatmul.mubr.f32.gmra.mrb[0].mxu0 %v2542
      %v2610 = vpop.f32.mrb[0].mxu0
      %v2611 = vadd.f32 0.0, %v2610
      %v2612 = vpop.f32.mrb[0].mxu0
      %2613 = vdwg.mxu0
      %s2614 = scalar_lea.vmem %s15, 64
      %v2615 = vld [vmem:[%s2614] sm:$0xff]
      %v2616 = vld [vmem:[%s2614 + $0x8] sm:$0xff]
      %v2617 = vld [vmem:[%s2614 + $0x10] sm:$0xff]
      %v2618 = vld [vmem:[%s2614 + $0x18] sm:$0xff]
      %v2619 = vld [vmem:[%s2614 + $0x20] sm:$0xff]
      %v2620 = vld [vmem:[%s2614 + $0x28] sm:$0xff]
      %v2621 = vld [vmem:[%s2614 + $0x30] sm:$0xff]
      %v2622 = vld [vmem:[%s2614 + $0x38] sm:$0xff]
      %2623 = vmatprep.subr.mxu0 0.0
      %2624 = vmatpush1.msra.mxu0 %v2615
      %2625 = vmatprep.subr.mxu0 0.0
      %2626 = vmatpush1.msra.mxu0 %v2616
      %2627 = vmatprep.subr.mxu0 0.0
      %2628 = vmatpush1.msra.mxu0 %v2617
      %2629 = vmatprep.subr.mxu0 0.0
      %2630 = vmatpush1.msra.mxu0 %v2618
      %2631 = vmatprep.subr.mxu0 0.0
      %2632 = vmatpush1.msra.mxu0 %v2619
      %2633 = vmatprep.subr.mxu0 0.0
      %2634 = vmatpush1.msra.mxu0 %v2620
      %2635 = vmatprep.subr.mxu0 0.0
      %2636 = vmatpush1.msra.mxu0 %v2621
      %2637 = vmatprep.subr.mxu0 0.0
      %2638 = vmatpush1.msra.mxu0 %v2622
      %2639 = vmatprep.subr.mxu0 0.0
      %2640 = vmatpush1.msra.mxu0 0.0
      %2641 = vmatprep.subr.mxu0 0.0
      %2642 = vmatpush1.msra.mxu0 0.0
      %2643 = vmatprep.subr.mxu0 0.0
      %2644 = vmatpush1.msra.mxu0 0.0
      %2645 = vmatprep.subr.mxu0 0.0
      %2646 = vmatpush1.msra.mxu0 0.0
      %2647 = vmatprep.subr.mxu0 0.0
      %2648 = vmatpush1.msra.mxu0 0.0
      %2649 = vmatprep.subr.mxu0 0.0
      %2650 = vmatpush1.msra.mxu0 0.0
      %2651 = vmatprep.subr.mxu0 0.0
      %2652 = vmatpush1.msra.mxu0 0.0
      %2653 = vmatprep.subr.mxu0 0.0
      %2654 = vmatpush1.msra.mxu0 0.0
      %2655 = vmatprep.subr.mxu0 0.0
      %2656 = vmatpush1.msra.mxu0 0.0
      %2657 = vmatprep.subr.mxu0 0.0
      %2658 = vmatpush1.msra.mxu0 0.0
      %2659 = vmatprep.subr.mxu0 0.0
      %2660 = vmatpush1.msra.mxu0 0.0
      %2661 = vmatprep.subr.mxu0 0.0
      %2662 = vmatpush1.msra.mxu0 0.0
      %2663 = vmatprep.subr.mxu0 0.0
      %2664 = vmatpush1.msra.mxu0 0.0
      %2665 = vmatprep.subr.mxu0 0.0
      %2666 = vmatpush1.msra.mxu0 0.0
      %2667 = vmatprep.subr.mxu0 0.0
      %2668 = vmatpush1.msra.mxu0 0.0
      %2669 = vmatprep.subr.mxu0 0.0
      %2670 = vmatpush1.msra.mxu0 0.0
      %2671 = vmatprep.subr.mxu0 0.0
      %2672 = vmatpush1.msra.mxu0 0.0
      %2673 = vmatprep.subr.mxu0 0.0
      %2674 = vmatpush1.msra.mxu0 0.0
      %2675 = vmatprep.subr.mxu0 0.0
      %2676 = vmatpush1.msra.mxu0 0.0
      %2677 = vmatprep.subr.mxu0 0.0
      %2678 = vmatpush1.msra.mxu0 0.0
      %2679 = vmatprep.subr.mxu0 0.0
      %2680 = vmatpush1.msra.mxu0 0.0
      %2681 = vmatprep.subr.mxu0 0.0
      %2682 = vmatpush1.msra.mxu0 0.0
      %2683 = vmatprep.subr.mxu0 0.0
      %2684 = vmatpush1.msra.mxu0 0.0
      %2685 = vmatprep.subr.mxu0 0.0
      %2686 = vmatpush1.msra.mxu0 0.0
      %2687 = vmatprep.mubr.f32.mxu0 0.0
      %2688 = vmatmul.mubr.f32.gmra.mrb[0].mxu0 %v2542
      %v2689 = vpop.f32.mrb[0].mxu0
      %v2690 = vadd.f32 0.0, %v2689
      %v2691 = vpop.f32.mrb[0].mxu0
      %2692 = vdwg.mxu0
      %v2693 = vld [vmem:[%s16] sm:$0xff]
      %s2694 = scalar_lea.vmem %s16, 8
      %v2695 = vld [vmem:[%s2694] sm:$0xff]
      %vm2696 = vcmask 31744
      %v2698 = vsel %vm2696, %v2695, 0
      %vm2700 = vcmask 1043456
      %v2702 = vsel %vm2700, %v2690, 0
      %2704 = vmatprep.subr.mxu0 0.0
      %2705 = vmatpush1.msra.mxu0 %v2702
      %2706 = vmatprep.subr.mxu0 0.0
      %2707 = vmatpush1.msra.mxu0 0.0
      %2708 = vmatprep.subr.mxu0 0.0
      %2709 = vmatpush1.msra.mxu0 0.0
      %2710 = vmatprep.subr.mxu0 0.0
      %2711 = vmatpush1.msra.mxu0 0.0
      %2712 = vmatprep.subr.mxu0 0.0
      %2713 = vmatpush1.msra.mxu0 0.0
      %2714 = vmatprep.subr.mxu0 0.0
      %2715 = vmatpush1.msra.mxu0 0.0
      %2716 = vmatprep.subr.mxu0 0.0
      %2717 = vmatpush1.msra.mxu0 0.0
      %2718 = vmatprep.subr.mxu0 0.0
      %2719 = vmatpush1.msra.mxu0 0.0
      %2720 = vmatprep.subr.mxu0 0.0
      %2721 = vmatpush1.msra.mxu0 0.0
      %2722 = vmatprep.subr.mxu0 0.0
      %2723 = vmatpush1.msra.mxu0 0.0
      %2724 = vmatprep.subr.mxu0 0.0
      %2725 = vmatpush1.msra.mxu0 0.0
      %2726 = vmatprep.subr.mxu0 0.0
      %2727 = vmatpush1.msra.mxu0 0.0
      %2728 = vmatprep.subr.mxu0 0.0
      %2729 = vmatpush1.msra.mxu0 0.0
      %2730 = vmatprep.subr.mxu0 0.0
      %2731 = vmatpush1.msra.mxu0 0.0
      %2732 = vmatprep.subr.mxu0 0.0
      %2733 = vmatpush1.msra.mxu0 0.0
      %2734 = vmatprep.subr.mxu0 0.0
      %2735 = vmatpush1.msra.mxu0 0.0
      %2736 = vmatprep.subr.mxu0 0.0
      %2737 = vmatpush1.msra.mxu0 0.0
      %2738 = vmatprep.subr.mxu0 0.0
      %2739 = vmatpush1.msra.mxu0 0.0
      %2740 = vmatprep.subr.mxu0 0.0
      %2741 = vmatpush1.msra.mxu0 0.0
      %2742 = vmatprep.subr.mxu0 0.0
      %2743 = vmatpush1.msra.mxu0 0.0
      %2744 = vmatprep.subr.mxu0 0.0
      %2745 = vmatpush1.msra.mxu0 0.0
      %2746 = vmatprep.subr.mxu0 0.0
      %2747 = vmatpush1.msra.mxu0 0.0
      %2748 = vmatprep.subr.mxu0 0.0
      %2749 = vmatpush1.msra.mxu0 0.0
      %2750 = vmatprep.subr.mxu0 0.0
      %2751 = vmatpush1.msra.mxu0 0.0
      %2752 = vmatprep.subr.mxu0 0.0
      %2753 = vmatpush1.msra.mxu0 0.0
      %2754 = vmatprep.subr.mxu0 0.0
      %2755 = vmatpush1.msra.mxu0 0.0
      %2756 = vmatprep.subr.mxu0 0.0
      %2757 = vmatpush1.msra.mxu0 0.0
      %2758 = vmatprep.subr.mxu0 0.0
      %2759 = vmatpush1.msra.mxu0 0.0
      %2760 = vmatprep.subr.mxu0 0.0
      %2761 = vmatpush1.msra.mxu0 0.0
      %2762 = vmatprep.subr.mxu0 0.0
      %2763 = vmatpush1.msra.mxu0 0.0
      %2764 = vmatprep.subr.mxu0 0.0
      %2765 = vmatpush1.msra.mxu0 0.0
      %2766 = vmatprep.subr.mxu0 0.0
      %2767 = vmatpush1.msra.mxu0 0.0
      %2768 = vmatprep.mubr.f32.mxu0 0.0
      %2769 = vmatmul.mubr.f32.gmra.mrb[0].mxu0 %v2698
      %v2770 = vpop.f32.mrb[0].mxu0
      %v2771 = vadd.f32 0.0, %v2770
      %v2772 = vpop.f32.mrb[0].mxu0
      %2773 = vdwg.mxu0
      %v2775 = vsel %vm2696, %v2693, 0
      %v2778 = vsel %vm2700, %v2611, 0
      %2780 = vmatprep.subr.mxu0 0.0
      %2781 = vmatpush1.msra.mxu0 %v2778
      %2782 = vmatprep.subr.mxu0 0.0
      %2783 = vmatpush1.msra.mxu0 0.0
      %2784 = vmatprep.subr.mxu0 0.0
      %2785 = vmatpush1.msra.mxu0 0.0
      %2786 = vmatprep.subr.mxu0 0.0
      %2787 = vmatpush1.msra.mxu0 0.0
      %2788 = vmatprep.subr.mxu0 0.0
      %2789 = vmatpush1.msra.mxu0 0.0
      %2790 = vmatprep.subr.mxu0 0.0
      %2791 = vmatpush1.msra.mxu0 0.0
      %2792 = vmatprep.subr.mxu0 0.0
      %2793 = vmatpush1.msra.mxu0 0.0
      %2794 = vmatprep.subr.mxu0 0.0
      %2795 = vmatpush1.msra.mxu0 0.0
      %2796 = vmatprep.subr.mxu0 0.0
      %2797 = vmatpush1.msra.mxu0 0.0
      %2798 = vmatprep.subr.mxu0 0.0
      %2799 = vmatpush1.msra.mxu0 0.0
      %2800 = vmatprep.subr.mxu0 0.0
      %2801 = vmatpush1.msra.mxu0 0.0
      %2802 = vmatprep.subr.mxu0 0.0
      %2803 = vmatpush1.msra.mxu0 0.0
      %2804 = vmatprep.subr.mxu0 0.0
      %2805 = vmatpush1.msra.mxu0 0.0
      %2806 = vmatprep.subr.mxu0 0.0
      %2807 = vmatpush1.msra.mxu0 0.0
      %2808 = vmatprep.subr.mxu0 0.0
      %2809 = vmatpush1.msra.mxu0 0.0
      %2810 = vmatprep.subr.mxu0 0.0
      %2811 = vmatpush1.msra.mxu0 0.0
      %2812 = vmatprep.subr.mxu0 0.0
      %2813 = vmatpush1.msra.mxu0 0.0
      %2814 = vmatprep.subr.mxu0 0.0
      %2815 = vmatpush1.msra.mxu0 0.0
      %2816 = vmatprep.subr.mxu0 0.0
      %2817 = vmatpush1.msra.mxu0 0.0
      %2818 = vmatprep.subr.mxu0 0.0
      %2819 = vmatpush1.msra.mxu0 0.0
      %2820 = vmatprep.subr.mxu0 0.0
      %2821 = vmatpush1.msra.mxu0 0.0
      %2822 = vmatprep.subr.mxu0 0.0
      %2823 = vmatpush1.msra.mxu0 0.0
      %2824 = vmatprep.subr.mxu0 0.0
      %2825 = vmatpush1.msra.mxu0 0.0
      %2826 = vmatprep.subr.mxu0 0.0
      %2827 = vmatpush1.msra.mxu0 0.0
      %2828 = vmatprep.subr.mxu0 0.0
      %2829 = vmatpush1.msra.mxu0 0.0
      %2830 = vmatprep.subr.mxu0 0.0
      %2831 = vmatpush1.msra.mxu0 0.0
      %2832 = vmatprep.subr.mxu0 0.0
      %2833 = vmatpush1.msra.mxu0 0.0
      %2834 = vmatprep.subr.mxu0 0.0
      %2835 = vmatpush1.msra.mxu0 0.0
      %2836 = vmatprep.subr.mxu0 0.0
      %2837 = vmatpush1.msra.mxu0 0.0
      %2838 = vmatprep.subr.mxu0 0.0
      %2839 = vmatpush1.msra.mxu0 0.0
      %2840 = vmatprep.subr.mxu0 0.0
      %2841 = vmatpush1.msra.mxu0 0.0
      %2842 = vmatprep.subr.mxu0 0.0
      %2843 = vmatpush1.msra.mxu0 0.0
      %2844 = vmatprep.mubr.f32.mxu0 0.0
      %2845 = vmatmul.mubr.f32.gmra.mrb[0].mxu0 %v2775
      %v2846 = vpop.f32.mrb[0].mxu0
      %v2847 = vadd.f32 %v2771, %v2846
      %v2848 = vpop.f32.mrb[0].mxu0
      %2849 = vdwg.mxu0
      %v2850 = vld [vmem:[%s17] sm:$0x1]
      %v2852 = vlaneseq
      %v2853 = vshrl.u32 %v2852, 7
      %v2854 = vsub.s32 0, %v2853
      %v2855 = vrot.slane %v2850, %v2854
      %v2857 = vadd.f32 %v2847, %v2855
      %v2858 = vld [vmem:[%s18] sm:$0xff]
      %v2859 = vld [vmem:[%s18 + $0x8] sm:$0xff]
      %v2860 = vld [vmem:[%s18 + $0x10] sm:$0xff]
      %v2861 = vld [vmem:[%s18 + $0x18] sm:$0xff]
      %v2862 = vld [vmem:[%s18 + $0x20] sm:$0xff]
      %v2863 = vld [vmem:[%s18 + $0x28] sm:$0xff]
      %v2864 = vld [vmem:[%s18 + $0x30] sm:$0xff]
      %v2865 = vld [vmem:[%s18 + $0x38] sm:$0xff]
      %v2866 = vld [vmem:[%s19] sm:$0xff]
      %v2867 = vld [vmem:[%s19 + $0x8] sm:$0xff]
      %v2868 = vld [vmem:[%s19 + $0x10] sm:$0xff]
      %v2869 = vld [vmem:[%s19 + $0x18] sm:$0xff]
      %v2870 = vld [vmem:[%s19 + $0x20] sm:$0xff]
      %v2871 = vld [vmem:[%s19 + $0x28] sm:$0xff]
      %v2872 = vld [vmem:[%s19 + $0x30] sm:$0xff]
      %v2873 = vld [vmem:[%s19 + $0x38] sm:$0xff]
      %v2874 = vld [vmem:[%s19 + $0x40] sm:$0xff]
      %v2875 = vld [vmem:[%s19 + $0x48] sm:$0xff]
      %v2876 = vld [vmem:[%s19 + $0x50] sm:$0xff]
      %v2877 = vld [vmem:[%s19 + $0x58] sm:$0xff]
      %v2878 = vld [vmem:[%s19 + $0x60] sm:$0xff]
      %v2879 = vld [vmem:[%s19 + $0x68] sm:$0xff]
      %v2880 = vld [vmem:[%s19 + $0x70] sm:$0xff]
      %v2881 = vld [vmem:[%s19 + $0x78] sm:$0xff]
      %2882 = vmatprep.subr.mxu0 0.0
      %2883 = vmatpush1.msra.mxu0 %v2866
      %2884 = vmatprep.subr.mxu0 0.0
      %2885 = vmatpush1.msra.mxu0 %v2867
      %2886 = vmatprep.subr.mxu0 0.0
      %2887 = vmatpush1.msra.mxu0 %v2868
      %2888 = vmatprep.subr.mxu0 0.0
      %2889 = vmatpush1.msra.mxu0 %v2869
      %2890 = vmatprep.subr.mxu0 0.0
      %2891 = vmatpush1.msra.mxu0 %v2870
      %2892 = vmatprep.subr.mxu0 0.0
      %2893 = vmatpush1.msra.mxu0 %v2871
      %2894 = vmatprep.subr.mxu0 0.0
      %2895 = vmatpush1.msra.mxu0 %v2872
      %2896 = vmatprep.subr.mxu0 0.0
      %2897 = vmatpush1.msra.mxu0 %v2873
      %2898 = vmatprep.subr.mxu0 0.0
      %2899 = vmatpush1.msra.mxu0 %v2874
      %2900 = vmatprep.subr.mxu0 0.0
      %2901 = vmatpush1.msra.mxu0 %v2875
      %2902 = vmatprep.subr.mxu0 0.0
      %2903 = vmatpush1.msra.mxu0 %v2876
      %2904 = vmatprep.subr.mxu0 0.0
      %2905 = vmatpush1.msra.mxu0 %v2877
      %2906 = vmatprep.subr.mxu0 0.0
      %2907 = vmatpush1.msra.mxu0 %v2878
      %2908 = vmatprep.subr.mxu0 0.0
      %2909 = vmatpush1.msra.mxu0 %v2879
      %2910 = vmatprep.subr.mxu0 0.0
      %2911 = vmatpush1.msra.mxu0 %v2880
      %2912 = vmatprep.subr.mxu0 0.0
      %2913 = vmatpush1.msra.mxu0 %v2881
      %2914 = vmatprep.subr.mxu0 0.0
      %2915 = vmatpush1.msra.mxu0 0.0
      %2916 = vmatprep.subr.mxu0 0.0
      %2917 = vmatpush1.msra.mxu0 0.0
      %2918 = vmatprep.subr.mxu0 0.0
      %2919 = vmatpush1.msra.mxu0 0.0
      %2920 = vmatprep.subr.mxu0 0.0
      %2921 = vmatpush1.msra.mxu0 0.0
      %2922 = vmatprep.subr.mxu0 0.0
      %2923 = vmatpush1.msra.mxu0 0.0
      %2924 = vmatprep.subr.mxu0 0.0
      %2925 = vmatpush1.msra.mxu0 0.0
      %2926 = vmatprep.subr.mxu0 0.0
      %2927 = vmatpush1.msra.mxu0 0.0
      %2928 = vmatprep.subr.mxu0 0.0
      %2929 = vmatpush1.msra.mxu0 0.0
      %2930 = vmatprep.subr.mxu0 0.0
      %2931 = vmatpush1.msra.mxu0 0.0
      %2932 = vmatprep.subr.mxu0 0.0
      %2933 = vmatpush1.msra.mxu0 0.0
      %2934 = vmatprep.subr.mxu0 0.0
      %2935 = vmatpush1.msra.mxu0 0.0
      %2936 = vmatprep.subr.mxu0 0.0
      %2937 = vmatpush1.msra.mxu0 0.0
      %2938 = vmatprep.subr.mxu0 0.0
      %2939 = vmatpush1.msra.mxu0 0.0
      %2940 = vmatprep.subr.mxu0 0.0
      %2941 = vmatpush1.msra.mxu0 0.0
      %2942 = vmatprep.subr.mxu0 0.0
      %2943 = vmatpush1.msra.mxu0 0.0
      %2944 = vmatprep.subr.mxu0 0.0
      %2945 = vmatpush1.msra.mxu0 0.0
      %2946 = vmatprep.mubr.f32.mxu0 0.0
      %2947 = vmatmul.mubr.f32.gmra.mrb[0].mxu0 %v2857
      %v2948 = vpop.f32.mrb[0].mxu0
      %v2949 = vadd.f32 0.0, %v2948
      %v2950 = vpop.f32.mrb[0].mxu0
      %2951 = vdwg.mxu0
      %v2954 = vrot.slane %v1597, 4
      %v2955 = vrot.slane %v1598, 4
      %v2956 = vsel %vm2700, %v2954, %v2955
      %2957 = vrot.lane.b32.xlu0 %v2956, 96
      %v2958 = vpop.permute.xlu0 %2957
      %v2959 = vsel %vm1942, %v2958, 0
      %2961 = vmatprep.subr.mxu0 0.0
      %2962 = vmatpush1.msra.mxu0 %v2858
      %2963 = vmatprep.subr.mxu0 0.0
      %2964 = vmatpush1.msra.mxu0 %v2859
      %2965 = vmatprep.subr.mxu0 0.0
      %2966 = vmatpush1.msra.mxu0 %v2860
      %2967 = vmatprep.subr.mxu0 0.0
      %2968 = vmatpush1.msra.mxu0 %v2861
      %2969 = vmatprep.subr.mxu0 0.0
      %2970 = vmatpush1.msra.mxu0 %v2862
      %2971 = vmatprep.subr.mxu0 0.0
      %2972 = vmatpush1.msra.mxu0 %v2863
      %2973 = vmatprep.subr.mxu0 0.0
      %2974 = vmatpush1.msra.mxu0 %v2864
      %2975 = vmatprep.subr.mxu0 0.0
      %2976 = vmatpush1.msra.mxu0 %v2865
      %2977 = vmatprep.subr.mxu0 0.0
      %2978 = vmatpush1.msra.mxu0 0.0
      %2979 = vmatprep.subr.mxu0 0.0
      %2980 = vmatpush1.msra.mxu0 0.0
      %2981 = vmatprep.subr.mxu0 0.0
      %2982 = vmatpush1.msra.mxu0 0.0
      %2983 = vmatprep.subr.mxu0 0.0
      %2984 = vmatpush1.msra.mxu0 0.0
      %2985 = vmatprep.subr.mxu0 0.0
      %2986 = vmatpush1.msra.mxu0 0.0
      %2987 = vmatprep.subr.mxu0 0.0
      %2988 = vmatpush1.msra.mxu0 0.0
      %2989 = vmatprep.subr.mxu0 0.0
      %2990 = vmatpush1.msra.mxu0 0.0
      %2991 = vmatprep.subr.mxu0 0.0
      %2992 = vmatpush1.msra.mxu0 0.0
      %2993 = vmatprep.subr.mxu0 0.0
      %2994 = vmatpush1.msra.mxu0 0.0
      %2995 = vmatprep.subr.mxu0 0.0
      %2996 = vmatpush1.msra.mxu0 0.0
      %2997 = vmatprep.subr.mxu0 0.0
      %2998 = vmatpush1.msra.mxu0 0.0
      %2999 = vmatprep.subr.mxu0 0.0
      %3000 = vmatpush1.msra.mxu0 0.0
      %3001 = vmatprep.subr.mxu0 0.0
      %3002 = vmatpush1.msra.mxu0 0.0
      %3003 = vmatprep.subr.mxu0 0.0
      %3004 = vmatpush1.msra.mxu0 0.0
      %3005 = vmatprep.subr.mxu0 0.0
      %3006 = vmatpush1.msra.mxu0 0.0
      %3007 = vmatprep.subr.mxu0 0.0
      %3008 = vmatpush1.msra.mxu0 0.0
      %3009 = vmatprep.subr.mxu0 0.0
      %3010 = vmatpush1.msra.mxu0 0.0
      %3011 = vmatprep.subr.mxu0 0.0
      %3012 = vmatpush1.msra.mxu0 0.0
      %3013 = vmatprep.subr.mxu0 0.0
      %3014 = vmatpush1.msra.mxu0 0.0
      %3015 = vmatprep.subr.mxu0 0.0
      %3016 = vmatpush1.msra.mxu0 0.0
      %3017 = vmatprep.subr.mxu0 0.0
      %3018 = vmatpush1.msra.mxu0 0.0
      %3019 = vmatprep.subr.mxu0 0.0
      %3020 = vmatpush1.msra.mxu0 0.0
      %3021 = vmatprep.subr.mxu0 0.0
      %3022 = vmatpush1.msra.mxu0 0.0
      %3023 = vmatprep.subr.mxu0 0.0
      %3024 = vmatpush1.msra.mxu0 0.0
      %3025 = vmatprep.mubr.f32.mxu0 0.0
      %3026 = vmatmul.mubr.f32.gmra.mrb[0].mxu0 %v2959
      %v3027 = vpop.f32.mrb[0].mxu0
      %v3028 = vadd.f32 %v2949, %v3027
      %v3029 = vpop.f32.mrb[0].mxu0
      %3030 = vdwg.mxu0
      %s3031 = scalar_lea.vmem %s18, 64
      %v3032 = vld [vmem:[%s3031] sm:$0xff]
      %v3033 = vld [vmem:[%s3031 + $0x8] sm:$0xff]
      %v3034 = vld [vmem:[%s3031 + $0x10] sm:$0xff]
      %v3035 = vld [vmem:[%s3031 + $0x18] sm:$0xff]
      %v3036 = vld [vmem:[%s3031 + $0x20] sm:$0xff]
      %v3037 = vld [vmem:[%s3031 + $0x28] sm:$0xff]
      %v3038 = vld [vmem:[%s3031 + $0x30] sm:$0xff]
      %v3039 = vld [vmem:[%s3031 + $0x38] sm:$0xff]
      %vm3040 = vcmask 1042432
      %v3041 = vrot.slane %v1597, 5
      %v3042 = vrot.slane %v1598, 5
      %v3043 = vsel %vm3040, %v3041, %v3042
      %3044 = vrot.lane.b32.xlu0 %v3043, 96
      %v3045 = vpop.permute.xlu0 %3044
      %v3046 = vsel %vm1942, %v3045, 0
      %3048 = vmatprep.subr.mxu0 0.0
      %3049 = vmatpush1.msra.mxu0 %v3032
      %3050 = vmatprep.subr.mxu0 0.0
      %3051 = vmatpush1.msra.mxu0 %v3033
      %3052 = vmatprep.subr.mxu0 0.0
      %3053 = vmatpush1.msra.mxu0 %v3034
      %3054 = vmatprep.subr.mxu0 0.0
      %3055 = vmatpush1.msra.mxu0 %v3035
      %3056 = vmatprep.subr.mxu0 0.0
      %3057 = vmatpush1.msra.mxu0 %v3036
      %3058 = vmatprep.subr.mxu0 0.0
      %3059 = vmatpush1.msra.mxu0 %v3037
      %3060 = vmatprep.subr.mxu0 0.0
      %3061 = vmatpush1.msra.mxu0 %v3038
      %3062 = vmatprep.subr.mxu0 0.0
      %3063 = vmatpush1.msra.mxu0 %v3039
      %3064 = vmatprep.subr.mxu0 0.0
      %3065 = vmatpush1.msra.mxu0 0.0
      %3066 = vmatprep.subr.mxu0 0.0
      %3067 = vmatpush1.msra.mxu0 0.0
      %3068 = vmatprep.subr.mxu0 0.0
      %3069 = vmatpush1.msra.mxu0 0.0
      %3070 = vmatprep.subr.mxu0 0.0
      %3071 = vmatpush1.msra.mxu0 0.0
      %3072 = vmatprep.subr.mxu0 0.0
      %3073 = vmatpush1.msra.mxu0 0.0
      %3074 = vmatprep.subr.mxu0 0.0
      %3075 = vmatpush1.msra.mxu0 0.0
      %3076 = vmatprep.subr.mxu0 0.0
      %3077 = vmatpush1.msra.mxu0 0.0
      %3078 = vmatprep.subr.mxu0 0.0
      %3079 = vmatpush1.msra.mxu0 0.0
      %3080 = vmatprep.subr.mxu0 0.0
      %3081 = vmatpush1.msra.mxu0 0.0
      %3082 = vmatprep.subr.mxu0 0.0
      %3083 = vmatpush1.msra.mxu0 0.0
      %3084 = vmatprep.subr.mxu0 0.0
      %3085 = vmatpush1.msra.mxu0 0.0
      %3086 = vmatprep.subr.mxu0 0.0
      %3087 = vmatpush1.msra.mxu0 0.0
      %3088 = vmatprep.subr.mxu0 0.0
      %3089 = vmatpush1.msra.mxu0 0.0
      %3090 = vmatprep.subr.mxu0 0.0
      %3091 = vmatpush1.msra.mxu0 0.0
      %3092 = vmatprep.subr.mxu0 0.0
      %3093 = vmatpush1.msra.mxu0 0.0
      %3094 = vmatprep.subr.mxu0 0.0
      %3095 = vmatpush1.msra.mxu0 0.0
      %3096 = vmatprep.subr.mxu0 0.0
      %3097 = vmatpush1.msra.mxu0 0.0
      %3098 = vmatprep.subr.mxu0 0.0
      %3099 = vmatpush1.msra.mxu0 0.0
      %3100 = vmatprep.subr.mxu0 0.0
      %3101 = vmatpush1.msra.mxu0 0.0
      %3102 = vmatprep.subr.mxu0 0.0
      %3103 = vmatpush1.msra.mxu0 0.0
      %3104 = vmatprep.subr.mxu0 0.0
      %3105 = vmatpush1.msra.mxu0 0.0
      %3106 = vmatprep.subr.mxu0 0.0
      %3107 = vmatpush1.msra.mxu0 0.0
      %3108 = vmatprep.subr.mxu0 0.0
      %3109 = vmatpush1.msra.mxu0 0.0
      %3110 = vmatprep.subr.mxu0 0.0
      %3111 = vmatpush1.msra.mxu0 0.0
      %3112 = vmatprep.mubr.f32.mxu0 0.0
      %3113 = vmatmul.mubr.f32.gmra.mrb[0].mxu0 %v3046
      %v3114 = vpop.f32.mrb[0].mxu0
      %v3115 = vadd.f32 0.0, %v3114
      %v3116 = vpop.f32.mrb[0].mxu0
      %3117 = vdwg.mxu0
      %v3118 = vadd.f32 %v3028, %v3115
      %s3119 = scalar_lea.vmem %s19, 128
      %v3120 = vld [vmem:[%s3119] sm:$0xff]
      %v3121 = vld [vmem:[%s3119 + $0x8] sm:$0xff]
      %v3122 = vld [vmem:[%s3119 + $0x10] sm:$0xff]
      %v3123 = vld [vmem:[%s3119 + $0x18] sm:$0xff]
      %v3124 = vld [vmem:[%s3119 + $0x20] sm:$0xff]
      %v3125 = vld [vmem:[%s3119 + $0x28] sm:$0xff]
      %v3126 = vld [vmem:[%s3119 + $0x30] sm:$0xff]
      %v3127 = vld [vmem:[%s3119 + $0x38] sm:$0xff]
      %v3128 = vld [vmem:[%s3119 + $0x40] sm:$0xff]
      %v3129 = vld [vmem:[%s3119 + $0x48] sm:$0xff]
      %v3130 = vld [vmem:[%s3119 + $0x50] sm:$0xff]
      %v3131 = vld [vmem:[%s3119 + $0x58] sm:$0xff]
      %v3132 = vld [vmem:[%s3119 + $0x60] sm:$0xff]
      %v3133 = vld [vmem:[%s3119 + $0x68] sm:$0xff]
      %v3134 = vld [vmem:[%s3119 + $0x70] sm:$0xff]
      %v3135 = vld [vmem:[%s3119 + $0x78] sm:$0xff]
      %v3137 = vrot.slane %v2857, 1
      %3139 = vmatprep.subr.mxu0 0.0
      %3140 = vmatpush1.msra.mxu0 %v3120
      %3141 = vmatprep.subr.mxu0 0.0
      %3142 = vmatpush1.msra.mxu0 %v3121
      %3143 = vmatprep.subr.mxu0 0.0
      %3144 = vmatpush1.msra.mxu0 %v3122
      %3145 = vmatprep.subr.mxu0 0.0
      %3146 = vmatpush1.msra.mxu0 %v3123
      %3147 = vmatprep.subr.mxu0 0.0
      %3148 = vmatpush1.msra.mxu0 %v3124
      %3149 = vmatprep.subr.mxu0 0.0
      %3150 = vmatpush1.msra.mxu0 %v3125
      %3151 = vmatprep.subr.mxu0 0.0
      %3152 = vmatpush1.msra.mxu0 %v3126
      %3153 = vmatprep.subr.mxu0 0.0
      %3154 = vmatpush1.msra.mxu0 %v3127
      %3155 = vmatprep.subr.mxu0 0.0
      %3156 = vmatpush1.msra.mxu0 %v3128
      %3157 = vmatprep.subr.mxu0 0.0
      %3158 = vmatpush1.msra.mxu0 %v3129
      %3159 = vmatprep.subr.mxu0 0.0
      %3160 = vmatpush1.msra.mxu0 %v3130
      %3161 = vmatprep.subr.mxu0 0.0
      %3162 = vmatpush1.msra.mxu0 %v3131
      %3163 = vmatprep.subr.mxu0 0.0
      %3164 = vmatpush1.msra.mxu0 %v3132
      %3165 = vmatprep.subr.mxu0 0.0
      %3166 = vmatpush1.msra.mxu0 %v3133
      %3167 = vmatprep.subr.mxu0 0.0
      %3168 = vmatpush1.msra.mxu0 %v3134
      %3169 = vmatprep.subr.mxu0 0.0
      %3170 = vmatpush1.msra.mxu0 %v3135
      %3171 = vmatprep.subr.mxu0 0.0
      %3172 = vmatpush1.msra.mxu0 0.0
      %3173 = vmatprep.subr.mxu0 0.0
      %3174 = vmatpush1.msra.mxu0 0.0
      %3175 = vmatprep.subr.mxu0 0.0
      %3176 = vmatpush1.msra.mxu0 0.0
      %3177 = vmatprep.subr.mxu0 0.0
      %3178 = vmatpush1.msra.mxu0 0.0
      %3179 = vmatprep.subr.mxu0 0.0
      %3180 = vmatpush1.msra.mxu0 0.0
      %3181 = vmatprep.subr.mxu0 0.0
      %3182 = vmatpush1.msra.mxu0 0.0
      %3183 = vmatprep.subr.mxu0 0.0
      %3184 = vmatpush1.msra.mxu0 0.0
      %3185 = vmatprep.subr.mxu0 0.0
      %3186 = vmatpush1.msra.mxu0 0.0
      %3187 = vmatprep.subr.mxu0 0.0
      %3188 = vmatpush1.msra.mxu0 0.0
      %3189 = vmatprep.subr.mxu0 0.0
      %3190 = vmatpush1.msra.mxu0 0.0
      %3191 = vmatprep.subr.mxu0 0.0
      %3192 = vmatpush1.msra.mxu0 0.0
      %3193 = vmatprep.subr.mxu0 0.0
      %3194 = vmatpush1.msra.mxu0 0.0
      %3195 = vmatprep.subr.mxu0 0.0
      %3196 = vmatpush1.msra.mxu0 0.0
      %3197 = vmatprep.subr.mxu0 0.0
      %3198 = vmatpush1.msra.mxu0 0.0
      %3199 = vmatprep.subr.mxu0 0.0
      %3200 = vmatpush1.msra.mxu0 0.0
      %3201 = vmatprep.subr.mxu0 0.0
      %3202 = vmatpush1.msra.mxu0 0.0
      %3203 = vmatprep.mubr.f32.mxu0 0.0
      %3204 = vmatmul.mubr.f32.gmra.mrb[0].mxu0 %v3137
      %v3205 = vpop.f32.mrb[0].mxu0
      %v3206 = vadd.f32 0.0, %v3205
      %v3207 = vpop.f32.mrb[0].mxu0
      %3208 = vdwg.mxu0
      %v3209 = vadd.f32 %v3118, %v3206
      %s3210 = scalar_lea.vmem %s18, 128
      %v3211 = vld [vmem:[%s3210] sm:$0xff]
      %v3212 = vld [vmem:[%s3210 + $0x8] sm:$0xff]
      %v3213 = vld [vmem:[%s3210 + $0x10] sm:$0xff]
      %v3214 = vld [vmem:[%s3210 + $0x18] sm:$0xff]
      %v3215 = vld [vmem:[%s3210 + $0x20] sm:$0xff]
      %v3216 = vld [vmem:[%s3210 + $0x28] sm:$0xff]
      %v3217 = vld [vmem:[%s3210 + $0x30] sm:$0xff]
      %v3218 = vld [vmem:[%s3210 + $0x38] sm:$0xff]
      %vm3219 = vcmask 1041408
      %v3220 = vrot.slane %v1597, 6
      %v3221 = vrot.slane %v1598, 6
      %v3222 = vsel %vm3219, %v3220, %v3221
      %3223 = vrot.lane.b32.xlu0 %v3222, 96
      %v3224 = vpop.permute.xlu0 %3223
      %v3225 = vsel %vm1942, %v3224, 0
      %3227 = vmatprep.subr.mxu0 0.0
      %3228 = vmatpush1.msra.mxu0 %v3211
      %3229 = vmatprep.subr.mxu0 0.0
      %3230 = vmatpush1.msra.mxu0 %v3212
      %3231 = vmatprep.subr.mxu0 0.0
      %3232 = vmatpush1.msra.mxu0 %v3213
      %3233 = vmatprep.subr.mxu0 0.0
      %3234 = vmatpush1.msra.mxu0 %v3214
      %3235 = vmatprep.subr.mxu0 0.0
      %3236 = vmatpush1.msra.mxu0 %v3215
      %3237 = vmatprep.subr.mxu0 0.0
      %3238 = vmatpush1.msra.mxu0 %v3216
      %3239 = vmatprep.subr.mxu0 0.0
      %3240 = vmatpush1.msra.mxu0 %v3217
      %3241 = vmatprep.subr.mxu0 0.0
      %3242 = vmatpush1.msra.mxu0 %v3218
      %3243 = vmatprep.subr.mxu0 0.0
      %3244 = vmatpush1.msra.mxu0 0.0
      %3245 = vmatprep.subr.mxu0 0.0
      %3246 = vmatpush1.msra.mxu0 0.0
      %3247 = vmatprep.subr.mxu0 0.0
      %3248 = vmatpush1.msra.mxu0 0.0
      %3249 = vmatprep.subr.mxu0 0.0
      %3250 = vmatpush1.msra.mxu0 0.0
      %3251 = vmatprep.subr.mxu0 0.0
      %3252 = vmatpush1.msra.mxu0 0.0
      %3253 = vmatprep.subr.mxu0 0.0
      %3254 = vmatpush1.msra.mxu0 0.0
      %3255 = vmatprep.subr.mxu0 0.0
      %3256 = vmatpush1.msra.mxu0 0.0
      %3257 = vmatprep.subr.mxu0 0.0
      %3258 = vmatpush1.msra.mxu0 0.0
      %3259 = vmatprep.subr.mxu0 0.0
      %3260 = vmatpush1.msra.mxu0 0.0
      %3261 = vmatprep.subr.mxu0 0.0
      %3262 = vmatpush1.msra.mxu0 0.0
      %3263 = vmatprep.subr.mxu0 0.0
      %3264 = vmatpush1.msra.mxu0 0.0
      %3265 = vmatprep.subr.mxu0 0.0
      %3266 = vmatpush1.msra.mxu0 0.0
      %3267 = vmatprep.subr.mxu0 0.0
      %3268 = vmatpush1.msra.mxu0 0.0
      %3269 = vmatprep.subr.mxu0 0.0
      %3270 = vmatpush1.msra.mxu0 0.0
      %3271 = vmatprep.subr.mxu0 0.0
      %3272 = vmatpush1.msra.mxu0 0.0
      %3273 = vmatprep.subr.mxu0 0.0
      %3274 = vmatpush1.msra.mxu0 0.0
      %3275 = vmatprep.subr.mxu0 0.0
      %3276 = vmatpush1.msra.mxu0 0.0
      %3277 = vmatprep.subr.mxu0 0.0
      %3278 = vmatpush1.msra.mxu0 0.0
      %3279 = vmatprep.subr.mxu0 0.0
      %3280 = vmatpush1.msra.mxu0 0.0
      %3281 = vmatprep.subr.mxu0 0.0
      %3282 = vmatpush1.msra.mxu0 0.0
      %3283 = vmatprep.subr.mxu0 0.0
      %3284 = vmatpush1.msra.mxu0 0.0
      %3285 = vmatprep.subr.mxu0 0.0
      %3286 = vmatpush1.msra.mxu0 0.0
      %3287 = vmatprep.subr.mxu0 0.0
      %3288 = vmatpush1.msra.mxu0 0.0
      %3289 = vmatprep.subr.mxu0 0.0
      %3290 = vmatpush1.msra.mxu0 0.0
      %3291 = vmatprep.mubr.f32.mxu0 0.0
      %3292 = vmatmul.mubr.f32.gmra.mrb[0].mxu0 %v3225
      %v3293 = vpop.f32.mrb[0].mxu0
      %v3294 = vadd.f32 0.0, %v3293
      %v3295 = vpop.f32.mrb[0].mxu0
      %3296 = vdwg.mxu0
      %v3297 = vadd.f32 %v3209, %v3294
      %s3298 = scalar_lea.vmem %s19, 256
      %v3299 = vld [vmem:[%s3298] sm:$0xff]
      %v3300 = vld [vmem:[%s3298 + $0x8] sm:$0xff]
      %v3301 = vld [vmem:[%s3298 + $0x10] sm:$0xff]
      %v3302 = vld [vmem:[%s3298 + $0x18] sm:$0xff]
      %v3303 = vld [vmem:[%s3298 + $0x20] sm:$0xff]
      %v3304 = vld [vmem:[%s3298 + $0x28] sm:$0xff]
      %v3305 = vld [vmem:[%s3298 + $0x30] sm:$0xff]
      %v3306 = vld [vmem:[%s3298 + $0x38] sm:$0xff]
      %v3307 = vld [vmem:[%s3298 + $0x40] sm:$0xff]
      %v3308 = vld [vmem:[%s3298 + $0x48] sm:$0xff]
      %v3309 = vld [vmem:[%s3298 + $0x50] sm:$0xff]
      %v3310 = vld [vmem:[%s3298 + $0x58] sm:$0xff]
      %v3311 = vld [vmem:[%s3298 + $0x60] sm:$0xff]
      %v3312 = vld [vmem:[%s3298 + $0x68] sm:$0xff]
      %v3313 = vld [vmem:[%s3298 + $0x70] sm:$0xff]
      %v3314 = vld [vmem:[%s3298 + $0x78] sm:$0xff]
      %v3315 = vrot.slane %v2857, 2
      %3317 = vmatprep.subr.mxu0 0.0
      %3318 = vmatpush1.msra.mxu0 %v3299
      %3319 = vmatprep.subr.mxu0 0.0
      %3320 = vmatpush1.msra.mxu0 %v3300
      %3321 = vmatprep.subr.mxu0 0.0
      %3322 = vmatpush1.msra.mxu0 %v3301
      %3323 = vmatprep.subr.mxu0 0.0
      %3324 = vmatpush1.msra.mxu0 %v3302
      %3325 = vmatprep.subr.mxu0 0.0
      %3326 = vmatpush1.msra.mxu0 %v3303
      %3327 = vmatprep.subr.mxu0 0.0
      %3328 = vmatpush1.msra.mxu0 %v3304
      %3329 = vmatprep.subr.mxu0 0.0
      %3330 = vmatpush1.msra.mxu0 %v3305
      %3331 = vmatprep.subr.mxu0 0.0
      %3332 = vmatpush1.msra.mxu0 %v3306
      %3333 = vmatprep.subr.mxu0 0.0
      %3334 = vmatpush1.msra.mxu0 %v3307
      %3335 = vmatprep.subr.mxu0 0.0
      %3336 = vmatpush1.msra.mxu0 %v3308
      %3337 = vmatprep.subr.mxu0 0.0
      %3338 = vmatpush1.msra.mxu0 %v3309
      %3339 = vmatprep.subr.mxu0 0.0
      %3340 = vmatpush1.msra.mxu0 %v3310
      %3341 = vmatprep.subr.mxu0 0.0
      %3342 = vmatpush1.msra.mxu0 %v3311
      %3343 = vmatprep.subr.mxu0 0.0
      %3344 = vmatpush1.msra.mxu0 %v3312
      %3345 = vmatprep.subr.mxu0 0.0
      %3346 = vmatpush1.msra.mxu0 %v3313
      %3347 = vmatprep.subr.mxu0 0.0
      %3348 = vmatpush1.msra.mxu0 %v3314
      %3349 = vmatprep.subr.mxu0 0.0
      %3350 = vmatpush1.msra.mxu0 0.0
      %3351 = vmatprep.subr.mxu0 0.0
      %3352 = vmatpush1.msra.mxu0 0.0
      %3353 = vmatprep.subr.mxu0 0.0
      %3354 = vmatpush1.msra.mxu0 0.0
      %3355 = vmatprep.subr.mxu0 0.0
      %3356 = vmatpush1.msra.mxu0 0.0
      %3357 = vmatprep.subr.mxu0 0.0
      %3358 = vmatpush1.msra.mxu0 0.0
      %3359 = vmatprep.subr.mxu0 0.0
      %3360 = vmatpush1.msra.mxu0 0.0
      %3361 = vmatprep.subr.mxu0 0.0
      %3362 = vmatpush1.msra.mxu0 0.0
      %3363 = vmatprep.subr.mxu0 0.0
      %3364 = vmatpush1.msra.mxu0 0.0
      %3365 = vmatprep.subr.mxu0 0.0
      %3366 = vmatpush1.msra.mxu0 0.0
      %3367 = vmatprep.subr.mxu0 0.0
      %3368 = vmatpush1.msra.mxu0 0.0
      %3369 = vmatprep.subr.mxu0 0.0
      %3370 = vmatpush1.msra.mxu0 0.0
      %3371 = vmatprep.subr.mxu0 0.0
      %3372 = vmatpush1.msra.mxu0 0.0
      %3373 = vmatprep.subr.mxu0 0.0
      %3374 = vmatpush1.msra.mxu0 0.0
      %3375 = vmatprep.subr.mxu0 0.0
      %3376 = vmatpush1.msra.mxu0 0.0
      %3377 = vmatprep.subr.mxu0 0.0
      %3378 = vmatpush1.msra.mxu0 0.0
      %3379 = vmatprep.subr.mxu0 0.0
      %3380 = vmatpush1.msra.mxu0 0.0
      %3381 = vmatprep.mubr.f32.mxu0 0.0
      %3382 = vmatmul.mubr.f32.gmra.mrb[0].mxu0 %v3315
      %v3383 = vpop.f32.mrb[0].mxu0
      %v3384 = vadd.f32 0.0, %v3383
      %v3385 = vpop.f32.mrb[0].mxu0
      %3386 = vdwg.mxu0
      %v3387 = vadd.f32 %v3297, %v3384
      %v3388 = vld [vmem:[%s20] sm:$0x1]
      %v3390 = vlaneseq
      %v3391 = vshrl.u32 %v3390, 7
      %v3392 = vsub.s32 0, %v3391
      %v3393 = vrot.slane %v3388, %v3392
      %v3395 = vadd.f32 %v3387, %v3393
      %v3396 = vmax.f32 %v3395, 0.0
      %v3397 = vld [vmem:[%s21] sm:$0xff]
      %v3398 = vld [vmem:[%s21 + $0x8] sm:$0xff]
      %v3399 = vld [vmem:[%s21 + $0x10] sm:$0xff]
      %v3400 = vld [vmem:[%s21 + $0x18] sm:$0xff]
      %v3401 = vld [vmem:[%s21 + $0x20] sm:$0xff]
      %v3402 = vld [vmem:[%s21 + $0x28] sm:$0xff]
      %s3403 = scalar_lea.vmem %s21, 48
      %v3404 = vld [vmem:[%s3403] sm:$0xff]
      %v3405 = vld [vmem:[%s3403 + $0x8] sm:$0xff]
      %v3406 = vld [vmem:[%s3403 + $0x10] sm:$0xff]
      %v3407 = vld [vmem:[%s3403 + $0x18] sm:$0xff]
      %v3408 = vld [vmem:[%s3403 + $0x20] sm:$0xff]
      %v3409 = vld [vmem:[%s3403 + $0x28] sm:$0xff]
      %v3411 = vrot.slane %v3396, 1
      %vm3412 = vcmask 392192
      %v3413 = vsel %vm3412, %v3411, 0
      %3415 = vmatprep.subr.mxu0 0.0
      %3416 = vmatpush1.msra.mxu0 %v3404
      %3417 = vmatprep.subr.mxu0 0.0
      %3418 = vmatpush1.msra.mxu0 %v3405
      %3419 = vmatprep.subr.mxu0 0.0
      %3420 = vmatpush1.msra.mxu0 %v3406
      %3421 = vmatprep.subr.mxu0 0.0
      %3422 = vmatpush1.msra.mxu0 %v3407
      %3423 = vmatprep.subr.mxu0 0.0
      %3424 = vmatpush1.msra.mxu0 %v3408
      %3425 = vmatprep.subr.mxu0 0.0
      %3426 = vmatpush1.msra.mxu0 %v3409
      %3427 = vmatprep.subr.mxu0 0.0
      %3428 = vmatpush1.msra.mxu0 0.0
      %3429 = vmatprep.subr.mxu0 0.0
      %3430 = vmatpush1.msra.mxu0 0.0
      %3431 = vmatprep.subr.mxu0 0.0
      %3432 = vmatpush1.msra.mxu0 0.0
      %3433 = vmatprep.subr.mxu0 0.0
      %3434 = vmatpush1.msra.mxu0 0.0
      %3435 = vmatprep.subr.mxu0 0.0
      %3436 = vmatpush1.msra.mxu0 0.0
      %3437 = vmatprep.subr.mxu0 0.0
      %3438 = vmatpush1.msra.mxu0 0.0
      %3439 = vmatprep.subr.mxu0 0.0
      %3440 = vmatpush1.msra.mxu0 0.0
      %3441 = vmatprep.subr.mxu0 0.0
      %3442 = vmatpush1.msra.mxu0 0.0
      %3443 = vmatprep.subr.mxu0 0.0
      %3444 = vmatpush1.msra.mxu0 0.0
      %3445 = vmatprep.subr.mxu0 0.0
      %3446 = vmatpush1.msra.mxu0 0.0
      %3447 = vmatprep.subr.mxu0 0.0
      %3448 = vmatpush1.msra.mxu0 0.0
      %3449 = vmatprep.subr.mxu0 0.0
      %3450 = vmatpush1.msra.mxu0 0.0
      %3451 = vmatprep.subr.mxu0 0.0
      %3452 = vmatpush1.msra.mxu0 0.0
      %3453 = vmatprep.subr.mxu0 0.0
      %3454 = vmatpush1.msra.mxu0 0.0
      %3455 = vmatprep.subr.mxu0 0.0
      %3456 = vmatpush1.msra.mxu0 0.0
      %3457 = vmatprep.subr.mxu0 0.0
      %3458 = vmatpush1.msra.mxu0 0.0
      %3459 = vmatprep.subr.mxu0 0.0
      %3460 = vmatpush1.msra.mxu0 0.0
      %3461 = vmatprep.subr.mxu0 0.0
      %3462 = vmatpush1.msra.mxu0 0.0
      %3463 = vmatprep.subr.mxu0 0.0
      %3464 = vmatpush1.msra.mxu0 0.0
      %3465 = vmatprep.subr.mxu0 0.0
      %3466 = vmatpush1.msra.mxu0 0.0
      %3467 = vmatprep.subr.mxu0 0.0
      %3468 = vmatpush1.msra.mxu0 0.0
      %3469 = vmatprep.subr.mxu0 0.0
      %3470 = vmatpush1.msra.mxu0 0.0
      %3471 = vmatprep.subr.mxu0 0.0
      %3472 = vmatpush1.msra.mxu0 0.0
      %3473 = vmatprep.subr.mxu0 0.0
      %3474 = vmatpush1.msra.mxu0 0.0
      %3475 = vmatprep.subr.mxu0 0.0
      %3476 = vmatpush1.msra.mxu0 0.0
      %3477 = vmatprep.subr.mxu0 0.0
      %3478 = vmatpush1.msra.mxu0 0.0
      %3479 = vmatprep.mubr.f32.mxu0 0.0
      %3480 = vmatmul.mubr.f32.gmra.mrb[0].mxu0 %v3413
      %v3481 = vpop.f32.mrb[0].mxu0
      %v3482 = vadd.f32 0.0, %v3481
      %v3483 = vpop.f32.mrb[0].mxu0
      %3484 = vdwg.mxu0
      %v3485 = vsel %vm3412, %v3396, 0
      %3487 = vmatprep.subr.mxu0 0.0
      %3488 = vmatpush1.msra.mxu0 %v3397
      %3489 = vmatprep.subr.mxu0 0.0
      %3490 = vmatpush1.msra.mxu0 %v3398
      %3491 = vmatprep.subr.mxu0 0.0
      %3492 = vmatpush1.msra.mxu0 %v3399
      %3493 = vmatprep.subr.mxu0 0.0
      %3494 = vmatpush1.msra.mxu0 %v3400
      %3495 = vmatprep.subr.mxu0 0.0
      %3496 = vmatpush1.msra.mxu0 %v3401
      %3497 = vmatprep.subr.mxu0 0.0
      %3498 = vmatpush1.msra.mxu0 %v3402
      %3499 = vmatprep.subr.mxu0 0.0
      %3500 = vmatpush1.msra.mxu0 0.0
      %3501 = vmatprep.subr.mxu0 0.0
      %3502 = vmatpush1.msra.mxu0 0.0
      %3503 = vmatprep.subr.mxu0 0.0
      %3504 = vmatpush1.msra.mxu0 0.0
      %3505 = vmatprep.subr.mxu0 0.0
      %3506 = vmatpush1.msra.mxu0 0.0
      %3507 = vmatprep.subr.mxu0 0.0
      %3508 = vmatpush1.msra.mxu0 0.0
      %3509 = vmatprep.subr.mxu0 0.0
      %3510 = vmatpush1.msra.mxu0 0.0
      %3511 = vmatprep.subr.mxu0 0.0
      %3512 = vmatpush1.msra.mxu0 0.0
      %3513 = vmatprep.subr.mxu0 0.0
      %3514 = vmatpush1.msra.mxu0 0.0
      %3515 = vmatprep.subr.mxu0 0.0
      %3516 = vmatpush1.msra.mxu0 0.0
      %3517 = vmatprep.subr.mxu0 0.0
      %3518 = vmatpush1.msra.mxu0 0.0
      %3519 = vmatprep.subr.mxu0 0.0
      %3520 = vmatpush1.msra.mxu0 0.0
      %3521 = vmatprep.subr.mxu0 0.0
      %3522 = vmatpush1.msra.mxu0 0.0
      %3523 = vmatprep.subr.mxu0 0.0
      %3524 = vmatpush1.msra.mxu0 0.0
      %3525 = vmatprep.subr.mxu0 0.0
      %3526 = vmatpush1.msra.mxu0 0.0
      %3527 = vmatprep.subr.mxu0 0.0
      %3528 = vmatpush1.msra.mxu0 0.0
      %3529 = vmatprep.subr.mxu0 0.0
      %3530 = vmatpush1.msra.mxu0 0.0
      %3531 = vmatprep.subr.mxu0 0.0
      %3532 = vmatpush1.msra.mxu0 0.0
      %3533 = vmatprep.subr.mxu0 0.0
      %3534 = vmatpush1.msra.mxu0 0.0
      %3535 = vmatprep.subr.mxu0 0.0
      %3536 = vmatpush1.msra.mxu0 0.0
      %3537 = vmatprep.subr.mxu0 0.0
      %3538 = vmatpush1.msra.mxu0 0.0
      %3539 = vmatprep.subr.mxu0 0.0
      %3540 = vmatpush1.msra.mxu0 0.0
      %3541 = vmatprep.subr.mxu0 0.0
      %3542 = vmatpush1.msra.mxu0 0.0
      %3543 = vmatprep.subr.mxu0 0.0
      %3544 = vmatpush1.msra.mxu0 0.0
      %3545 = vmatprep.subr.mxu0 0.0
      %3546 = vmatpush1.msra.mxu0 0.0
      %3547 = vmatprep.subr.mxu0 0.0
      %3548 = vmatpush1.msra.mxu0 0.0
      %3549 = vmatprep.subr.mxu0 0.0
      %3550 = vmatpush1.msra.mxu0 0.0
      %3551 = vmatprep.mubr.f32.mxu0 0.0
      %3552 = vmatmul.mubr.f32.gmra.mrb[0].mxu0 %v3485
      %v3553 = vpop.f32.mrb[0].mxu0
      %v3554 = vadd.f32 %v3482, %v3553
      %v3555 = vpop.f32.mrb[0].mxu0
      %3556 = vdwg.mxu0
      %s3557 = scalar_lea.vmem %s21, 96
      %v3558 = vld [vmem:[%s3557] sm:$0xff]
      %v3559 = vld [vmem:[%s3557 + $0x8] sm:$0xff]
      %v3560 = vld [vmem:[%s3557 + $0x10] sm:$0xff]
      %v3561 = vld [vmem:[%s3557 + $0x18] sm:$0xff]
      %v3562 = vld [vmem:[%s3557 + $0x20] sm:$0xff]
      %v3563 = vld [vmem:[%s3557 + $0x28] sm:$0xff]
      %v3564 = vrot.slane %v3396, 2
      %v3565 = vsel %vm3412, %v3564, 0
      %3567 = vmatprep.subr.mxu0 0.0
      %3568 = vmatpush1.msra.mxu0 %v3558
      %3569 = vmatprep.subr.mxu0 0.0
      %3570 = vmatpush1.msra.mxu0 %v3559
      %3571 = vmatprep.subr.mxu0 0.0
      %3572 = vmatpush1.msra.mxu0 %v3560
      %3573 = vmatprep.subr.mxu0 0.0
      %3574 = vmatpush1.msra.mxu0 %v3561
      %3575 = vmatprep.subr.mxu0 0.0
      %3576 = vmatpush1.msra.mxu0 %v3562
      %3577 = vmatprep.subr.mxu0 0.0
      %3578 = vmatpush1.msra.mxu0 %v3563
      %3579 = vmatprep.subr.mxu0 0.0
      %3580 = vmatpush1.msra.mxu0 0.0
      %3581 = vmatprep.subr.mxu0 0.0
      %3582 = vmatpush1.msra.mxu0 0.0
      %3583 = vmatprep.subr.mxu0 0.0
      %3584 = vmatpush1.msra.mxu0 0.0
      %3585 = vmatprep.subr.mxu0 0.0
      %3586 = vmatpush1.msra.mxu0 0.0
      %3587 = vmatprep.subr.mxu0 0.0
      %3588 = vmatpush1.msra.mxu0 0.0
      %3589 = vmatprep.subr.mxu0 0.0
      %3590 = vmatpush1.msra.mxu0 0.0
      %3591 = vmatprep.subr.mxu0 0.0
      %3592 = vmatpush1.msra.mxu0 0.0
      %3593 = vmatprep.subr.mxu0 0.0
      %3594 = vmatpush1.msra.mxu0 0.0
      %3595 = vmatprep.subr.mxu0 0.0
      %3596 = vmatpush1.msra.mxu0 0.0
      %3597 = vmatprep.subr.mxu0 0.0
      %3598 = vmatpush1.msra.mxu0 0.0
      %3599 = vmatprep.subr.mxu0 0.0
      %3600 = vmatpush1.msra.mxu0 0.0
      %3601 = vmatprep.subr.mxu0 0.0
      %3602 = vmatpush1.msra.mxu0 0.0
      %3603 = vmatprep.subr.mxu0 0.0
      %3604 = vmatpush1.msra.mxu0 0.0
      %3605 = vmatprep.subr.mxu0 0.0
      %3606 = vmatpush1.msra.mxu0 0.0
      %3607 = vmatprep.subr.mxu0 0.0
      %3608 = vmatpush1.msra.mxu0 0.0
      %3609 = vmatprep.subr.mxu0 0.0
      %3610 = vmatpush1.msra.mxu0 0.0
      %3611 = vmatprep.subr.mxu0 0.0
      %3612 = vmatpush1.msra.mxu0 0.0
      %3613 = vmatprep.subr.mxu0 0.0
      %3614 = vmatpush1.msra.mxu0 0.0
      %3615 = vmatprep.subr.mxu0 0.0
      %3616 = vmatpush1.msra.mxu0 0.0
      %3617 = vmatprep.subr.mxu0 0.0
      %3618 = vmatpush1.msra.mxu0 0.0
      %3619 = vmatprep.subr.mxu0 0.0
      %3620 = vmatpush1.msra.mxu0 0.0
      %3621 = vmatprep.subr.mxu0 0.0
      %3622 = vmatpush1.msra.mxu0 0.0
      %3623 = vmatprep.subr.mxu0 0.0
      %3624 = vmatpush1.msra.mxu0 0.0
      %3625 = vmatprep.subr.mxu0 0.0
      %3626 = vmatpush1.msra.mxu0 0.0
      %3627 = vmatprep.subr.mxu0 0.0
      %3628 = vmatpush1.msra.mxu0 0.0
      %3629 = vmatprep.subr.mxu0 0.0
      %3630 = vmatpush1.msra.mxu0 0.0
      %3631 = vmatprep.mubr.f32.mxu0 0.0
      %3632 = vmatmul.mubr.f32.gmra.mrb[0].mxu0 %v3565
      %v3633 = vpop.f32.mrb[0].mxu0
      %v3634 = vadd.f32 0.0, %v3633
      %v3635 = vpop.f32.mrb[0].mxu0
      %3636 = vdwg.mxu0
      %v3637 = vadd.f32 %v3554, %v3634
      %v3638 = vld [vmem:[%s22] sm:$0x1]
      %v3640 = vlaneseq
      %v3641 = vshrl.u32 %v3640, 7
      %v3642 = vsub.s32 0, %v3641
      %v3643 = vrot.slane %v3638, %v3642
      %v3645 = vadd.f32 %v3637, %v3643
      %v3646 = vld [vmem:[%s23] sm:$0xff]
      %v3647 = vld [vmem:[%s23 + $0x8] sm:$0xff]
      %v3648 = vld [vmem:[%s23 + $0x10] sm:$0xff]
      %v3649 = vld [vmem:[%s23 + $0x18] sm:$0xff]
      %v3650 = vld [vmem:[%s23 + $0x20] sm:$0xff]
      %v3651 = vld [vmem:[%s23 + $0x28] sm:$0xff]
      %v3652 = vld [vmem:[%s23 + $0x30] sm:$0xff]
      %v3653 = vld [vmem:[%s23 + $0x38] sm:$0xff]
      %v3654 = vld [vmem:[%s24] sm:$0xff]
      %v3655 = vld [vmem:[%s24 + $0x8] sm:$0xff]
      %v3656 = vld [vmem:[%s24 + $0x10] sm:$0xff]
      %v3657 = vld [vmem:[%s24 + $0x18] sm:$0xff]
      %v3658 = vld [vmem:[%s24 + $0x20] sm:$0xff]
      %v3659 = vld [vmem:[%s24 + $0x28] sm:$0xff]
      %v3660 = vld [vmem:[%s24 + $0x30] sm:$0xff]
      %v3661 = vld [vmem:[%s24 + $0x38] sm:$0xff]
      %v3662 = vld [vmem:[%s24 + $0x40] sm:$0xff]
      %v3663 = vld [vmem:[%s24 + $0x48] sm:$0xff]
      %v3664 = vld [vmem:[%s24 + $0x50] sm:$0xff]
      %v3665 = vld [vmem:[%s24 + $0x58] sm:$0xff]
      %v3666 = vld [vmem:[%s24 + $0x60] sm:$0xff]
      %v3667 = vld [vmem:[%s24 + $0x68] sm:$0xff]
      %v3668 = vld [vmem:[%s24 + $0x70] sm:$0xff]
      %v3669 = vld [vmem:[%s24 + $0x78] sm:$0xff]
      %3670 = vmatprep.subr.mxu0 0.0
      %3671 = vmatpush1.msra.mxu0 %v3654
      %3672 = vmatprep.subr.mxu0 0.0
      %3673 = vmatpush1.msra.mxu0 %v3655
      %3674 = vmatprep.subr.mxu0 0.0
      %3675 = vmatpush1.msra.mxu0 %v3656
      %3676 = vmatprep.subr.mxu0 0.0
      %3677 = vmatpush1.msra.mxu0 %v3657
      %3678 = vmatprep.subr.mxu0 0.0
      %3679 = vmatpush1.msra.mxu0 %v3658
      %3680 = vmatprep.subr.mxu0 0.0
      %3681 = vmatpush1.msra.mxu0 %v3659
      %3682 = vmatprep.subr.mxu0 0.0
      %3683 = vmatpush1.msra.mxu0 %v3660
      %3684 = vmatprep.subr.mxu0 0.0
      %3685 = vmatpush1.msra.mxu0 %v3661
      %3686 = vmatprep.subr.mxu0 0.0
      %3687 = vmatpush1.msra.mxu0 %v3662
      %3688 = vmatprep.subr.mxu0 0.0
      %3689 = vmatpush1.msra.mxu0 %v3663
      %3690 = vmatprep.subr.mxu0 0.0
      %3691 = vmatpush1.msra.mxu0 %v3664
      %3692 = vmatprep.subr.mxu0 0.0
      %3693 = vmatpush1.msra.mxu0 %v3665
      %3694 = vmatprep.subr.mxu0 0.0
      %3695 = vmatpush1.msra.mxu0 %v3666
      %3696 = vmatprep.subr.mxu0 0.0
      %3697 = vmatpush1.msra.mxu0 %v3667
      %3698 = vmatprep.subr.mxu0 0.0
      %3699 = vmatpush1.msra.mxu0 %v3668
      %3700 = vmatprep.subr.mxu0 0.0
      %3701 = vmatpush1.msra.mxu0 %v3669
      %3702 = vmatprep.subr.mxu0 0.0
      %3703 = vmatpush1.msra.mxu0 0.0
      %3704 = vmatprep.subr.mxu0 0.0
      %3705 = vmatpush1.msra.mxu0 0.0
      %3706 = vmatprep.subr.mxu0 0.0
      %3707 = vmatpush1.msra.mxu0 0.0
      %3708 = vmatprep.subr.mxu0 0.0
      %3709 = vmatpush1.msra.mxu0 0.0
      %3710 = vmatprep.subr.mxu0 0.0
      %3711 = vmatpush1.msra.mxu0 0.0
      %3712 = vmatprep.subr.mxu0 0.0
      %3713 = vmatpush1.msra.mxu0 0.0
      %3714 = vmatprep.subr.mxu0 0.0
      %3715 = vmatpush1.msra.mxu0 0.0
      %3716 = vmatprep.subr.mxu0 0.0
      %3717 = vmatpush1.msra.mxu0 0.0
      %3718 = vmatprep.subr.mxu0 0.0
      %3719 = vmatpush1.msra.mxu0 0.0
      %3720 = vmatprep.subr.mxu0 0.0
      %3721 = vmatpush1.msra.mxu0 0.0
      %3722 = vmatprep.subr.mxu0 0.0
      %3723 = vmatpush1.msra.mxu0 0.0
      %3724 = vmatprep.subr.mxu0 0.0
      %3725 = vmatpush1.msra.mxu0 0.0
      %3726 = vmatprep.subr.mxu0 0.0
      %3727 = vmatpush1.msra.mxu0 0.0
      %3728 = vmatprep.subr.mxu0 0.0
      %3729 = vmatpush1.msra.mxu0 0.0
      %3730 = vmatprep.subr.mxu0 0.0
      %3731 = vmatpush1.msra.mxu0 0.0
      %3732 = vmatprep.subr.mxu0 0.0
      %3733 = vmatpush1.msra.mxu0 0.0
      %3734 = vmatprep.mubr.f32.mxu0 0.0
      %3735 = vmatmul.mubr.f32.gmra.mrb[0].mxu0 %v3315
      %v3736 = vpop.f32.mrb[0].mxu0
      %v3737 = vadd.f32 0.0, %v3736
      %v3738 = vpop.f32.mrb[0].mxu0
      %3739 = vdwg.mxu0
      %3740 = vmatprep.subr.mxu0 0.0
      %3741 = vmatpush1.msra.mxu0 %v3646
      %3742 = vmatprep.subr.mxu0 0.0
      %3743 = vmatpush1.msra.mxu0 %v3647
      %3744 = vmatprep.subr.mxu0 0.0
      %3745 = vmatpush1.msra.mxu0 %v3648
      %3746 = vmatprep.subr.mxu0 0.0
      %3747 = vmatpush1.msra.mxu0 %v3649
      %3748 = vmatprep.subr.mxu0 0.0
      %3749 = vmatpush1.msra.mxu0 %v3650
      %3750 = vmatprep.subr.mxu0 0.0
      %3751 = vmatpush1.msra.mxu0 %v3651
      %3752 = vmatprep.subr.mxu0 0.0
      %3753 = vmatpush1.msra.mxu0 %v3652
      %3754 = vmatprep.subr.mxu0 0.0
      %3755 = vmatpush1.msra.mxu0 %v3653
      %3756 = vmatprep.subr.mxu0 0.0
      %3757 = vmatpush1.msra.mxu0 0.0
      %3758 = vmatprep.subr.mxu0 0.0
      %3759 = vmatpush1.msra.mxu0 0.0
      %3760 = vmatprep.subr.mxu0 0.0
      %3761 = vmatpush1.msra.mxu0 0.0
      %3762 = vmatprep.subr.mxu0 0.0
      %3763 = vmatpush1.msra.mxu0 0.0
      %3764 = vmatprep.subr.mxu0 0.0
      %3765 = vmatpush1.msra.mxu0 0.0
      %3766 = vmatprep.subr.mxu0 0.0
      %3767 = vmatpush1.msra.mxu0 0.0
      %3768 = vmatprep.subr.mxu0 0.0
      %3769 = vmatpush1.msra.mxu0 0.0
      %3770 = vmatprep.subr.mxu0 0.0
      %3771 = vmatpush1.msra.mxu0 0.0
      %3772 = vmatprep.subr.mxu0 0.0
      %3773 = vmatpush1.msra.mxu0 0.0
      %3774 = vmatprep.subr.mxu0 0.0
      %3775 = vmatpush1.msra.mxu0 0.0
      %3776 = vmatprep.subr.mxu0 0.0
      %3777 = vmatpush1.msra.mxu0 0.0
      %3778 = vmatprep.subr.mxu0 0.0
      %3779 = vmatpush1.msra.mxu0 0.0
      %3780 = vmatprep.subr.mxu0 0.0
      %3781 = vmatpush1.msra.mxu0 0.0
      %3782 = vmatprep.subr.mxu0 0.0
      %3783 = vmatpush1.msra.mxu0 0.0
      %3784 = vmatprep.subr.mxu0 0.0
      %3785 = vmatpush1.msra.mxu0 0.0
      %3786 = vmatprep.subr.mxu0 0.0
      %3787 = vmatpush1.msra.mxu0 0.0
      %3788 = vmatprep.subr.mxu0 0.0
      %3789 = vmatpush1.msra.mxu0 0.0
      %3790 = vmatprep.subr.mxu0 0.0
      %3791 = vmatpush1.msra.mxu0 0.0
      %3792 = vmatprep.subr.mxu0 0.0
      %3793 = vmatpush1.msra.mxu0 0.0
      %3794 = vmatprep.subr.mxu0 0.0
      %3795 = vmatpush1.msra.mxu0 0.0
      %3796 = vmatprep.subr.mxu0 0.0
      %3797 = vmatpush1.msra.mxu0 0.0
      %3798 = vmatprep.subr.mxu0 0.0
      %3799 = vmatpush1.msra.mxu0 0.0
      %3800 = vmatprep.subr.mxu0 0.0
      %3801 = vmatpush1.msra.mxu0 0.0
      %3802 = vmatprep.subr.mxu0 0.0
      %3803 = vmatpush1.msra.mxu0 0.0
      %3804 = vmatprep.mubr.f32.mxu0 0.0
      %3805 = vmatmul.mubr.f32.gmra.mrb[0].mxu0 %v3225
      %v3806 = vpop.f32.mrb[0].mxu0
      %v3807 = vadd.f32 %v3737, %v3806
      %v3808 = vpop.f32.mrb[0].mxu0
      %3809 = vdwg.mxu0
      %v3810 = vld [vmem:[%s25] sm:$0x1]
      %v3812 = vlaneseq
      %v3813 = vshrl.u32 %v3812, 7
      %v3814 = vsub.s32 0, %v3813
      %v3815 = vrot.slane %v3810, %v3814
      %v3817 = vadd.f32 %v3807, %v3815
      %v3818 = vadd.f32 %v3645, %v3817
      %v3819 = vmax.f32 %v3818, 0.0
      %vm3820 = vcmask 257024
      %3821 = vst.msk [vmem:[%s789] sm:$0xf] %vm3820, %v3819
      %p3822 = scmp.lt.s32.totalorder %s37, 1
      %s3823 = scalar_select %p3822, %s37, 1
      %s3824 = smul.addr %s3823, 4
      %s3825 = scalar_lea.vmem %s26, %s3824
      // Predicated region
      $region125: #{_lambda_.1} parent=123 // pred_check
        %p3826 = pneg %p606
      $region126: #{_lambda_.1} parent=123 // pred_check_branch
        %3828 = sbr.rel (%p3826) target = $region128
      $region127: #{_lambda_.1} parent=123 // pred_region
        _
      $region128: #{_lambda_.1} parent=123 // pred_fallthru
        _
    $region124: #{_lambda_.1} parent=5 // pred_fallthru
      _
    %p3829 = scmp.le.s32.totalorder 2, %s32
    // Predicated region
    $region129: #{_lambda_.1} parent=5 // pred_check
      %p3830 = pneg %p3829
    $region130: #{_lambda_.1} parent=5 // pred_check_branch
      %3832 = sbr.rel (%p3830) target = $region132
    $region131: #{_lambda_.1} parent=5 // pred_region
      %s3833 = ssub.s32 %s32, 2
      // Predicated region
      $region133: #{_lambda_.1} parent=131 // pred_check
        %p3834 = pneg %p612
      $region134: #{_lambda_.1} parent=131 // pred_check_branch
        %3836 = sbr.rel (%p3834) target = $region136
      $region135: #{_lambda_.1} parent=131 // pred_region
        %p3837 = scmp.lt.s32.totalorder %s38, 1
        %s3838 = scalar_select %p3837, %s38, 1
        %s3839 = smul.addr %s3838, 4
        %s3840 = scalar_lea.vmem %s26, %s3839
      $region136: #{_lambda_.1} parent=131 // pred_fallthru
        _
    $region132: #{_lambda_.1} parent=5 // pred_fallthru
      _
  $region6: #{_lambda_.1} parent=0 // loop_footer
    %s36 = sadd.s32 1, %s32
  $region7: #{_lambda_.1} parent=0 // loop_footer_branch
    %31 = sbr.rel target = $region3
  $region8: #{_lambda_.1} parent=0 // loop_exit
    _

</llo_original>
